<compile_context>
chip_gen: v7x
topology: tpu7x:2x2x1
jax: 0.10.0
libtpu: 0.0.40
codegen_flags: <defaults>
</compile_context>

<pallas_src>
import functools

import jax
import jax.numpy as jnp
from jax import lax
from jax.experimental import pallas as pl
from jax.experimental.pallas import tpu as pltpu


def _gru_linear_kernel(x_ref, p_ref, out_ref, *, H):
    """GRU recurrence + fused output Linear for one batch block.

    x_ref   : (T, Bb)  VMEM — time-major input, batch on lanes (I=1 squeezed)
    p_ref   : (P,)     SMEM — packed f32 params (see wrapper for layout)
    out_ref : (T, Bb)  VMEM — time-major output, batch on lanes
    """
    T, Bb = x_ref.shape

    # ---- packed-parameter offsets (all static Python ints) ----
    W_I = 0                       # w_i{r,z,n}[j]           : 3H scalars
    W_H = W_I + 3 * H             # w_h{r,z,n}[j, k]        : 3H*H scalars (row-major)
    B_RZ = W_H + 3 * H * H        # b_r[j] = b_ir+b_hr, b_z[j] = b_iz+b_hz : 2H
    B_IN = B_RZ + 2 * H           # b_in[j]                 : H
    B_HN = B_IN + H               # b_hn[j]                 : H
    W_O = B_HN + H                # w_out[j]                : H
    B_O = W_O + H                 # b_out                   : 1

    # ---- hoist every SMEM scalar read out of the serial chain ----
    w_ir = [p_ref[W_I + 0 * H + j] for j in range(H)]
    w_iz = [p_ref[W_I + 1 * H + j] for j in range(H)]
    w_in = [p_ref[W_I + 2 * H + j] for j in range(H)]
    w_hr = [[p_ref[W_H + 0 * H * H + j * H + k] for k in range(H)] for j in range(H)]
    w_hz = [[p_ref[W_H + 1 * H * H + j * H + k] for k in range(H)] for j in range(H)]
    w_hn = [[p_ref[W_H + 2 * H * H + j * H + k] for k in range(H)] for j in range(H)]
    b_r = [p_ref[B_RZ + j] for j in range(H)]
    b_z = [p_ref[B_RZ + H + j] for j in range(H)]
    b_in = [p_ref[B_IN + j] for j in range(H)]
    b_hn = [p_ref[B_HN + j] for j in range(H)]
    w_o = [p_ref[W_O + j] for j in range(H)]
    b_o = p_ref[B_O]

    x = x_ref[...].astype(jnp.float32)                       # (T, Bb), batch on lanes

    def sigmoid(v):
        # explicit form: exp + divide (both lower cleanly to EUP/VPU)
        return 1.0 / (1.0 + jnp.exp(-v))

    # ---- serial recurrence: statically unrolled, scalar-broadcast FMAs on (1, Bb) ----
    h = [jnp.zeros((1, Bb), jnp.float32) for _ in range(H)]
    ys = []
    for t in range(T):
        x_t = x[t:t + 1, :]                                   # (1, Bb)
        h_new = []
        for j in range(H):
            gh_r = h[0] * w_hr[j][0]
            gh_z = h[0] * w_hz[j][0]
            gh_n = h[0] * w_hn[j][0]
            for k in range(1, H):
                gh_r = gh_r + h[k] * w_hr[j][k]
                gh_z = gh_z + h[k] * w_hz[j][k]
                gh_n = gh_n + h[k] * w_hn[j][k]
            r = sigmoid(x_t * w_ir[j] + b_r[j] + gh_r)
            z = sigmoid(x_t * w_iz[j] + b_z[j] + gh_z)
            n = jnp.tanh(x_t * w_in[j] + b_in[j] + r * (gh_n + b_hn[j]))
            h_new.append((1.0 - z) * n + z * h[j])
        h = h_new

        # fused output Linear: y_t = sum_j w_out[j] * h_j + b_out   (H scalar FMAs)
        y_t = h[0] * w_o[0]
        for j in range(1, H):
            y_t = y_t + h[j] * w_o[j]
        ys.append(y_t + b_o)

    # ---- single bulk, lane-dense store of the whole output block ----
    out_ref[...] = jnp.concatenate(ys, axis=0).astype(out_ref.dtype)


def _pack_params(params, H):
    """Pack all GRU + Linear parameters into one flat f32 vector (SMEM resident)."""
    f32 = jnp.float32
    w_ih = params["w_ih"].astype(f32)            # (3H, 1), gate order (r, z, n)
    w_hh = params["w_hh"].astype(f32)            # (3H, H)
    b_ih = params["b_ih"].astype(f32)            # (3H,)
    b_hh = params["b_hh"].astype(f32)            # (3H,)
    w_out = params["w_out"].astype(f32).reshape(-1)   # (H,)
    b_out = params["b_out"].astype(f32).reshape(-1)   # (1,)
    return jnp.concatenate([
        w_ih[:, 0],                              # 3H   : w_ir, w_iz, w_in
        w_hh.reshape(-1),                        # 3H*H : w_hr rows, w_hz rows, w_hn rows
        b_ih[:2 * H] + b_hh[:2 * H],             # 2H   : b_r, b_z (pre-summed)
        b_ih[2 * H:],                            # H    : b_in
        b_hh[2 * H:],                            # H    : b_hn (kept inside r*(.) grouping)
        w_out,                                   # H
        b_out,                                   # 1
    ])


def operator_approximator_forward(x, params, *, batch_block=None):
    """x: (B, T, 1) batch-first (PyTorch convention). Returns (B, T, 1)."""
    B, T, I = x.shape
    assert I == 1, "OperatorApproximator uses input_size=1"
    H = params["w_hh"].shape[1]

    if batch_block is None:
        # grid=(1,) by default: right choice for single-TC v5e/v6e (extra grid steps are
        # a serial loop). For v7x megacore pass batch_block = B // 2 (128-aligned).
        batch_block = B
    assert B % batch_block == 0, "batch_block must divide the batch size"
    # (8,128) BlockSpec rule: when the batch is split, the last block dim must be a
    # multiple of 128 (it is also the lane-dense store width).
    assert batch_block == B or batch_block % 128 == 0, \
        "batch_block must equal B or be a multiple of 128"

    f32 = jnp.float32
    packed = _pack_params(params, H)                                  # (3H^2 + 8H + 1,)
    x_tm = jnp.transpose(x[..., 0], (1, 0)).astype(f32)               # (T, B), I squeezed

    kernel = functools.partial(_gru_linear_kernel, H=H)

    out_tm = pl.pallas_call(
        kernel,
        out_shape=jax.ShapeDtypeStruct((T, B), f32),
        grid_spec=pltpu.PrefetchScalarGridSpec(
            num_scalar_prefetch=0,
            grid=(B // batch_block,),
            in_specs=[
                pl.BlockSpec((T, batch_block), lambda b: (0, b)),
                pl.BlockSpec(memory_space=pltpu.MemorySpace.SMEM),    # packed params
            ],
            out_specs=pl.BlockSpec((T, batch_block), lambda b: (0, b)),
        ),
        compiler_params=pltpu.CompilerParams(
            dimension_semantics=("parallel",)),
    )(x_tm, packed)

    return jnp.transpose(out_tm, (1, 0))[..., None]                   # (B, T, 1)


def _reference_forward(x, params):
    """Pure-JAX reference (lax.scan) mirroring torch.nn.GRU + Linear."""
    H = params["w_hh"].shape[1]
    wih_t = params["w_ih"].T
    whh_t = params["w_hh"].T
    bih = params["b_ih"]
    bhh = params["b_hh"]

    def cell(h, x_t):
        gi = x_t @ wih_t + bih
        gh = h @ whh_t + bhh
        r = jax.nn.sigmoid(gi[:, :H] + gh[:, :H])
        z = jax.nn.sigmoid(gi[:, H:2 * H] + gh[:, H:2 * H])
        n = jnp.tanh(gi[:, 2 * H:] + r * gh[:, 2 * H:])
        h_new = (1.0 - z) * n + z * h
        return h_new, h_new

    x_tm = jnp.transpose(x, (1, 0, 2))
    h0 = jnp.zeros((x.shape[0], H), jnp.float32)
    _, hs = lax.scan(cell, h0, x_tm)                                  # (T, B, H)
    out = hs @ params["w_out"].T + params["b_out"]                    # (T, B, 1)
    return jnp.transpose(out, (1, 0, 2))


def init_params(key, input_size=1, hidden_size=3):
    """PyTorch-shaped params: GRU(input, hidden, 1) + Linear(hidden, 1), U(-1/sqrt(H), 1/sqrt(H))."""
    H, I = hidden_size, input_size
    k = 1.0 / jnp.sqrt(jnp.float32(H))
    keys = jax.random.split(key, 6)
    u = lambda kk, shape, bound: jax.random.uniform(kk, shape, jnp.float32, -bound, bound)
    return {
        "w_ih": u(keys[0], (3 * H, I), k),    # weight_ih_l0, gate order (r, z, n)
        "w_hh": u(keys[1], (3 * H, H), k),    # weight_hh_l0
        "b_ih": u(keys[2], (3 * H,), k),      # bias_ih_l0
        "b_hh": u(keys[3], (3 * H,), k),      # bias_hh_l0
        "w_out": u(keys[4], (1, H), k),       # output Linear weight (1, H)
        "b_out": u(keys[5], (1,), k),         # output Linear bias
    }


# TODO(synk): training machinery (optimizer/scheduler/autograd .grad()/batch sampling) of
# FunctionApproximator is host-side PyTorch logic with no Pallas equivalent; only the
# forward pass is implemented.

if __name__ == "__main__":
    key = jax.random.PRNGKey(0)
    k_param, k_x = jax.random.split(key)

    batch, seq, input_size, hidden_size = 2, 8, 1, 3
    params = init_params(k_param, input_size=input_size, hidden_size=hidden_size)
    x = jax.random.normal(k_x, (batch, seq, input_size), dtype=jnp.float32)

    fwd = jax.jit(functools.partial(operator_approximator_forward, params=params))
    out = fwd(x)
    jax.block_until_ready(out)

    ref = _reference_forward(x, params)
    assert out.shape == (batch, seq, 1)
    assert jnp.allclose(out, ref, atol=1e-5, rtol=1e-5)

    print("KERNEL_OK")
</pallas_src>

<mosaic_0001>
module attributes {stable_mosaic.version = 11 : i64} {
  func.func @_gru_linear_kernel(%arg0: i32, %arg1: memref<8x2xf32, #tpu.memory_space<vmem>>, %arg2: memref<52xf32, #tpu.memory_space<smem>>, %arg3: memref<8x2xf32, #tpu.memory_space<vmem>>) attributes {dimension_semantics = [#tpu.dimension_semantics<parallel>], iteration_bounds = array<i64: 1>, scalar_prefetch = 0 : i64, scratch_operands = 0 : i64, tpu.core_type = #tpu.core_type<tc>, window_params = [{transform_indices = @transform_0, window_bounds = array<i64: 8, 2>}, {transform_indices = @transform_1, window_bounds = array<i64: 52>}, {transform_indices = @transform_2, window_bounds = array<i64: 8, 2>}]} {
    %c0 = arith.constant 0 : index
    %0 = memref.load %arg2[%c0] : memref<52xf32, #tpu.memory_space<smem>>
    %c1 = arith.constant 1 : index
    %1 = memref.load %arg2[%c1] : memref<52xf32, #tpu.memory_space<smem>>
    %c2 = arith.constant 2 : index
    %2 = memref.load %arg2[%c2] : memref<52xf32, #tpu.memory_space<smem>>
    %c3 = arith.constant 3 : index
    %3 = memref.load %arg2[%c3] : memref<52xf32, #tpu.memory_space<smem>>
    %c4 = arith.constant 4 : index
    %4 = memref.load %arg2[%c4] : memref<52xf32, #tpu.memory_space<smem>>
    %c5 = arith.constant 5 : index
    %5 = memref.load %arg2[%c5] : memref<52xf32, #tpu.memory_space<smem>>
    %c6 = arith.constant 6 : index
    %6 = memref.load %arg2[%c6] : memref<52xf32, #tpu.memory_space<smem>>
    %c7 = arith.constant 7 : index
    %7 = memref.load %arg2[%c7] : memref<52xf32, #tpu.memory_space<smem>>
    %c8 = arith.constant 8 : index
    %8 = memref.load %arg2[%c8] : memref<52xf32, #tpu.memory_space<smem>>
    %c9 = arith.constant 9 : index
    %9 = memref.load %arg2[%c9] : memref<52xf32, #tpu.memory_space<smem>>
    %c10 = arith.constant 10 : index
    %10 = memref.load %arg2[%c10] : memref<52xf32, #tpu.memory_space<smem>>
    %c11 = arith.constant 11 : index
    %11 = memref.load %arg2[%c11] : memref<52xf32, #tpu.memory_space<smem>>
    %c12 = arith.constant 12 : index
    %12 = memref.load %arg2[%c12] : memref<52xf32, #tpu.memory_space<smem>>
    %c13 = arith.constant 13 : index
    %13 = memref.load %arg2[%c13] : memref<52xf32, #tpu.memory_space<smem>>
    %c14 = arith.constant 14 : index
    %14 = memref.load %arg2[%c14] : memref<52xf32, #tpu.memory_space<smem>>
    %c15 = arith.constant 15 : index
    %15 = memref.load %arg2[%c15] : memref<52xf32, #tpu.memory_space<smem>>
    %c16 = arith.constant 16 : index
    %16 = memref.load %arg2[%c16] : memref<52xf32, #tpu.memory_space<smem>>
    %c17 = arith.constant 17 : index
    %17 = memref.load %arg2[%c17] : memref<52xf32, #tpu.memory_space<smem>>
    %c18 = arith.constant 18 : index
    %18 = memref.load %arg2[%c18] : memref<52xf32, #tpu.memory_space<smem>>
    %c19 = arith.constant 19 : index
    %19 = memref.load %arg2[%c19] : memref<52xf32, #tpu.memory_space<smem>>
    %c20 = arith.constant 20 : index
    %20 = memref.load %arg2[%c20] : memref<52xf32, #tpu.memory_space<smem>>
    %c21 = arith.constant 21 : index
    %21 = memref.load %arg2[%c21] : memref<52xf32, #tpu.memory_space<smem>>
    %c22 = arith.constant 22 : index
    %22 = memref.load %arg2[%c22] : memref<52xf32, #tpu.memory_space<smem>>
    %c23 = arith.constant 23 : index
    %23 = memref.load %arg2[%c23] : memref<52xf32, #tpu.memory_space<smem>>
    %c24 = arith.constant 24 : index
    %24 = memref.load %arg2[%c24] : memref<52xf32, #tpu.memory_space<smem>>
    %c25 = arith.constant 25 : index
    %25 = memref.load %arg2[%c25] : memref<52xf32, #tpu.memory_space<smem>>
    %c26 = arith.constant 26 : index
    %26 = memref.load %arg2[%c26] : memref<52xf32, #tpu.memory_space<smem>>
    %c27 = arith.constant 27 : index
    %27 = memref.load %arg2[%c27] : memref<52xf32, #tpu.memory_space<smem>>
    %c28 = arith.constant 28 : index
    %28 = memref.load %arg2[%c28] : memref<52xf32, #tpu.memory_space<smem>>
    %c29 = arith.constant 29 : index
    %29 = memref.load %arg2[%c29] : memref<52xf32, #tpu.memory_space<smem>>
    %c30 = arith.constant 30 : index
    %30 = memref.load %arg2[%c30] : memref<52xf32, #tpu.memory_space<smem>>
    %c31 = arith.constant 31 : index
    %31 = memref.load %arg2[%c31] : memref<52xf32, #tpu.memory_space<smem>>
    %c32 = arith.constant 32 : index
    %32 = memref.load %arg2[%c32] : memref<52xf32, #tpu.memory_space<smem>>
    %c33 = arith.constant 33 : index
    %33 = memref.load %arg2[%c33] : memref<52xf32, #tpu.memory_space<smem>>
    %c34 = arith.constant 34 : index
    %34 = memref.load %arg2[%c34] : memref<52xf32, #tpu.memory_space<smem>>
    %c35 = arith.constant 35 : index
    %35 = memref.load %arg2[%c35] : memref<52xf32, #tpu.memory_space<smem>>
    %c36 = arith.constant 36 : index
    %36 = memref.load %arg2[%c36] : memref<52xf32, #tpu.memory_space<smem>>
    %c37 = arith.constant 37 : index
    %37 = memref.load %arg2[%c37] : memref<52xf32, #tpu.memory_space<smem>>
    %c38 = arith.constant 38 : index
    %38 = memref.load %arg2[%c38] : memref<52xf32, #tpu.memory_space<smem>>
    %c39 = arith.constant 39 : index
    %39 = memref.load %arg2[%c39] : memref<52xf32, #tpu.memory_space<smem>>
    %c40 = arith.constant 40 : index
    %40 = memref.load %arg2[%c40] : memref<52xf32, #tpu.memory_space<smem>>
    %c41 = arith.constant 41 : index
    %41 = memref.load %arg2[%c41] : memref<52xf32, #tpu.memory_space<smem>>
    %c42 = arith.constant 42 : index
    %42 = memref.load %arg2[%c42] : memref<52xf32, #tpu.memory_space<smem>>
    %c43 = arith.constant 43 : index
    %43 = memref.load %arg2[%c43] : memref<52xf32, #tpu.memory_space<smem>>
    %c44 = arith.constant 44 : index
    %44 = memref.load %arg2[%c44] : memref<52xf32, #tpu.memory_space<smem>>
    %c45 = arith.constant 45 : index
    %45 = memref.load %arg2[%c45] : memref<52xf32, #tpu.memory_space<smem>>
    %c46 = arith.constant 46 : index
    %46 = memref.load %arg2[%c46] : memref<52xf32, #tpu.memory_space<smem>>
    %c47 = arith.constant 47 : index
    %47 = memref.load %arg2[%c47] : memref<52xf32, #tpu.memory_space<smem>>
    %c48 = arith.constant 48 : index
    %48 = memref.load %arg2[%c48] : memref<52xf32, #tpu.memory_space<smem>>
    %c49 = arith.constant 49 : index
    %49 = memref.load %arg2[%c49] : memref<52xf32, #tpu.memory_space<smem>>
    %c50 = arith.constant 50 : index
    %50 = memref.load %arg2[%c50] : memref<52xf32, #tpu.memory_space<smem>>
    %c51 = arith.constant 51 : index
    %51 = memref.load %arg2[%c51] : memref<52xf32, #tpu.memory_space<smem>>
    %c0_0 = arith.constant 0 : index
    %c0_1 = arith.constant 0 : index
    %52 = vector.load %arg1[%c0_0, %c0_1] : memref<8x2xf32, #tpu.memory_space<vmem>>, vector<8x2xf32>
    %cst = arith.constant 0.000000e+00 : f32
    %53 = vector.broadcast %cst : f32 to vector<1x2xf32>
    %cst_2 = arith.constant 0.000000e+00 : f32
    %54 = vector.broadcast %cst_2 : f32 to vector<1x2xf32>
    %cst_3 = arith.constant 0.000000e+00 : f32
    %55 = vector.broadcast %cst_3 : f32 to vector<1x2xf32>
    %56 = vector.extract_strided_slice %52 {offsets = [0, 0], sizes = [1, 2], strides = [1, 1]} : vector<8x2xf32> to vector<1x2xf32>
    %57 = vector.broadcast %9 : f32 to vector<1x2xf32>
    %58 = arith.mulf %53, %57 : vector<1x2xf32>
    %59 = vector.broadcast %18 : f32 to vector<1x2xf32>
    %60 = arith.mulf %53, %59 : vector<1x2xf32>
    %61 = vector.broadcast %27 : f32 to vector<1x2xf32>
    %62 = arith.mulf %53, %61 : vector<1x2xf32>
    %63 = vector.broadcast %10 : f32 to vector<1x2xf32>
    %64 = arith.mulf %54, %63 : vector<1x2xf32>
    %65 = arith.addf %58, %64 : vector<1x2xf32>
    %66 = vector.broadcast %19 : f32 to vector<1x2xf32>
    %67 = arith.mulf %54, %66 : vector<1x2xf32>
    %68 = arith.addf %60, %67 : vector<1x2xf32>
    %69 = vector.broadcast %28 : f32 to vector<1x2xf32>
    %70 = arith.mulf %54, %69 : vector<1x2xf32>
    %71 = arith.addf %62, %70 : vector<1x2xf32>
    %72 = vector.broadcast %11 : f32 to vector<1x2xf32>
    %73 = arith.mulf %55, %72 : vector<1x2xf32>
    %74 = arith.addf %65, %73 : vector<1x2xf32>
    %75 = vector.broadcast %20 : f32 to vector<1x2xf32>
    %76 = arith.mulf %55, %75 : vector<1x2xf32>
    %77 = arith.addf %68, %76 : vector<1x2xf32>
    %78 = vector.broadcast %29 : f32 to vector<1x2xf32>
    %79 = arith.mulf %55, %78 : vector<1x2xf32>
    %80 = arith.addf %71, %79 : vector<1x2xf32>
    %81 = vector.broadcast %0 : f32 to vector<1x2xf32>
    %82 = arith.mulf %56, %81 : vector<1x2xf32>
    %83 = vector.broadcast %36 : f32 to vector<1x2xf32>
    %84 = arith.addf %82, %83 : vector<1x2xf32>
    %85 = arith.addf %84, %74 : vector<1x2xf32>
    %cst_4 = arith.constant 0.000000e+00 : f32
    %86 = vector.broadcast %cst_4 : f32 to vector<1x2xf32>
    %87 = arith.subf %86, %85 : vector<1x2xf32>
    %88 = math.exp %87 : vector<1x2xf32>
    %cst_5 = arith.constant 1.000000e+00 : f32
    %89 = vector.broadcast %cst_5 : f32 to vector<1x2xf32>
    %90 = arith.addf %89, %88 : vector<1x2xf32>
    %cst_6 = arith.constant 1.000000e+00 : f32
    %91 = vector.broadcast %cst_6 : f32 to vector<1x2xf32>
    %92 = arith.divf %91, %90 : vector<1x2xf32>
    %93 = vector.broadcast %3 : f32 to vector<1x2xf32>
    %94 = arith.mulf %56, %93 : vector<1x2xf32>
    %95 = vector.broadcast %39 : f32 to vector<1x2xf32>
    %96 = arith.addf %94, %95 : vector<1x2xf32>
    %97 = arith.addf %96, %77 : vector<1x2xf32>
    %cst_7 = arith.constant 0.000000e+00 : f32
    %98 = vector.broadcast %cst_7 : f32 to vector<1x2xf32>
    %99 = arith.subf %98, %97 : vector<1x2xf32>
    %100 = math.exp %99 : vector<1x2xf32>
    %cst_8 = arith.constant 1.000000e+00 : f32
    %101 = vector.broadcast %cst_8 : f32 to vector<1x2xf32>
    %102 = arith.addf %101, %100 : vector<1x2xf32>
    %cst_9 = arith.constant 1.000000e+00 : f32
    %103 = vector.broadcast %cst_9 : f32 to vector<1x2xf32>
    %104 = arith.divf %103, %102 : vector<1x2xf32>
    %105 = vector.broadcast %6 : f32 to vector<1x2xf32>
    %106 = arith.mulf %56, %105 : vector<1x2xf32>
    %107 = vector.broadcast %42 : f32 to vector<1x2xf32>
    %108 = arith.addf %106, %107 : vector<1x2xf32>
    %109 = vector.broadcast %45 : f32 to vector<1x2xf32>
    %110 = arith.addf %80, %109 : vector<1x2xf32>
    %111 = arith.mulf %92, %110 : vector<1x2xf32>
    %112 = arith.addf %108, %111 : vector<1x2xf32>
    %113 = math.tanh %112 : vector<1x2xf32>
    %cst_10 = arith.constant 1.000000e+00 : f32
    %114 = vector.broadcast %cst_10 : f32 to vector<1x2xf32>
    %115 = arith.subf %114, %104 : vector<1x2xf32>
    %116 = arith.mulf %115, %113 : vector<1x2xf32>
    %117 = arith.mulf %104, %53 : vector<1x2xf32>
    %118 = arith.addf %116, %117 : vector<1x2xf32>
    %119 = vector.broadcast %12 : f32 to vector<1x2xf32>
    %120 = arith.mulf %53, %119 : vector<1x2xf32>
    %121 = vector.broadcast %21 : f32 to vector<1x2xf32>
    %122 = arith.mulf %53, %121 : vector<1x2xf32>
    %123 = vector.broadcast %30 : f32 to vector<1x2xf32>
    %124 = arith.mulf %53, %123 : vector<1x2xf32>
    %125 = vector.broadcast %13 : f32 to vector<1x2xf32>
    %126 = arith.mulf %54, %125 : vector<1x2xf32>
    %127 = arith.addf %120, %126 : vector<1x2xf32>
    %128 = vector.broadcast %22 : f32 to vector<1x2xf32>
    %129 = arith.mulf %54, %128 : vector<1x2xf32>
    %130 = arith.addf %122, %129 : vector<1x2xf32>
    %131 = vector.broadcast %31 : f32 to vector<1x2xf32>
    %132 = arith.mulf %54, %131 : vector<1x2xf32>
    %133 = arith.addf %124, %132 : vector<1x2xf32>
    %134 = vector.broadcast %14 : f32 to vector<1x2xf32>
    %135 = arith.mulf %55, %134 : vector<1x2xf32>
    %136 = arith.addf %127, %135 : vector<1x2xf32>
    %137 = vector.broadcast %23 : f32 to vector<1x2xf32>
    %138 = arith.mulf %55, %137 : vector<1x2xf32>
    %139 = arith.addf %130, %138 : vector<1x2xf32>
    %140 = vector.broadcast %32 : f32 to vector<1x2xf32>
    %141 = arith.mulf %55, %140 : vector<1x2xf32>
    %142 = arith.addf %133, %141 : vector<1x2xf32>
    %143 = vector.broadcast %1 : f32 to vector<1x2xf32>
    %144 = arith.mulf %56, %143 : vector<1x2xf32>
    %145 = vector.broadcast %37 : f32 to vector<1x2xf32>
    %146 = arith.addf %144, %145 : vector<1x2xf32>
    %147 = arith.addf %146, %136 : vector<1x2xf32>
    %cst_11 = arith.constant 0.000000e+00 : f32
    %148 = vector.broadcast %cst_11 : f32 to vector<1x2xf32>
    %149 = arith.subf %148, %147 : vector<1x2xf32>
    %150 = math.exp %149 : vector<1x2xf32>
    %cst_12 = arith.constant 1.000000e+00 : f32
    %151 = vector.broadcast %cst_12 : f32 to vector<1x2xf32>
    %152 = arith.addf %151, %150 : vector<1x2xf32>
    %cst_13 = arith.constant 1.000000e+00 : f32
    %153 = vector.broadcast %cst_13 : f32 to vector<1x2xf32>
    %154 = arith.divf %153, %152 : vector<1x2xf32>
    %155 = vector.broadcast %4 : f32 to vector<1x2xf32>
    %156 = arith.mulf %56, %155 : vector<1x2xf32>
    %157 = vector.broadcast %40 : f32 to vector<1x2xf32>
    %158 = arith.addf %156, %157 : vector<1x2xf32>
    %159 = arith.addf %158, %139 : vector<1x2xf32>
    %cst_14 = arith.constant 0.000000e+00 : f32
    %160 = vector.broadcast %cst_14 : f32 to vector<1x2xf32>
    %161 = arith.subf %160, %159 : vector<1x2xf32>
    %162 = math.exp %161 : vector<1x2xf32>
    %cst_15 = arith.constant 1.000000e+00 : f32
    %163 = vector.broadcast %cst_15 : f32 to vector<1x2xf32>
    %164 = arith.addf %163, %162 : vector<1x2xf32>
    %cst_16 = arith.constant 1.000000e+00 : f32
    %165 = vector.broadcast %cst_16 : f32 to vector<1x2xf32>
    %166 = arith.divf %165, %164 : vector<1x2xf32>
    %167 = vector.broadcast %7 : f32 to vector<1x2xf32>
    %168 = arith.mulf %56, %167 : vector<1x2xf32>
    %169 = vector.broadcast %43 : f32 to vector<1x2xf32>
    %170 = arith.addf %168, %169 : vector<1x2xf32>
    %171 = vector.broadcast %46 : f32 to vector<1x2xf32>
    %172 = arith.addf %142, %171 : vector<1x2xf32>
    %173 = arith.mulf %154, %172 : vector<1x2xf32>
    %174 = arith.addf %170, %173 : vector<1x2xf32>
    %175 = math.tanh %174 : vector<1x2xf32>
    %cst_17 = arith.constant 1.000000e+00 : f32
    %176 = vector.broadcast %cst_17 : f32 to vector<1x2xf32>
    %177 = arith.subf %176, %166 : vector<1x2xf32>
    %178 = arith.mulf %177, %175 : vector<1x2xf32>
    %179 = arith.mulf %166, %54 : vector<1x2xf32>
    %180 = arith.addf %178, %179 : vector<1x2xf32>
    %181 = vector.broadcast %15 : f32 to vector<1x2xf32>
    %182 = arith.mulf %53, %181 : vector<1x2xf32>
    %183 = vector.broadcast %24 : f32 to vector<1x2xf32>
    %184 = arith.mulf %53, %183 : vector<1x2xf32>
    %185 = vector.broadcast %33 : f32 to vector<1x2xf32>
    %186 = arith.mulf %53, %185 : vector<1x2xf32>
    %187 = vector.broadcast %16 : f32 to vector<1x2xf32>
    %188 = arith.mulf %54, %187 : vector<1x2xf32>
    %189 = arith.addf %182, %188 : vector<1x2xf32>
    %190 = vector.broadcast %25 : f32 to vector<1x2xf32>
    %191 = arith.mulf %54, %190 : vector<1x2xf32>
    %192 = arith.addf %184, %191 : vector<1x2xf32>
    %193 = vector.broadcast %34 : f32 to vector<1x2xf32>
    %194 = arith.mulf %54, %193 : vector<1x2xf32>
    %195 = arith.addf %186, %194 : vector<1x2xf32>
    %196 = vector.broadcast %17 : f32 to vector<1x2xf32>
    %197 = arith.mulf %55, %196 : vector<1x2xf32>
    %198 = arith.addf %189, %197 : vector<1x2xf32>
    %199 = vector.broadcast %26 : f32 to vector<1x2xf32>
    %200 = arith.mulf %55, %199 : vector<1x2xf32>
    %201 = arith.addf %192, %200 : vector<1x2xf32>
    %202 = vector.broadcast %35 : f32 to vector<1x2xf32>
    %203 = arith.mulf %55, %202 : vector<1x2xf32>
    %204 = arith.addf %195, %203 : vector<1x2xf32>
    %205 = vector.broadcast %2 : f32 to vector<1x2xf32>
    %206 = arith.mulf %56, %205 : vector<1x2xf32>
    %207 = vector.broadcast %38 : f32 to vector<1x2xf32>
    %208 = arith.addf %206, %207 : vector<1x2xf32>
    %209 = arith.addf %208, %198 : vector<1x2xf32>
    %cst_18 = arith.constant 0.000000e+00 : f32
    %210 = vector.broadcast %cst_18 : f32 to vector<1x2xf32>
    %211 = arith.subf %210, %209 : vector<1x2xf32>
    %212 = math.exp %211 : vector<1x2xf32>
    %cst_19 = arith.constant 1.000000e+00 : f32
    %213 = vector.broadcast %cst_19 : f32 to vector<1x2xf32>
    %214 = arith.addf %213, %212 : vector<1x2xf32>
    %cst_20 = arith.constant 1.000000e+00 : f32
    %215 = vector.broadcast %cst_20 : f32 to vector<1x2xf32>
    %216 = arith.divf %215, %214 : vector<1x2xf32>
    %217 = vector.broadcast %5 : f32 to vector<1x2xf32>
    %218 = arith.mulf %56, %217 : vector<1x2xf32>
    %219 = vector.broadcast %41 : f32 to vector<1x2xf32>
    %220 = arith.addf %218, %219 : vector<1x2xf32>
    %221 = arith.addf %220, %201 : vector<1x2xf32>
    %cst_21 = arith.constant 0.000000e+00 : f32
    %222 = vector.broadcast %cst_21 : f32 to vector<1x2xf32>
    %223 = arith.subf %222, %221 : vector<1x2xf32>
    %224 = math.exp %223 : vector<1x2xf32>
    %cst_22 = arith.constant 1.000000e+00 : f32
    %225 = vector.broadcast %cst_22 : f32 to vector<1x2xf32>
    %226 = arith.addf %225, %224 : vector<1x2xf32>
    %cst_23 = arith.constant 1.000000e+00 : f32
    %227 = vector.broadcast %cst_23 : f32 to vector<1x2xf32>
    %228 = arith.divf %227, %226 : vector<1x2xf32>
    %229 = vector.broadcast %8 : f32 to vector<1x2xf32>
    %230 = arith.mulf %56, %229 : vector<1x2xf32>
    %231 = vector.broadcast %44 : f32 to vector<1x2xf32>
    %232 = arith.addf %230, %231 : vector<1x2xf32>
    %233 = vector.broadcast %47 : f32 to vector<1x2xf32>
    %234 = arith.addf %204, %233 : vector<1x2xf32>
    %235 = arith.mulf %216, %234 : vector<1x2xf32>
    %236 = arith.addf %232, %235 : vector<1x2xf32>
    %237 = math.tanh %236 : vector<1x2xf32>
    %cst_24 = arith.constant 1.000000e+00 : f32
    %238 = vector.broadcast %cst_24 : f32 to vector<1x2xf32>
    %239 = arith.subf %238, %228 : vector<1x2xf32>
    %240 = arith.mulf %239, %237 : vector<1x2xf32>
    %241 = arith.mulf %228, %55 : vector<1x2xf32>
    %242 = arith.addf %240, %241 : vector<1x2xf32>
    %243 = vector.broadcast %48 : f32 to vector<1x2xf32>
    %244 = arith.mulf %118, %243 : vector<1x2xf32>
    %245 = vector.broadcast %49 : f32 to vector<1x2xf32>
    %246 = arith.mulf %180, %245 : vector<1x2xf32>
    %247 = arith.addf %244, %246 : vector<1x2xf32>
    %248 = vector.broadcast %50 : f32 to vector<1x2xf32>
    %249 = arith.mulf %242, %248 : vector<1x2xf32>
    %250 = arith.addf %247, %249 : vector<1x2xf32>
    %251 = vector.broadcast %51 : f32 to vector<1x2xf32>
    %252 = arith.addf %250, %251 : vector<1x2xf32>
    %253 = vector.extract_strided_slice %52 {offsets = [1, 0], sizes = [1, 2], strides = [1, 1]} : vector<8x2xf32> to vector<1x2xf32>
    %254 = vector.broadcast %9 : f32 to vector<1x2xf32>
    %255 = arith.mulf %118, %254 : vector<1x2xf32>
    %256 = vector.broadcast %18 : f32 to vector<1x2xf32>
    %257 = arith.mulf %118, %256 : vector<1x2xf32>
    %258 = vector.broadcast %27 : f32 to vector<1x2xf32>
    %259 = arith.mulf %118, %258 : vector<1x2xf32>
    %260 = vector.broadcast %10 : f32 to vector<1x2xf32>
    %261 = arith.mulf %180, %260 : vector<1x2xf32>
    %262 = arith.addf %255, %261 : vector<1x2xf32>
    %263 = vector.broadcast %19 : f32 to vector<1x2xf32>
    %264 = arith.mulf %180, %263 : vector<1x2xf32>
    %265 = arith.addf %257, %264 : vector<1x2xf32>
    %266 = vector.broadcast %28 : f32 to vector<1x2xf32>
    %267 = arith.mulf %180, %266 : vector<1x2xf32>
    %268 = arith.addf %259, %267 : vector<1x2xf32>
    %269 = vector.broadcast %11 : f32 to vector<1x2xf32>
    %270 = arith.mulf %242, %269 : vector<1x2xf32>
    %271 = arith.addf %262, %270 : vector<1x2xf32>
    %272 = vector.broadcast %20 : f32 to vector<1x2xf32>
    %273 = arith.mulf %242, %272 : vector<1x2xf32>
    %274 = arith.addf %265, %273 : vector<1x2xf32>
    %275 = vector.broadcast %29 : f32 to vector<1x2xf32>
    %276 = arith.mulf %242, %275 : vector<1x2xf32>
    %277 = arith.addf %268, %276 : vector<1x2xf32>
    %278 = vector.broadcast %0 : f32 to vector<1x2xf32>
    %279 = arith.mulf %253, %278 : vector<1x2xf32>
    %280 = vector.broadcast %36 : f32 to vector<1x2xf32>
    %281 = arith.addf %279, %280 : vector<1x2xf32>
    %282 = arith.addf %281, %271 : vector<1x2xf32>
    %cst_25 = arith.constant 0.000000e+00 : f32
    %283 = vector.broadcast %cst_25 : f32 to vector<1x2xf32>
    %284 = arith.subf %283, %282 : vector<1x2xf32>
    %285 = math.exp %284 : vector<1x2xf32>
    %cst_26 = arith.constant 1.000000e+00 : f32
    %286 = vector.broadcast %cst_26 : f32 to vector<1x2xf32>
    %287 = arith.addf %286, %285 : vector<1x2xf32>
    %cst_27 = arith.constant 1.000000e+00 : f32
    %288 = vector.broadcast %cst_27 : f32 to vector<1x2xf32>
    %289 = arith.divf %288, %287 : vector<1x2xf32>
    %290 = vector.broadcast %3 : f32 to vector<1x2xf32>
    %291 = arith.mulf %253, %290 : vector<1x2xf32>
    %292 = vector.broadcast %39 : f32 to vector<1x2xf32>
    %293 = arith.addf %291, %292 : vector<1x2xf32>
    %294 = arith.addf %293, %274 : vector<1x2xf32>
    %cst_28 = arith.constant 0.000000e+00 : f32
    %295 = vector.broadcast %cst_28 : f32 to vector<1x2xf32>
    %296 = arith.subf %295, %294 : vector<1x2xf32>
    %297 = math.exp %296 : vector<1x2xf32>
    %cst_29 = arith.constant 1.000000e+00 : f32
    %298 = vector.broadcast %cst_29 : f32 to vector<1x2xf32>
    %299 = arith.addf %298, %297 : vector<1x2xf32>
    %cst_30 = arith.constant 1.000000e+00 : f32
    %300 = vector.broadcast %cst_30 : f32 to vector<1x2xf32>
    %301 = arith.divf %300, %299 : vector<1x2xf32>
    %302 = vector.broadcast %6 : f32 to vector<1x2xf32>
    %303 = arith.mulf %253, %302 : vector<1x2xf32>
    %304 = vector.broadcast %42 : f32 to vector<1x2xf32>
    %305 = arith.addf %303, %304 : vector<1x2xf32>
    %306 = vector.broadcast %45 : f32 to vector<1x2xf32>
    %307 = arith.addf %277, %306 : vector<1x2xf32>
    %308 = arith.mulf %289, %307 : vector<1x2xf32>
    %309 = arith.addf %305, %308 : vector<1x2xf32>
    %310 = math.tanh %309 : vector<1x2xf32>
    %cst_31 = arith.constant 1.000000e+00 : f32
    %311 = vector.broadcast %cst_31 : f32 to vector<1x2xf32>
    %312 = arith.subf %311, %301 : vector<1x2xf32>
    %313 = arith.mulf %312, %310 : vector<1x2xf32>
    %314 = arith.mulf %301, %118 : vector<1x2xf32>
    %315 = arith.addf %313, %314 : vector<1x2xf32>
    %316 = vector.broadcast %12 : f32 to vector<1x2xf32>
    %317 = arith.mulf %118, %316 : vector<1x2xf32>
    %318 = vector.broadcast %21 : f32 to vector<1x2xf32>
    %319 = arith.mulf %118, %318 : vector<1x2xf32>
    %320 = vector.broadcast %30 : f32 to vector<1x2xf32>
    %321 = arith.mulf %118, %320 : vector<1x2xf32>
    %322 = vector.broadcast %13 : f32 to vector<1x2xf32>
    %323 = arith.mulf %180, %322 : vector<1x2xf32>
    %324 = arith.addf %317, %323 : vector<1x2xf32>
    %325 = vector.broadcast %22 : f32 to vector<1x2xf32>
    %326 = arith.mulf %180, %325 : vector<1x2xf32>
    %327 = arith.addf %319, %326 : vector<1x2xf32>
    %328 = vector.broadcast %31 : f32 to vector<1x2xf32>
    %329 = arith.mulf %180, %328 : vector<1x2xf32>
    %330 = arith.addf %321, %329 : vector<1x2xf32>
    %331 = vector.broadcast %14 : f32 to vector<1x2xf32>
    %332 = arith.mulf %242, %331 : vector<1x2xf32>
    %333 = arith.addf %324, %332 : vector<1x2xf32>
    %334 = vector.broadcast %23 : f32 to vector<1x2xf32>
    %335 = arith.mulf %242, %334 : vector<1x2xf32>
    %336 = arith.addf %327, %335 : vector<1x2xf32>
    %337 = vector.broadcast %32 : f32 to vector<1x2xf32>
    %338 = arith.mulf %242, %337 : vector<1x2xf32>
    %339 = arith.addf %330, %338 : vector<1x2xf32>
    %340 = vector.broadcast %1 : f32 to vector<1x2xf32>
    %341 = arith.mulf %253, %340 : vector<1x2xf32>
    %342 = vector.broadcast %37 : f32 to vector<1x2xf32>
    %343 = arith.addf %341, %342 : vector<1x2xf32>
    %344 = arith.addf %343, %333 : vector<1x2xf32>
    %cst_32 = arith.constant 0.000000e+00 : f32
    %345 = vector.broadcast %cst_32 : f32 to vector<1x2xf32>
    %346 = arith.subf %345, %344 : vector<1x2xf32>
    %347 = math.exp %346 : vector<1x2xf32>
    %cst_33 = arith.constant 1.000000e+00 : f32
    %348 = vector.broadcast %cst_33 : f32 to vector<1x2xf32>
    %349 = arith.addf %348, %347 : vector<1x2xf32>
    %cst_34 = arith.constant 1.000000e+00 : f32
    %350 = vector.broadcast %cst_34 : f32 to vector<1x2xf32>
    %351 = arith.divf %350, %349 : vector<1x2xf32>
    %352 = vector.broadcast %4 : f32 to vector<1x2xf32>
    %353 = arith.mulf %253, %352 : vector<1x2xf32>
    %354 = vector.broadcast %40 : f32 to vector<1x2xf32>
    %355 = arith.addf %353, %354 : vector<1x2xf32>
    %356 = arith.addf %355, %336 : vector<1x2xf32>
    %cst_35 = arith.constant 0.000000e+00 : f32
    %357 = vector.broadcast %cst_35 : f32 to vector<1x2xf32>
    %358 = arith.subf %357, %356 : vector<1x2xf32>
    %359 = math.exp %358 : vector<1x2xf32>
    %cst_36 = arith.constant 1.000000e+00 : f32
    %360 = vector.broadcast %cst_36 : f32 to vector<1x2xf32>
    %361 = arith.addf %360, %359 : vector<1x2xf32>
    %cst_37 = arith.constant 1.000000e+00 : f32
    %362 = vector.broadcast %cst_37 : f32 to vector<1x2xf32>
    %363 = arith.divf %362, %361 : vector<1x2xf32>
    %364 = vector.broadcast %7 : f32 to vector<1x2xf32>
    %365 = arith.mulf %253, %364 : vector<1x2xf32>
    %366 = vector.broadcast %43 : f32 to vector<1x2xf32>
    %367 = arith.addf %365, %366 : vector<1x2xf32>
    %368 = vector.broadcast %46 : f32 to vector<1x2xf32>
    %369 = arith.addf %339, %368 : vector<1x2xf32>
    %370 = arith.mulf %351, %369 : vector<1x2xf32>
    %371 = arith.addf %367, %370 : vector<1x2xf32>
    %372 = math.tanh %371 : vector<1x2xf32>
    %cst_38 = arith.constant 1.000000e+00 : f32
    %373 = vector.broadcast %cst_38 : f32 to vector<1x2xf32>
    %374 = arith.subf %373, %363 : vector<1x2xf32>
    %375 = arith.mulf %374, %372 : vector<1x2xf32>
    %376 = arith.mulf %363, %180 : vector<1x2xf32>
    %377 = arith.addf %375, %376 : vector<1x2xf32>
    %378 = vector.broadcast %15 : f32 to vector<1x2xf32>
    %379 = arith.mulf %118, %378 : vector<1x2xf32>
    %380 = vector.broadcast %24 : f32 to vector<1x2xf32>
    %381 = arith.mulf %118, %380 : vector<1x2xf32>
    %382 = vector.broadcast %33 : f32 to vector<1x2xf32>
    %383 = arith.mulf %118, %382 : vector<1x2xf32>
    %384 = vector.broadcast %16 : f32 to vector<1x2xf32>
    %385 = arith.mulf %180, %384 : vector<1x2xf32>
    %386 = arith.addf %379, %385 : vector<1x2xf32>
    %387 = vector.broadcast %25 : f32 to vector<1x2xf32>
    %388 = arith.mulf %180, %387 : vector<1x2xf32>
    %389 = arith.addf %381, %388 : vector<1x2xf32>
    %390 = vector.broadcast %34 : f32 to vector<1x2xf32>
    %391 = arith.mulf %180, %390 : vector<1x2xf32>
    %392 = arith.addf %383, %391 : vector<1x2xf32>
    %393 = vector.broadcast %17 : f32 to vector<1x2xf32>
    %394 = arith.mulf %242, %393 : vector<1x2xf32>
    %395 = arith.addf %386, %394 : vector<1x2xf32>
    %396 = vector.broadcast %26 : f32 to vector<1x2xf32>
    %397 = arith.mulf %242, %396 : vector<1x2xf32>
    %398 = arith.addf %389, %397 : vector<1x2xf32>
    %399 = vector.broadcast %35 : f32 to vector<1x2xf32>
    %400 = arith.mulf %242, %399 : vector<1x2xf32>
    %401 = arith.addf %392, %400 : vector<1x2xf32>
    %402 = vector.broadcast %2 : f32 to vector<1x2xf32>
    %403 = arith.mulf %253, %402 : vector<1x2xf32>
    %404 = vector.broadcast %38 : f32 to vector<1x2xf32>
    %405 = arith.addf %403, %404 : vector<1x2xf32>
    %406 = arith.addf %405, %395 : vector<1x2xf32>
    %cst_39 = arith.constant 0.000000e+00 : f32
    %407 = vector.broadcast %cst_39 : f32 to vector<1x2xf32>
    %408 = arith.subf %407, %406 : vector<1x2xf32>
    %409 = math.exp %408 : vector<1x2xf32>
    %cst_40 = arith.constant 1.000000e+00 : f32
    %410 = vector.broadcast %cst_40 : f32 to vector<1x2xf32>
    %411 = arith.addf %410, %409 : vector<1x2xf32>
    %cst_41 = arith.constant 1.000000e+00 : f32
    %412 = vector.broadcast %cst_41 : f32 to vector<1x2xf32>
    %413 = arith.divf %412, %411 : vector<1x2xf32>
    %414 = vector.broadcast %5 : f32 to vector<1x2xf32>
    %415 = arith.mulf %253, %414 : vector<1x2xf32>
    %416 = vector.broadcast %41 : f32 to vector<1x2xf32>
    %417 = arith.addf %415, %416 : vector<1x2xf32>
    %418 = arith.addf %417, %398 : vector<1x2xf32>
    %cst_42 = arith.constant 0.000000e+00 : f32
    %419 = vector.broadcast %cst_42 : f32 to vector<1x2xf32>
    %420 = arith.subf %419, %418 : vector<1x2xf32>
    %421 = math.exp %420 : vector<1x2xf32>
    %cst_43 = arith.constant 1.000000e+00 : f32
    %422 = vector.broadcast %cst_43 : f32 to vector<1x2xf32>
    %423 = arith.addf %422, %421 : vector<1x2xf32>
    %cst_44 = arith.constant 1.000000e+00 : f32
    %424 = vector.broadcast %cst_44 : f32 to vector<1x2xf32>
    %425 = arith.divf %424, %423 : vector<1x2xf32>
    %426 = vector.broadcast %8 : f32 to vector<1x2xf32>
    %427 = arith.mulf %253, %426 : vector<1x2xf32>
    %428 = vector.broadcast %44 : f32 to vector<1x2xf32>
    %429 = arith.addf %427, %428 : vector<1x2xf32>
    %430 = vector.broadcast %47 : f32 to vector<1x2xf32>
    %431 = arith.addf %401, %430 : vector<1x2xf32>
    %432 = arith.mulf %413, %431 : vector<1x2xf32>
    %433 = arith.addf %429, %432 : vector<1x2xf32>
    %434 = math.tanh %433 : vector<1x2xf32>
    %cst_45 = arith.constant 1.000000e+00 : f32
    %435 = vector.broadcast %cst_45 : f32 to vector<1x2xf32>
    %436 = arith.subf %435, %425 : vector<1x2xf32>
    %437 = arith.mulf %436, %434 : vector<1x2xf32>
    %438 = arith.mulf %425, %242 : vector<1x2xf32>
    %439 = arith.addf %437, %438 : vector<1x2xf32>
    %440 = vector.broadcast %48 : f32 to vector<1x2xf32>
    %441 = arith.mulf %315, %440 : vector<1x2xf32>
    %442 = vector.broadcast %49 : f32 to vector<1x2xf32>
    %443 = arith.mulf %377, %442 : vector<1x2xf32>
    %444 = arith.addf %441, %443 : vector<1x2xf32>
    %445 = vector.broadcast %50 : f32 to vector<1x2xf32>
    %446 = arith.mulf %439, %445 : vector<1x2xf32>
    %447 = arith.addf %444, %446 : vector<1x2xf32>
    %448 = vector.broadcast %51 : f32 to vector<1x2xf32>
    %449 = arith.addf %447, %448 : vector<1x2xf32>
    %450 = vector.extract_strided_slice %52 {offsets = [2, 0], sizes = [1, 2], strides = [1, 1]} : vector<8x2xf32> to vector<1x2xf32>
    %451 = vector.broadcast %9 : f32 to vector<1x2xf32>
    %452 = arith.mulf %315, %451 : vector<1x2xf32>
    %453 = vector.broadcast %18 : f32 to vector<1x2xf32>
    %454 = arith.mulf %315, %453 : vector<1x2xf32>
    %455 = vector.broadcast %27 : f32 to vector<1x2xf32>
    %456 = arith.mulf %315, %455 : vector<1x2xf32>
    %457 = vector.broadcast %10 : f32 to vector<1x2xf32>
    %458 = arith.mulf %377, %457 : vector<1x2xf32>
    %459 = arith.addf %452, %458 : vector<1x2xf32>
    %460 = vector.broadcast %19 : f32 to vector<1x2xf32>
    %461 = arith.mulf %377, %460 : vector<1x2xf32>
    %462 = arith.addf %454, %461 : vector<1x2xf32>
    %463 = vector.broadcast %28 : f32 to vector<1x2xf32>
    %464 = arith.mulf %377, %463 : vector<1x2xf32>
    %465 = arith.addf %456, %464 : vector<1x2xf32>
    %466 = vector.broadcast %11 : f32 to vector<1x2xf32>
    %467 = arith.mulf %439, %466 : vector<1x2xf32>
    %468 = arith.addf %459, %467 : vector<1x2xf32>
    %469 = vector.broadcast %20 : f32 to vector<1x2xf32>
    %470 = arith.mulf %439, %469 : vector<1x2xf32>
    %471 = arith.addf %462, %470 : vector<1x2xf32>
    %472 = vector.broadcast %29 : f32 to vector<1x2xf32>
    %473 = arith.mulf %439, %472 : vector<1x2xf32>
    %474 = arith.addf %465, %473 : vector<1x2xf32>
    %475 = vector.broadcast %0 : f32 to vector<1x2xf32>
    %476 = arith.mulf %450, %475 : vector<1x2xf32>
    %477 = vector.broadcast %36 : f32 to vector<1x2xf32>
    %478 = arith.addf %476, %477 : vector<1x2xf32>
    %479 = arith.addf %478, %468 : vector<1x2xf32>
    %cst_46 = arith.constant 0.000000e+00 : f32
    %480 = vector.broadcast %cst_46 : f32 to vector<1x2xf32>
    %481 = arith.subf %480, %479 : vector<1x2xf32>
    %482 = math.exp %481 : vector<1x2xf32>
    %cst_47 = arith.constant 1.000000e+00 : f32
    %483 = vector.broadcast %cst_47 : f32 to vector<1x2xf32>
    %484 = arith.addf %483, %482 : vector<1x2xf32>
    %cst_48 = arith.constant 1.000000e+00 : f32
    %485 = vector.broadcast %cst_48 : f32 to vector<1x2xf32>
    %486 = arith.divf %485, %484 : vector<1x2xf32>
    %487 = vector.broadcast %3 : f32 to vector<1x2xf32>
    %488 = arith.mulf %450, %487 : vector<1x2xf32>
    %489 = vector.broadcast %39 : f32 to vector<1x2xf32>
    %490 = arith.addf %488, %489 : vector<1x2xf32>
    %491 = arith.addf %490, %471 : vector<1x2xf32>
    %cst_49 = arith.constant 0.000000e+00 : f32
    %492 = vector.broadcast %cst_49 : f32 to vector<1x2xf32>
    %493 = arith.subf %492, %491 : vector<1x2xf32>
    %494 = math.exp %493 : vector<1x2xf32>
    %cst_50 = arith.constant 1.000000e+00 : f32
    %495 = vector.broadcast %cst_50 : f32 to vector<1x2xf32>
    %496 = arith.addf %495, %494 : vector<1x2xf32>
    %cst_51 = arith.constant 1.000000e+00 : f32
    %497 = vector.broadcast %cst_51 : f32 to vector<1x2xf32>
    %498 = arith.divf %497, %496 : vector<1x2xf32>
    %499 = vector.broadcast %6 : f32 to vector<1x2xf32>
    %500 = arith.mulf %450, %499 : vector<1x2xf32>
    %501 = vector.broadcast %42 : f32 to vector<1x2xf32>
    %502 = arith.addf %500, %501 : vector<1x2xf32>
    %503 = vector.broadcast %45 : f32 to vector<1x2xf32>
    %504 = arith.addf %474, %503 : vector<1x2xf32>
    %505 = arith.mulf %486, %504 : vector<1x2xf32>
    %506 = arith.addf %502, %505 : vector<1x2xf32>
    %507 = math.tanh %506 : vector<1x2xf32>
    %cst_52 = arith.constant 1.000000e+00 : f32
    %508 = vector.broadcast %cst_52 : f32 to vector<1x2xf32>
    %509 = arith.subf %508, %498 : vector<1x2xf32>
    %510 = arith.mulf %509, %507 : vector<1x2xf32>
    %511 = arith.mulf %498, %315 : vector<1x2xf32>
    %512 = arith.addf %510, %511 : vector<1x2xf32>
    %513 = vector.broadcast %12 : f32 to vector<1x2xf32>
    %514 = arith.mulf %315, %513 : vector<1x2xf32>
    %515 = vector.broadcast %21 : f32 to vector<1x2xf32>
    %516 = arith.mulf %315, %515 : vector<1x2xf32>
    %517 = vector.broadcast %30 : f32 to vector<1x2xf32>
    %518 = arith.mulf %315, %517 : vector<1x2xf32>
    %519 = vector.broadcast %13 : f32 to vector<1x2xf32>
    %520 = arith.mulf %377, %519 : vector<1x2xf32>
    %521 = arith.addf %514, %520 : vector<1x2xf32>
    %522 = vector.broadcast %22 : f32 to vector<1x2xf32>
    %523 = arith.mulf %377, %522 : vector<1x2xf32>
    %524 = arith.addf %516, %523 : vector<1x2xf32>
    %525 = vector.broadcast %31 : f32 to vector<1x2xf32>
    %526 = arith.mulf %377, %525 : vector<1x2xf32>
    %527 = arith.addf %518, %526 : vector<1x2xf32>
    %528 = vector.broadcast %14 : f32 to vector<1x2xf32>
    %529 = arith.mulf %439, %528 : vector<1x2xf32>
    %530 = arith.addf %521, %529 : vector<1x2xf32>
    %531 = vector.broadcast %23 : f32 to vector<1x2xf32>
    %532 = arith.mulf %439, %531 : vector<1x2xf32>
    %533 = arith.addf %524, %532 : vector<1x2xf32>
    %534 = vector.broadcast %32 : f32 to vector<1x2xf32>
    %535 = arith.mulf %439, %534 : vector<1x2xf32>
    %536 = arith.addf %527, %535 : vector<1x2xf32>
    %537 = vector.broadcast %1 : f32 to vector<1x2xf32>
    %538 = arith.mulf %450, %537 : vector<1x2xf32>
    %539 = vector.broadcast %37 : f32 to vector<1x2xf32>
    %540 = arith.addf %538, %539 : vector<1x2xf32>
    %541 = arith.addf %540, %530 : vector<1x2xf32>
    %cst_53 = arith.constant 0.000000e+00 : f32
    %542 = vector.broadcast %cst_53 : f32 to vector<1x2xf32>
    %543 = arith.subf %542, %541 : vector<1x2xf32>
    %544 = math.exp %543 : vector<1x2xf32>
    %cst_54 = arith.constant 1.000000e+00 : f32
    %545 = vector.broadcast %cst_54 : f32 to vector<1x2xf32>
    %546 = arith.addf %545, %544 : vector<1x2xf32>
    %cst_55 = arith.constant 1.000000e+00 : f32
    %547 = vector.broadcast %cst_55 : f32 to vector<1x2xf32>
    %548 = arith.divf %547, %546 : vector<1x2xf32>
    %549 = vector.broadcast %4 : f32 to vector<1x2xf32>
    %550 = arith.mulf %450, %549 : vector<1x2xf32>
    %551 = vector.broadcast %40 : f32 to vector<1x2xf32>
    %552 = arith.addf %550, %551 : vector<1x2xf32>
    %553 = arith.addf %552, %533 : vector<1x2xf32>
    %cst_56 = arith.constant 0.000000e+00 : f32
    %554 = vector.broadcast %cst_56 : f32 to vector<1x2xf32>
    %555 = arith.subf %554, %553 : vector<1x2xf32>
    %556 = math.exp %555 : vector<1x2xf32>
    %cst_57 = arith.constant 1.000000e+00 : f32
    %557 = vector.broadcast %cst_57 : f32 to vector<1x2xf32>
    %558 = arith.addf %557, %556 : vector<1x2xf32>
    %cst_58 = arith.constant 1.000000e+00 : f32
    %559 = vector.broadcast %cst_58 : f32 to vector<1x2xf32>
    %560 = arith.divf %559, %558 : vector<1x2xf32>
    %561 = vector.broadcast %7 : f32 to vector<1x2xf32>
    %562 = arith.mulf %450, %561 : vector<1x2xf32>
    %563 = vector.broadcast %43 : f32 to vector<1x2xf32>
    %564 = arith.addf %562, %563 : vector<1x2xf32>
    %565 = vector.broadcast %46 : f32 to vector<1x2xf32>
    %566 = arith.addf %536, %565 : vector<1x2xf32>
    %567 = arith.mulf %548, %566 : vector<1x2xf32>
    %568 = arith.addf %564, %567 : vector<1x2xf32>
    %569 = math.tanh %568 : vector<1x2xf32>
    %cst_59 = arith.constant 1.000000e+00 : f32
    %570 = vector.broadcast %cst_59 : f32 to vector<1x2xf32>
    %571 = arith.subf %570, %560 : vector<1x2xf32>
    %572 = arith.mulf %571, %569 : vector<1x2xf32>
    %573 = arith.mulf %560, %377 : vector<1x2xf32>
    %574 = arith.addf %572, %573 : vector<1x2xf32>
    %575 = vector.broadcast %15 : f32 to vector<1x2xf32>
    %576 = arith.mulf %315, %575 : vector<1x2xf32>
    %577 = vector.broadcast %24 : f32 to vector<1x2xf32>
    %578 = arith.mulf %315, %577 : vector<1x2xf32>
    %579 = vector.broadcast %33 : f32 to vector<1x2xf32>
    %580 = arith.mulf %315, %579 : vector<1x2xf32>
    %581 = vector.broadcast %16 : f32 to vector<1x2xf32>
    %582 = arith.mulf %377, %581 : vector<1x2xf32>
    %583 = arith.addf %576, %582 : vector<1x2xf32>
    %584 = vector.broadcast %25 : f32 to vector<1x2xf32>
    %585 = arith.mulf %377, %584 : vector<1x2xf32>
    %586 = arith.addf %578, %585 : vector<1x2xf32>
    %587 = vector.broadcast %34 : f32 to vector<1x2xf32>
    %588 = arith.mulf %377, %587 : vector<1x2xf32>
    %589 = arith.addf %580, %588 : vector<1x2xf32>
    %590 = vector.broadcast %17 : f32 to vector<1x2xf32>
    %591 = arith.mulf %439, %590 : vector<1x2xf32>
    %592 = arith.addf %583, %591 : vector<1x2xf32>
    %593 = vector.broadcast %26 : f32 to vector<1x2xf32>
    %594 = arith.mulf %439, %593 : vector<1x2xf32>
    %595 = arith.addf %586, %594 : vector<1x2xf32>
    %596 = vector.broadcast %35 : f32 to vector<1x2xf32>
    %597 = arith.mulf %439, %596 : vector<1x2xf32>
    %598 = arith.addf %589, %597 : vector<1x2xf32>
    %599 = vector.broadcast %2 : f32 to vector<1x2xf32>
    %600 = arith.mulf %450, %599 : vector<1x2xf32>
    %601 = vector.broadcast %38 : f32 to vector<1x2xf32>
    %602 = arith.addf %600, %601 : vector<1x2xf32>
    %603 = arith.addf %602, %592 : vector<1x2xf32>
    %cst_60 = arith.constant 0.000000e+00 : f32
    %604 = vector.broadcast %cst_60 : f32 to vector<1x2xf32>
    %605 = arith.subf %604, %603 : vector<1x2xf32>
    %606 = math.exp %605 : vector<1x2xf32>
    %cst_61 = arith.constant 1.000000e+00 : f32
    %607 = vector.broadcast %cst_61 : f32 to vector<1x2xf32>
    %608 = arith.addf %607, %606 : vector<1x2xf32>
    %cst_62 = arith.constant 1.000000e+00 : f32
    %609 = vector.broadcast %cst_62 : f32 to vector<1x2xf32>
    %610 = arith.divf %609, %608 : vector<1x2xf32>
    %611 = vector.broadcast %5 : f32 to vector<1x2xf32>
    %612 = arith.mulf %450, %611 : vector<1x2xf32>
    %613 = vector.broadcast %41 : f32 to vector<1x2xf32>
    %614 = arith.addf %612, %613 : vector<1x2xf32>
    %615 = arith.addf %614, %595 : vector<1x2xf32>
    %cst_63 = arith.constant 0.000000e+00 : f32
    %616 = vector.broadcast %cst_63 : f32 to vector<1x2xf32>
    %617 = arith.subf %616, %615 : vector<1x2xf32>
    %618 = math.exp %617 : vector<1x2xf32>
    %cst_64 = arith.constant 1.000000e+00 : f32
    %619 = vector.broadcast %cst_64 : f32 to vector<1x2xf32>
    %620 = arith.addf %619, %618 : vector<1x2xf32>
    %cst_65 = arith.constant 1.000000e+00 : f32
    %621 = vector.broadcast %cst_65 : f32 to vector<1x2xf32>
    %622 = arith.divf %621, %620 : vector<1x2xf32>
    %623 = vector.broadcast %8 : f32 to vector<1x2xf32>
    %624 = arith.mulf %450, %623 : vector<1x2xf32>
    %625 = vector.broadcast %44 : f32 to vector<1x2xf32>
    %626 = arith.addf %624, %625 : vector<1x2xf32>
    %627 = vector.broadcast %47 : f32 to vector<1x2xf32>
    %628 = arith.addf %598, %627 : vector<1x2xf32>
    %629 = arith.mulf %610, %628 : vector<1x2xf32>
    %630 = arith.addf %626, %629 : vector<1x2xf32>
    %631 = math.tanh %630 : vector<1x2xf32>
    %cst_66 = arith.constant 1.000000e+00 : f32
    %632 = vector.broadcast %cst_66 : f32 to vector<1x2xf32>
    %633 = arith.subf %632, %622 : vector<1x2xf32>
    %634 = arith.mulf %633, %631 : vector<1x2xf32>
    %635 = arith.mulf %622, %439 : vector<1x2xf32>
    %636 = arith.addf %634, %635 : vector<1x2xf32>
    %637 = vector.broadcast %48 : f32 to vector<1x2xf32>
    %638 = arith.mulf %512, %637 : vector<1x2xf32>
    %639 = vector.broadcast %49 : f32 to vector<1x2xf32>
    %640 = arith.mulf %574, %639 : vector<1x2xf32>
    %641 = arith.addf %638, %640 : vector<1x2xf32>
    %642 = vector.broadcast %50 : f32 to vector<1x2xf32>
    %643 = arith.mulf %636, %642 : vector<1x2xf32>
    %644 = arith.addf %641, %643 : vector<1x2xf32>
    %645 = vector.broadcast %51 : f32 to vector<1x2xf32>
    %646 = arith.addf %644, %645 : vector<1x2xf32>
    %647 = vector.extract_strided_slice %52 {offsets = [3, 0], sizes = [1, 2], strides = [1, 1]} : vector<8x2xf32> to vector<1x2xf32>
    %648 = vector.broadcast %9 : f32 to vector<1x2xf32>
    %649 = arith.mulf %512, %648 : vector<1x2xf32>
    %650 = vector.broadcast %18 : f32 to vector<1x2xf32>
    %651 = arith.mulf %512, %650 : vector<1x2xf32>
    %652 = vector.broadcast %27 : f32 to vector<1x2xf32>
    %653 = arith.mulf %512, %652 : vector<1x2xf32>
    %654 = vector.broadcast %10 : f32 to vector<1x2xf32>
    %655 = arith.mulf %574, %654 : vector<1x2xf32>
    %656 = arith.addf %649, %655 : vector<1x2xf32>
    %657 = vector.broadcast %19 : f32 to vector<1x2xf32>
    %658 = arith.mulf %574, %657 : vector<1x2xf32>
    %659 = arith.addf %651, %658 : vector<1x2xf32>
    %660 = vector.broadcast %28 : f32 to vector<1x2xf32>
    %661 = arith.mulf %574, %660 : vector<1x2xf32>
    %662 = arith.addf %653, %661 : vector<1x2xf32>
    %663 = vector.broadcast %11 : f32 to vector<1x2xf32>
    %664 = arith.mulf %636, %663 : vector<1x2xf32>
    %665 = arith.addf %656, %664 : vector<1x2xf32>
    %666 = vector.broadcast %20 : f32 to vector<1x2xf32>
    %667 = arith.mulf %636, %666 : vector<1x2xf32>
    %668 = arith.addf %659, %667 : vector<1x2xf32>
    %669 = vector.broadcast %29 : f32 to vector<1x2xf32>
    %670 = arith.mulf %636, %669 : vector<1x2xf32>
    %671 = arith.addf %662, %670 : vector<1x2xf32>
    %672 = vector.broadcast %0 : f32 to vector<1x2xf32>
    %673 = arith.mulf %647, %672 : vector<1x2xf32>
    %674 = vector.broadcast %36 : f32 to vector<1x2xf32>
    %675 = arith.addf %673, %674 : vector<1x2xf32>
    %676 = arith.addf %675, %665 : vector<1x2xf32>
    %cst_67 = arith.constant 0.000000e+00 : f32
    %677 = vector.broadcast %cst_67 : f32 to vector<1x2xf32>
    %678 = arith.subf %677, %676 : vector<1x2xf32>
    %679 = math.exp %678 : vector<1x2xf32>
    %cst_68 = arith.constant 1.000000e+00 : f32
    %680 = vector.broadcast %cst_68 : f32 to vector<1x2xf32>
    %681 = arith.addf %680, %679 : vector<1x2xf32>
    %cst_69 = arith.constant 1.000000e+00 : f32
    %682 = vector.broadcast %cst_69 : f32 to vector<1x2xf32>
    %683 = arith.divf %682, %681 : vector<1x2xf32>
    %684 = vector.broadcast %3 : f32 to vector<1x2xf32>
    %685 = arith.mulf %647, %684 : vector<1x2xf32>
    %686 = vector.broadcast %39 : f32 to vector<1x2xf32>
    %687 = arith.addf %685, %686 : vector<1x2xf32>
    %688 = arith.addf %687, %668 : vector<1x2xf32>
    %cst_70 = arith.constant 0.000000e+00 : f32
    %689 = vector.broadcast %cst_70 : f32 to vector<1x2xf32>
    %690 = arith.subf %689, %688 : vector<1x2xf32>
    %691 = math.exp %690 : vector<1x2xf32>
    %cst_71 = arith.constant 1.000000e+00 : f32
    %692 = vector.broadcast %cst_71 : f32 to vector<1x2xf32>
    %693 = arith.addf %692, %691 : vector<1x2xf32>
    %cst_72 = arith.constant 1.000000e+00 : f32
    %694 = vector.broadcast %cst_72 : f32 to vector<1x2xf32>
    %695 = arith.divf %694, %693 : vector<1x2xf32>
    %696 = vector.broadcast %6 : f32 to vector<1x2xf32>
    %697 = arith.mulf %647, %696 : vector<1x2xf32>
    %698 = vector.broadcast %42 : f32 to vector<1x2xf32>
    %699 = arith.addf %697, %698 : vector<1x2xf32>
    %700 = vector.broadcast %45 : f32 to vector<1x2xf32>
    %701 = arith.addf %671, %700 : vector<1x2xf32>
    %702 = arith.mulf %683, %701 : vector<1x2xf32>
    %703 = arith.addf %699, %702 : vector<1x2xf32>
    %704 = math.tanh %703 : vector<1x2xf32>
    %cst_73 = arith.constant 1.000000e+00 : f32
    %705 = vector.broadcast %cst_73 : f32 to vector<1x2xf32>
    %706 = arith.subf %705, %695 : vector<1x2xf32>
    %707 = arith.mulf %706, %704 : vector<1x2xf32>
    %708 = arith.mulf %695, %512 : vector<1x2xf32>
    %709 = arith.addf %707, %708 : vector<1x2xf32>
    %710 = vector.broadcast %12 : f32 to vector<1x2xf32>
    %711 = arith.mulf %512, %710 : vector<1x2xf32>
    %712 = vector.broadcast %21 : f32 to vector<1x2xf32>
    %713 = arith.mulf %512, %712 : vector<1x2xf32>
    %714 = vector.broadcast %30 : f32 to vector<1x2xf32>
    %715 = arith.mulf %512, %714 : vector<1x2xf32>
    %716 = vector.broadcast %13 : f32 to vector<1x2xf32>
    %717 = arith.mulf %574, %716 : vector<1x2xf32>
    %718 = arith.addf %711, %717 : vector<1x2xf32>
    %719 = vector.broadcast %22 : f32 to vector<1x2xf32>
    %720 = arith.mulf %574, %719 : vector<1x2xf32>
    %721 = arith.addf %713, %720 : vector<1x2xf32>
    %722 = vector.broadcast %31 : f32 to vector<1x2xf32>
    %723 = arith.mulf %574, %722 : vector<1x2xf32>
    %724 = arith.addf %715, %723 : vector<1x2xf32>
    %725 = vector.broadcast %14 : f32 to vector<1x2xf32>
    %726 = arith.mulf %636, %725 : vector<1x2xf32>
    %727 = arith.addf %718, %726 : vector<1x2xf32>
    %728 = vector.broadcast %23 : f32 to vector<1x2xf32>
    %729 = arith.mulf %636, %728 : vector<1x2xf32>
    %730 = arith.addf %721, %729 : vector<1x2xf32>
    %731 = vector.broadcast %32 : f32 to vector<1x2xf32>
    %732 = arith.mulf %636, %731 : vector<1x2xf32>
    %733 = arith.addf %724, %732 : vector<1x2xf32>
    %734 = vector.broadcast %1 : f32 to vector<1x2xf32>
    %735 = arith.mulf %647, %734 : vector<1x2xf32>
    %736 = vector.broadcast %37 : f32 to vector<1x2xf32>
    %737 = arith.addf %735, %736 : vector<1x2xf32>
    %738 = arith.addf %737, %727 : vector<1x2xf32>
    %cst_74 = arith.constant 0.000000e+00 : f32
    %739 = vector.broadcast %cst_74 : f32 to vector<1x2xf32>
    %740 = arith.subf %739, %738 : vector<1x2xf32>
    %741 = math.exp %740 : vector<1x2xf32>
    %cst_75 = arith.constant 1.000000e+00 : f32
    %742 = vector.broadcast %cst_75 : f32 to vector<1x2xf32>
    %743 = arith.addf %742, %741 : vector<1x2xf32>
    %cst_76 = arith.constant 1.000000e+00 : f32
    %744 = vector.broadcast %cst_76 : f32 to vector<1x2xf32>
    %745 = arith.divf %744, %743 : vector<1x2xf32>
    %746 = vector.broadcast %4 : f32 to vector<1x2xf32>
    %747 = arith.mulf %647, %746 : vector<1x2xf32>
    %748 = vector.broadcast %40 : f32 to vector<1x2xf32>
    %749 = arith.addf %747, %748 : vector<1x2xf32>
    %750 = arith.addf %749, %730 : vector<1x2xf32>
    %cst_77 = arith.constant 0.000000e+00 : f32
    %751 = vector.broadcast %cst_77 : f32 to vector<1x2xf32>
    %752 = arith.subf %751, %750 : vector<1x2xf32>
    %753 = math.exp %752 : vector<1x2xf32>
    %cst_78 = arith.constant 1.000000e+00 : f32
    %754 = vector.broadcast %cst_78 : f32 to vector<1x2xf32>
    %755 = arith.addf %754, %753 : vector<1x2xf32>
    %cst_79 = arith.constant 1.000000e+00 : f32
    %756 = vector.broadcast %cst_79 : f32 to vector<1x2xf32>
    %757 = arith.divf %756, %755 : vector<1x2xf32>
    %758 = vector.broadcast %7 : f32 to vector<1x2xf32>
    %759 = arith.mulf %647, %758 : vector<1x2xf32>
    %760 = vector.broadcast %43 : f32 to vector<1x2xf32>
    %761 = arith.addf %759, %760 : vector<1x2xf32>
    %762 = vector.broadcast %46 : f32 to vector<1x2xf32>
    %763 = arith.addf %733, %762 : vector<1x2xf32>
    %764 = arith.mulf %745, %763 : vector<1x2xf32>
    %765 = arith.addf %761, %764 : vector<1x2xf32>
    %766 = math.tanh %765 : vector<1x2xf32>
    %cst_80 = arith.constant 1.000000e+00 : f32
    %767 = vector.broadcast %cst_80 : f32 to vector<1x2xf32>
    %768 = arith.subf %767, %757 : vector<1x2xf32>
    %769 = arith.mulf %768, %766 : vector<1x2xf32>
    %770 = arith.mulf %757, %574 : vector<1x2xf32>
    %771 = arith.addf %769, %770 : vector<1x2xf32>
    %772 = vector.broadcast %15 : f32 to vector<1x2xf32>
    %773 = arith.mulf %512, %772 : vector<1x2xf32>
    %774 = vector.broadcast %24 : f32 to vector<1x2xf32>
    %775 = arith.mulf %512, %774 : vector<1x2xf32>
    %776 = vector.broadcast %33 : f32 to vector<1x2xf32>
    %777 = arith.mulf %512, %776 : vector<1x2xf32>
    %778 = vector.broadcast %16 : f32 to vector<1x2xf32>
    %779 = arith.mulf %574, %778 : vector<1x2xf32>
    %780 = arith.addf %773, %779 : vector<1x2xf32>
    %781 = vector.broadcast %25 : f32 to vector<1x2xf32>
    %782 = arith.mulf %574, %781 : vector<1x2xf32>
    %783 = arith.addf %775, %782 : vector<1x2xf32>
    %784 = vector.broadcast %34 : f32 to vector<1x2xf32>
    %785 = arith.mulf %574, %784 : vector<1x2xf32>
    %786 = arith.addf %777, %785 : vector<1x2xf32>
    %787 = vector.broadcast %17 : f32 to vector<1x2xf32>
    %788 = arith.mulf %636, %787 : vector<1x2xf32>
    %789 = arith.addf %780, %788 : vector<1x2xf32>
    %790 = vector.broadcast %26 : f32 to vector<1x2xf32>
    %791 = arith.mulf %636, %790 : vector<1x2xf32>
    %792 = arith.addf %783, %791 : vector<1x2xf32>
    %793 = vector.broadcast %35 : f32 to vector<1x2xf32>
    %794 = arith.mulf %636, %793 : vector<1x2xf32>
    %795 = arith.addf %786, %794 : vector<1x2xf32>
    %796 = vector.broadcast %2 : f32 to vector<1x2xf32>
    %797 = arith.mulf %647, %796 : vector<1x2xf32>
    %798 = vector.broadcast %38 : f32 to vector<1x2xf32>
    %799 = arith.addf %797, %798 : vector<1x2xf32>
    %800 = arith.addf %799, %789 : vector<1x2xf32>
    %cst_81 = arith.constant 0.000000e+00 : f32
    %801 = vector.broadcast %cst_81 : f32 to vector<1x2xf32>
    %802 = arith.subf %801, %800 : vector<1x2xf32>
    %803 = math.exp %802 : vector<1x2xf32>
    %cst_82 = arith.constant 1.000000e+00 : f32
    %804 = vector.broadcast %cst_82 : f32 to vector<1x2xf32>
    %805 = arith.addf %804, %803 : vector<1x2xf32>
    %cst_83 = arith.constant 1.000000e+00 : f32
    %806 = vector.broadcast %cst_83 : f32 to vector<1x2xf32>
    %807 = arith.divf %806, %805 : vector<1x2xf32>
    %808 = vector.broadcast %5 : f32 to vector<1x2xf32>
    %809 = arith.mulf %647, %808 : vector<1x2xf32>
    %810 = vector.broadcast %41 : f32 to vector<1x2xf32>
    %811 = arith.addf %809, %810 : vector<1x2xf32>
    %812 = arith.addf %811, %792 : vector<1x2xf32>
    %cst_84 = arith.constant 0.000000e+00 : f32
    %813 = vector.broadcast %cst_84 : f32 to vector<1x2xf32>
    %814 = arith.subf %813, %812 : vector<1x2xf32>
    %815 = math.exp %814 : vector<1x2xf32>
    %cst_85 = arith.constant 1.000000e+00 : f32
    %816 = vector.broadcast %cst_85 : f32 to vector<1x2xf32>
    %817 = arith.addf %816, %815 : vector<1x2xf32>
    %cst_86 = arith.constant 1.000000e+00 : f32
    %818 = vector.broadcast %cst_86 : f32 to vector<1x2xf32>
    %819 = arith.divf %818, %817 : vector<1x2xf32>
    %820 = vector.broadcast %8 : f32 to vector<1x2xf32>
    %821 = arith.mulf %647, %820 : vector<1x2xf32>
    %822 = vector.broadcast %44 : f32 to vector<1x2xf32>
    %823 = arith.addf %821, %822 : vector<1x2xf32>
    %824 = vector.broadcast %47 : f32 to vector<1x2xf32>
    %825 = arith.addf %795, %824 : vector<1x2xf32>
    %826 = arith.mulf %807, %825 : vector<1x2xf32>
    %827 = arith.addf %823, %826 : vector<1x2xf32>
    %828 = math.tanh %827 : vector<1x2xf32>
    %cst_87 = arith.constant 1.000000e+00 : f32
    %829 = vector.broadcast %cst_87 : f32 to vector<1x2xf32>
    %830 = arith.subf %829, %819 : vector<1x2xf32>
    %831 = arith.mulf %830, %828 : vector<1x2xf32>
    %832 = arith.mulf %819, %636 : vector<1x2xf32>
    %833 = arith.addf %831, %832 : vector<1x2xf32>
    %834 = vector.broadcast %48 : f32 to vector<1x2xf32>
    %835 = arith.mulf %709, %834 : vector<1x2xf32>
    %836 = vector.broadcast %49 : f32 to vector<1x2xf32>
    %837 = arith.mulf %771, %836 : vector<1x2xf32>
    %838 = arith.addf %835, %837 : vector<1x2xf32>
    %839 = vector.broadcast %50 : f32 to vector<1x2xf32>
    %840 = arith.mulf %833, %839 : vector<1x2xf32>
    %841 = arith.addf %838, %840 : vector<1x2xf32>
    %842 = vector.broadcast %51 : f32 to vector<1x2xf32>
    %843 = arith.addf %841, %842 : vector<1x2xf32>
    %844 = vector.extract_strided_slice %52 {offsets = [4, 0], sizes = [1, 2], strides = [1, 1]} : vector<8x2xf32> to vector<1x2xf32>
    %845 = vector.broadcast %9 : f32 to vector<1x2xf32>
    %846 = arith.mulf %709, %845 : vector<1x2xf32>
    %847 = vector.broadcast %18 : f32 to vector<1x2xf32>
    %848 = arith.mulf %709, %847 : vector<1x2xf32>
    %849 = vector.broadcast %27 : f32 to vector<1x2xf32>
    %850 = arith.mulf %709, %849 : vector<1x2xf32>
    %851 = vector.broadcast %10 : f32 to vector<1x2xf32>
    %852 = arith.mulf %771, %851 : vector<1x2xf32>
    %853 = arith.addf %846, %852 : vector<1x2xf32>
    %854 = vector.broadcast %19 : f32 to vector<1x2xf32>
    %855 = arith.mulf %771, %854 : vector<1x2xf32>
    %856 = arith.addf %848, %855 : vector<1x2xf32>
    %857 = vector.broadcast %28 : f32 to vector<1x2xf32>
    %858 = arith.mulf %771, %857 : vector<1x2xf32>
    %859 = arith.addf %850, %858 : vector<1x2xf32>
    %860 = vector.broadcast %11 : f32 to vector<1x2xf32>
    %861 = arith.mulf %833, %860 : vector<1x2xf32>
    %862 = arith.addf %853, %861 : vector<1x2xf32>
    %863 = vector.broadcast %20 : f32 to vector<1x2xf32>
    %864 = arith.mulf %833, %863 : vector<1x2xf32>
    %865 = arith.addf %856, %864 : vector<1x2xf32>
    %866 = vector.broadcast %29 : f32 to vector<1x2xf32>
    %867 = arith.mulf %833, %866 : vector<1x2xf32>
    %868 = arith.addf %859, %867 : vector<1x2xf32>
    %869 = vector.broadcast %0 : f32 to vector<1x2xf32>
    %870 = arith.mulf %844, %869 : vector<1x2xf32>
    %871 = vector.broadcast %36 : f32 to vector<1x2xf32>
    %872 = arith.addf %870, %871 : vector<1x2xf32>
    %873 = arith.addf %872, %862 : vector<1x2xf32>
    %cst_88 = arith.constant 0.000000e+00 : f32
    %874 = vector.broadcast %cst_88 : f32 to vector<1x2xf32>
    %875 = arith.subf %874, %873 : vector<1x2xf32>
    %876 = math.exp %875 : vector<1x2xf32>
    %cst_89 = arith.constant 1.000000e+00 : f32
    %877 = vector.broadcast %cst_89 : f32 to vector<1x2xf32>
    %878 = arith.addf %877, %876 : vector<1x2xf32>
    %cst_90 = arith.constant 1.000000e+00 : f32
    %879 = vector.broadcast %cst_90 : f32 to vector<1x2xf32>
    %880 = arith.divf %879, %878 : vector<1x2xf32>
    %881 = vector.broadcast %3 : f32 to vector<1x2xf32>
    %882 = arith.mulf %844, %881 : vector<1x2xf32>
    %883 = vector.broadcast %39 : f32 to vector<1x2xf32>
    %884 = arith.addf %882, %883 : vector<1x2xf32>
    %885 = arith.addf %884, %865 : vector<1x2xf32>
    %cst_91 = arith.constant 0.000000e+00 : f32
    %886 = vector.broadcast %cst_91 : f32 to vector<1x2xf32>
    %887 = arith.subf %886, %885 : vector<1x2xf32>
    %888 = math.exp %887 : vector<1x2xf32>
    %cst_92 = arith.constant 1.000000e+00 : f32
    %889 = vector.broadcast %cst_92 : f32 to vector<1x2xf32>
    %890 = arith.addf %889, %888 : vector<1x2xf32>
    %cst_93 = arith.constant 1.000000e+00 : f32
    %891 = vector.broadcast %cst_93 : f32 to vector<1x2xf32>
    %892 = arith.divf %891, %890 : vector<1x2xf32>
    %893 = vector.broadcast %6 : f32 to vector<1x2xf32>
    %894 = arith.mulf %844, %893 : vector<1x2xf32>
    %895 = vector.broadcast %42 : f32 to vector<1x2xf32>
    %896 = arith.addf %894, %895 : vector<1x2xf32>
    %897 = vector.broadcast %45 : f32 to vector<1x2xf32>
    %898 = arith.addf %868, %897 : vector<1x2xf32>
    %899 = arith.mulf %880, %898 : vector<1x2xf32>
    %900 = arith.addf %896, %899 : vector<1x2xf32>
    %901 = math.tanh %900 : vector<1x2xf32>
    %cst_94 = arith.constant 1.000000e+00 : f32
    %902 = vector.broadcast %cst_94 : f32 to vector<1x2xf32>
    %903 = arith.subf %902, %892 : vector<1x2xf32>
    %904 = arith.mulf %903, %901 : vector<1x2xf32>
    %905 = arith.mulf %892, %709 : vector<1x2xf32>
    %906 = arith.addf %904, %905 : vector<1x2xf32>
    %907 = vector.broadcast %12 : f32 to vector<1x2xf32>
    %908 = arith.mulf %709, %907 : vector<1x2xf32>
    %909 = vector.broadcast %21 : f32 to vector<1x2xf32>
    %910 = arith.mulf %709, %909 : vector<1x2xf32>
    %911 = vector.broadcast %30 : f32 to vector<1x2xf32>
    %912 = arith.mulf %709, %911 : vector<1x2xf32>
    %913 = vector.broadcast %13 : f32 to vector<1x2xf32>
    %914 = arith.mulf %771, %913 : vector<1x2xf32>
    %915 = arith.addf %908, %914 : vector<1x2xf32>
    %916 = vector.broadcast %22 : f32 to vector<1x2xf32>
    %917 = arith.mulf %771, %916 : vector<1x2xf32>
    %918 = arith.addf %910, %917 : vector<1x2xf32>
    %919 = vector.broadcast %31 : f32 to vector<1x2xf32>
    %920 = arith.mulf %771, %919 : vector<1x2xf32>
    %921 = arith.addf %912, %920 : vector<1x2xf32>
    %922 = vector.broadcast %14 : f32 to vector<1x2xf32>
    %923 = arith.mulf %833, %922 : vector<1x2xf32>
    %924 = arith.addf %915, %923 : vector<1x2xf32>
    %925 = vector.broadcast %23 : f32 to vector<1x2xf32>
    %926 = arith.mulf %833, %925 : vector<1x2xf32>
    %927 = arith.addf %918, %926 : vector<1x2xf32>
    %928 = vector.broadcast %32 : f32 to vector<1x2xf32>
    %929 = arith.mulf %833, %928 : vector<1x2xf32>
    %930 = arith.addf %921, %929 : vector<1x2xf32>
    %931 = vector.broadcast %1 : f32 to vector<1x2xf32>
    %932 = arith.mulf %844, %931 : vector<1x2xf32>
    %933 = vector.broadcast %37 : f32 to vector<1x2xf32>
    %934 = arith.addf %932, %933 : vector<1x2xf32>
    %935 = arith.addf %934, %924 : vector<1x2xf32>
    %cst_95 = arith.constant 0.000000e+00 : f32
    %936 = vector.broadcast %cst_95 : f32 to vector<1x2xf32>
    %937 = arith.subf %936, %935 : vector<1x2xf32>
    %938 = math.exp %937 : vector<1x2xf32>
    %cst_96 = arith.constant 1.000000e+00 : f32
    %939 = vector.broadcast %cst_96 : f32 to vector<1x2xf32>
    %940 = arith.addf %939, %938 : vector<1x2xf32>
    %cst_97 = arith.constant 1.000000e+00 : f32
    %941 = vector.broadcast %cst_97 : f32 to vector<1x2xf32>
    %942 = arith.divf %941, %940 : vector<1x2xf32>
    %943 = vector.broadcast %4 : f32 to vector<1x2xf32>
    %944 = arith.mulf %844, %943 : vector<1x2xf32>
    %945 = vector.broadcast %40 : f32 to vector<1x2xf32>
    %946 = arith.addf %944, %945 : vector<1x2xf32>
    %947 = arith.addf %946, %927 : vector<1x2xf32>
    %cst_98 = arith.constant 0.000000e+00 : f32
    %948 = vector.broadcast %cst_98 : f32 to vector<1x2xf32>
    %949 = arith.subf %948, %947 : vector<1x2xf32>
    %950 = math.exp %949 : vector<1x2xf32>
    %cst_99 = arith.constant 1.000000e+00 : f32
    %951 = vector.broadcast %cst_99 : f32 to vector<1x2xf32>
    %952 = arith.addf %951, %950 : vector<1x2xf32>
    %cst_100 = arith.constant 1.000000e+00 : f32
    %953 = vector.broadcast %cst_100 : f32 to vector<1x2xf32>
    %954 = arith.divf %953, %952 : vector<1x2xf32>
    %955 = vector.broadcast %7 : f32 to vector<1x2xf32>
    %956 = arith.mulf %844, %955 : vector<1x2xf32>
    %957 = vector.broadcast %43 : f32 to vector<1x2xf32>
    %958 = arith.addf %956, %957 : vector<1x2xf32>
    %959 = vector.broadcast %46 : f32 to vector<1x2xf32>
    %960 = arith.addf %930, %959 : vector<1x2xf32>
    %961 = arith.mulf %942, %960 : vector<1x2xf32>
    %962 = arith.addf %958, %961 : vector<1x2xf32>
    %963 = math.tanh %962 : vector<1x2xf32>
    %cst_101 = arith.constant 1.000000e+00 : f32
    %964 = vector.broadcast %cst_101 : f32 to vector<1x2xf32>
    %965 = arith.subf %964, %954 : vector<1x2xf32>
    %966 = arith.mulf %965, %963 : vector<1x2xf32>
    %967 = arith.mulf %954, %771 : vector<1x2xf32>
    %968 = arith.addf %966, %967 : vector<1x2xf32>
    %969 = vector.broadcast %15 : f32 to vector<1x2xf32>
    %970 = arith.mulf %709, %969 : vector<1x2xf32>
    %971 = vector.broadcast %24 : f32 to vector<1x2xf32>
    %972 = arith.mulf %709, %971 : vector<1x2xf32>
    %973 = vector.broadcast %33 : f32 to vector<1x2xf32>
    %974 = arith.mulf %709, %973 : vector<1x2xf32>
    %975 = vector.broadcast %16 : f32 to vector<1x2xf32>
    %976 = arith.mulf %771, %975 : vector<1x2xf32>
    %977 = arith.addf %970, %976 : vector<1x2xf32>
    %978 = vector.broadcast %25 : f32 to vector<1x2xf32>
    %979 = arith.mulf %771, %978 : vector<1x2xf32>
    %980 = arith.addf %972, %979 : vector<1x2xf32>
    %981 = vector.broadcast %34 : f32 to vector<1x2xf32>
    %982 = arith.mulf %771, %981 : vector<1x2xf32>
    %983 = arith.addf %974, %982 : vector<1x2xf32>
    %984 = vector.broadcast %17 : f32 to vector<1x2xf32>
    %985 = arith.mulf %833, %984 : vector<1x2xf32>
    %986 = arith.addf %977, %985 : vector<1x2xf32>
    %987 = vector.broadcast %26 : f32 to vector<1x2xf32>
    %988 = arith.mulf %833, %987 : vector<1x2xf32>
    %989 = arith.addf %980, %988 : vector<1x2xf32>
    %990 = vector.broadcast %35 : f32 to vector<1x2xf32>
    %991 = arith.mulf %833, %990 : vector<1x2xf32>
    %992 = arith.addf %983, %991 : vector<1x2xf32>
    %993 = vector.broadcast %2 : f32 to vector<1x2xf32>
    %994 = arith.mulf %844, %993 : vector<1x2xf32>
    %995 = vector.broadcast %38 : f32 to vector<1x2xf32>
    %996 = arith.addf %994, %995 : vector<1x2xf32>
    %997 = arith.addf %996, %986 : vector<1x2xf32>
    %cst_102 = arith.constant 0.000000e+00 : f32
    %998 = vector.broadcast %cst_102 : f32 to vector<1x2xf32>
    %999 = arith.subf %998, %997 : vector<1x2xf32>
    %1000 = math.exp %999 : vector<1x2xf32>
    %cst_103 = arith.constant 1.000000e+00 : f32
    %1001 = vector.broadcast %cst_103 : f32 to vector<1x2xf32>
    %1002 = arith.addf %1001, %1000 : vector<1x2xf32>
    %cst_104 = arith.constant 1.000000e+00 : f32
    %1003 = vector.broadcast %cst_104 : f32 to vector<1x2xf32>
    %1004 = arith.divf %1003, %1002 : vector<1x2xf32>
    %1005 = vector.broadcast %5 : f32 to vector<1x2xf32>
    %1006 = arith.mulf %844, %1005 : vector<1x2xf32>
    %1007 = vector.broadcast %41 : f32 to vector<1x2xf32>
    %1008 = arith.addf %1006, %1007 : vector<1x2xf32>
    %1009 = arith.addf %1008, %989 : vector<1x2xf32>
    %cst_105 = arith.constant 0.000000e+00 : f32
    %1010 = vector.broadcast %cst_105 : f32 to vector<1x2xf32>
    %1011 = arith.subf %1010, %1009 : vector<1x2xf32>
    %1012 = math.exp %1011 : vector<1x2xf32>
    %cst_106 = arith.constant 1.000000e+00 : f32
    %1013 = vector.broadcast %cst_106 : f32 to vector<1x2xf32>
    %1014 = arith.addf %1013, %1012 : vector<1x2xf32>
    %cst_107 = arith.constant 1.000000e+00 : f32
    %1015 = vector.broadcast %cst_107 : f32 to vector<1x2xf32>
    %1016 = arith.divf %1015, %1014 : vector<1x2xf32>
    %1017 = vector.broadcast %8 : f32 to vector<1x2xf32>
    %1018 = arith.mulf %844, %1017 : vector<1x2xf32>
    %1019 = vector.broadcast %44 : f32 to vector<1x2xf32>
    %1020 = arith.addf %1018, %1019 : vector<1x2xf32>
    %1021 = vector.broadcast %47 : f32 to vector<1x2xf32>
    %1022 = arith.addf %992, %1021 : vector<1x2xf32>
    %1023 = arith.mulf %1004, %1022 : vector<1x2xf32>
    %1024 = arith.addf %1020, %1023 : vector<1x2xf32>
    %1025 = math.tanh %1024 : vector<1x2xf32>
    %cst_108 = arith.constant 1.000000e+00 : f32
    %1026 = vector.broadcast %cst_108 : f32 to vector<1x2xf32>
    %1027 = arith.subf %1026, %1016 : vector<1x2xf32>
    %1028 = arith.mulf %1027, %1025 : vector<1x2xf32>
    %1029 = arith.mulf %1016, %833 : vector<1x2xf32>
    %1030 = arith.addf %1028, %1029 : vector<1x2xf32>
    %1031 = vector.broadcast %48 : f32 to vector<1x2xf32>
    %1032 = arith.mulf %906, %1031 : vector<1x2xf32>
    %1033 = vector.broadcast %49 : f32 to vector<1x2xf32>
    %1034 = arith.mulf %968, %1033 : vector<1x2xf32>
    %1035 = arith.addf %1032, %1034 : vector<1x2xf32>
    %1036 = vector.broadcast %50 : f32 to vector<1x2xf32>
    %1037 = arith.mulf %1030, %1036 : vector<1x2xf32>
    %1038 = arith.addf %1035, %1037 : vector<1x2xf32>
    %1039 = vector.broadcast %51 : f32 to vector<1x2xf32>
    %1040 = arith.addf %1038, %1039 : vector<1x2xf32>
    %1041 = vector.extract_strided_slice %52 {offsets = [5, 0], sizes = [1, 2], strides = [1, 1]} : vector<8x2xf32> to vector<1x2xf32>
    %1042 = vector.broadcast %9 : f32 to vector<1x2xf32>
    %1043 = arith.mulf %906, %1042 : vector<1x2xf32>
    %1044 = vector.broadcast %18 : f32 to vector<1x2xf32>
    %1045 = arith.mulf %906, %1044 : vector<1x2xf32>
    %1046 = vector.broadcast %27 : f32 to vector<1x2xf32>
    %1047 = arith.mulf %906, %1046 : vector<1x2xf32>
    %1048 = vector.broadcast %10 : f32 to vector<1x2xf32>
    %1049 = arith.mulf %968, %1048 : vector<1x2xf32>
    %1050 = arith.addf %1043, %1049 : vector<1x2xf32>
    %1051 = vector.broadcast %19 : f32 to vector<1x2xf32>
    %1052 = arith.mulf %968, %1051 : vector<1x2xf32>
    %1053 = arith.addf %1045, %1052 : vector<1x2xf32>
    %1054 = vector.broadcast %28 : f32 to vector<1x2xf32>
    %1055 = arith.mulf %968, %1054 : vector<1x2xf32>
    %1056 = arith.addf %1047, %1055 : vector<1x2xf32>
    %1057 = vector.broadcast %11 : f32 to vector<1x2xf32>
    %1058 = arith.mulf %1030, %1057 : vector<1x2xf32>
    %1059 = arith.addf %1050, %1058 : vector<1x2xf32>
    %1060 = vector.broadcast %20 : f32 to vector<1x2xf32>
    %1061 = arith.mulf %1030, %1060 : vector<1x2xf32>
    %1062 = arith.addf %1053, %1061 : vector<1x2xf32>
    %1063 = vector.broadcast %29 : f32 to vector<1x2xf32>
    %1064 = arith.mulf %1030, %1063 : vector<1x2xf32>
    %1065 = arith.addf %1056, %1064 : vector<1x2xf32>
    %1066 = vector.broadcast %0 : f32 to vector<1x2xf32>
    %1067 = arith.mulf %1041, %1066 : vector<1x2xf32>
    %1068 = vector.broadcast %36 : f32 to vector<1x2xf32>
    %1069 = arith.addf %1067, %1068 : vector<1x2xf32>
    %1070 = arith.addf %1069, %1059 : vector<1x2xf32>
    %cst_109 = arith.constant 0.000000e+00 : f32
    %1071 = vector.broadcast %cst_109 : f32 to vector<1x2xf32>
    %1072 = arith.subf %1071, %1070 : vector<1x2xf32>
    %1073 = math.exp %1072 : vector<1x2xf32>
    %cst_110 = arith.constant 1.000000e+00 : f32
    %1074 = vector.broadcast %cst_110 : f32 to vector<1x2xf32>
    %1075 = arith.addf %1074, %1073 : vector<1x2xf32>
    %cst_111 = arith.constant 1.000000e+00 : f32
    %1076 = vector.broadcast %cst_111 : f32 to vector<1x2xf32>
    %1077 = arith.divf %1076, %1075 : vector<1x2xf32>
    %1078 = vector.broadcast %3 : f32 to vector<1x2xf32>
    %1079 = arith.mulf %1041, %1078 : vector<1x2xf32>
    %1080 = vector.broadcast %39 : f32 to vector<1x2xf32>
    %1081 = arith.addf %1079, %1080 : vector<1x2xf32>
    %1082 = arith.addf %1081, %1062 : vector<1x2xf32>
    %cst_112 = arith.constant 0.000000e+00 : f32
    %1083 = vector.broadcast %cst_112 : f32 to vector<1x2xf32>
    %1084 = arith.subf %1083, %1082 : vector<1x2xf32>
    %1085 = math.exp %1084 : vector<1x2xf32>
    %cst_113 = arith.constant 1.000000e+00 : f32
    %1086 = vector.broadcast %cst_113 : f32 to vector<1x2xf32>
    %1087 = arith.addf %1086, %1085 : vector<1x2xf32>
    %cst_114 = arith.constant 1.000000e+00 : f32
    %1088 = vector.broadcast %cst_114 : f32 to vector<1x2xf32>
    %1089 = arith.divf %1088, %1087 : vector<1x2xf32>
    %1090 = vector.broadcast %6 : f32 to vector<1x2xf32>
    %1091 = arith.mulf %1041, %1090 : vector<1x2xf32>
    %1092 = vector.broadcast %42 : f32 to vector<1x2xf32>
    %1093 = arith.addf %1091, %1092 : vector<1x2xf32>
    %1094 = vector.broadcast %45 : f32 to vector<1x2xf32>
    %1095 = arith.addf %1065, %1094 : vector<1x2xf32>
    %1096 = arith.mulf %1077, %1095 : vector<1x2xf32>
    %1097 = arith.addf %1093, %1096 : vector<1x2xf32>
    %1098 = math.tanh %1097 : vector<1x2xf32>
    %cst_115 = arith.constant 1.000000e+00 : f32
    %1099 = vector.broadcast %cst_115 : f32 to vector<1x2xf32>
    %1100 = arith.subf %1099, %1089 : vector<1x2xf32>
    %1101 = arith.mulf %1100, %1098 : vector<1x2xf32>
    %1102 = arith.mulf %1089, %906 : vector<1x2xf32>
    %1103 = arith.addf %1101, %1102 : vector<1x2xf32>
    %1104 = vector.broadcast %12 : f32 to vector<1x2xf32>
    %1105 = arith.mulf %906, %1104 : vector<1x2xf32>
    %1106 = vector.broadcast %21 : f32 to vector<1x2xf32>
    %1107 = arith.mulf %906, %1106 : vector<1x2xf32>
    %1108 = vector.broadcast %30 : f32 to vector<1x2xf32>
    %1109 = arith.mulf %906, %1108 : vector<1x2xf32>
    %1110 = vector.broadcast %13 : f32 to vector<1x2xf32>
    %1111 = arith.mulf %968, %1110 : vector<1x2xf32>
    %1112 = arith.addf %1105, %1111 : vector<1x2xf32>
    %1113 = vector.broadcast %22 : f32 to vector<1x2xf32>
    %1114 = arith.mulf %968, %1113 : vector<1x2xf32>
    %1115 = arith.addf %1107, %1114 : vector<1x2xf32>
    %1116 = vector.broadcast %31 : f32 to vector<1x2xf32>
    %1117 = arith.mulf %968, %1116 : vector<1x2xf32>
    %1118 = arith.addf %1109, %1117 : vector<1x2xf32>
    %1119 = vector.broadcast %14 : f32 to vector<1x2xf32>
    %1120 = arith.mulf %1030, %1119 : vector<1x2xf32>
    %1121 = arith.addf %1112, %1120 : vector<1x2xf32>
    %1122 = vector.broadcast %23 : f32 to vector<1x2xf32>
    %1123 = arith.mulf %1030, %1122 : vector<1x2xf32>
    %1124 = arith.addf %1115, %1123 : vector<1x2xf32>
    %1125 = vector.broadcast %32 : f32 to vector<1x2xf32>
    %1126 = arith.mulf %1030, %1125 : vector<1x2xf32>
    %1127 = arith.addf %1118, %1126 : vector<1x2xf32>
    %1128 = vector.broadcast %1 : f32 to vector<1x2xf32>
    %1129 = arith.mulf %1041, %1128 : vector<1x2xf32>
    %1130 = vector.broadcast %37 : f32 to vector<1x2xf32>
    %1131 = arith.addf %1129, %1130 : vector<1x2xf32>
    %1132 = arith.addf %1131, %1121 : vector<1x2xf32>
    %cst_116 = arith.constant 0.000000e+00 : f32
    %1133 = vector.broadcast %cst_116 : f32 to vector<1x2xf32>
    %1134 = arith.subf %1133, %1132 : vector<1x2xf32>
    %1135 = math.exp %1134 : vector<1x2xf32>
    %cst_117 = arith.constant 1.000000e+00 : f32
    %1136 = vector.broadcast %cst_117 : f32 to vector<1x2xf32>
    %1137 = arith.addf %1136, %1135 : vector<1x2xf32>
    %cst_118 = arith.constant 1.000000e+00 : f32
    %1138 = vector.broadcast %cst_118 : f32 to vector<1x2xf32>
    %1139 = arith.divf %1138, %1137 : vector<1x2xf32>
    %1140 = vector.broadcast %4 : f32 to vector<1x2xf32>
    %1141 = arith.mulf %1041, %1140 : vector<1x2xf32>
    %1142 = vector.broadcast %40 : f32 to vector<1x2xf32>
    %1143 = arith.addf %1141, %1142 : vector<1x2xf32>
    %1144 = arith.addf %1143, %1124 : vector<1x2xf32>
    %cst_119 = arith.constant 0.000000e+00 : f32
    %1145 = vector.broadcast %cst_119 : f32 to vector<1x2xf32>
    %1146 = arith.subf %1145, %1144 : vector<1x2xf32>
    %1147 = math.exp %1146 : vector<1x2xf32>
    %cst_120 = arith.constant 1.000000e+00 : f32
    %1148 = vector.broadcast %cst_120 : f32 to vector<1x2xf32>
    %1149 = arith.addf %1148, %1147 : vector<1x2xf32>
    %cst_121 = arith.constant 1.000000e+00 : f32
    %1150 = vector.broadcast %cst_121 : f32 to vector<1x2xf32>
    %1151 = arith.divf %1150, %1149 : vector<1x2xf32>
    %1152 = vector.broadcast %7 : f32 to vector<1x2xf32>
    %1153 = arith.mulf %1041, %1152 : vector<1x2xf32>
    %1154 = vector.broadcast %43 : f32 to vector<1x2xf32>
    %1155 = arith.addf %1153, %1154 : vector<1x2xf32>
    %1156 = vector.broadcast %46 : f32 to vector<1x2xf32>
    %1157 = arith.addf %1127, %1156 : vector<1x2xf32>
    %1158 = arith.mulf %1139, %1157 : vector<1x2xf32>
    %1159 = arith.addf %1155, %1158 : vector<1x2xf32>
    %1160 = math.tanh %1159 : vector<1x2xf32>
    %cst_122 = arith.constant 1.000000e+00 : f32
    %1161 = vector.broadcast %cst_122 : f32 to vector<1x2xf32>
    %1162 = arith.subf %1161, %1151 : vector<1x2xf32>
    %1163 = arith.mulf %1162, %1160 : vector<1x2xf32>
    %1164 = arith.mulf %1151, %968 : vector<1x2xf32>
    %1165 = arith.addf %1163, %1164 : vector<1x2xf32>
    %1166 = vector.broadcast %15 : f32 to vector<1x2xf32>
    %1167 = arith.mulf %906, %1166 : vector<1x2xf32>
    %1168 = vector.broadcast %24 : f32 to vector<1x2xf32>
    %1169 = arith.mulf %906, %1168 : vector<1x2xf32>
    %1170 = vector.broadcast %33 : f32 to vector<1x2xf32>
    %1171 = arith.mulf %906, %1170 : vector<1x2xf32>
    %1172 = vector.broadcast %16 : f32 to vector<1x2xf32>
    %1173 = arith.mulf %968, %1172 : vector<1x2xf32>
    %1174 = arith.addf %1167, %1173 : vector<1x2xf32>
    %1175 = vector.broadcast %25 : f32 to vector<1x2xf32>
    %1176 = arith.mulf %968, %1175 : vector<1x2xf32>
    %1177 = arith.addf %1169, %1176 : vector<1x2xf32>
    %1178 = vector.broadcast %34 : f32 to vector<1x2xf32>
    %1179 = arith.mulf %968, %1178 : vector<1x2xf32>
    %1180 = arith.addf %1171, %1179 : vector<1x2xf32>
    %1181 = vector.broadcast %17 : f32 to vector<1x2xf32>
    %1182 = arith.mulf %1030, %1181 : vector<1x2xf32>
    %1183 = arith.addf %1174, %1182 : vector<1x2xf32>
    %1184 = vector.broadcast %26 : f32 to vector<1x2xf32>
    %1185 = arith.mulf %1030, %1184 : vector<1x2xf32>
    %1186 = arith.addf %1177, %1185 : vector<1x2xf32>
    %1187 = vector.broadcast %35 : f32 to vector<1x2xf32>
    %1188 = arith.mulf %1030, %1187 : vector<1x2xf32>
    %1189 = arith.addf %1180, %1188 : vector<1x2xf32>
    %1190 = vector.broadcast %2 : f32 to vector<1x2xf32>
    %1191 = arith.mulf %1041, %1190 : vector<1x2xf32>
    %1192 = vector.broadcast %38 : f32 to vector<1x2xf32>
    %1193 = arith.addf %1191, %1192 : vector<1x2xf32>
    %1194 = arith.addf %1193, %1183 : vector<1x2xf32>
    %cst_123 = arith.constant 0.000000e+00 : f32
    %1195 = vector.broadcast %cst_123 : f32 to vector<1x2xf32>
    %1196 = arith.subf %1195, %1194 : vector<1x2xf32>
    %1197 = math.exp %1196 : vector<1x2xf32>
    %cst_124 = arith.constant 1.000000e+00 : f32
    %1198 = vector.broadcast %cst_124 : f32 to vector<1x2xf32>
    %1199 = arith.addf %1198, %1197 : vector<1x2xf32>
    %cst_125 = arith.constant 1.000000e+00 : f32
    %1200 = vector.broadcast %cst_125 : f32 to vector<1x2xf32>
    %1201 = arith.divf %1200, %1199 : vector<1x2xf32>
    %1202 = vector.broadcast %5 : f32 to vector<1x2xf32>
    %1203 = arith.mulf %1041, %1202 : vector<1x2xf32>
    %1204 = vector.broadcast %41 : f32 to vector<1x2xf32>
    %1205 = arith.addf %1203, %1204 : vector<1x2xf32>
    %1206 = arith.addf %1205, %1186 : vector<1x2xf32>
    %cst_126 = arith.constant 0.000000e+00 : f32
    %1207 = vector.broadcast %cst_126 : f32 to vector<1x2xf32>
    %1208 = arith.subf %1207, %1206 : vector<1x2xf32>
    %1209 = math.exp %1208 : vector<1x2xf32>
    %cst_127 = arith.constant 1.000000e+00 : f32
    %1210 = vector.broadcast %cst_127 : f32 to vector<1x2xf32>
    %1211 = arith.addf %1210, %1209 : vector<1x2xf32>
    %cst_128 = arith.constant 1.000000e+00 : f32
    %1212 = vector.broadcast %cst_128 : f32 to vector<1x2xf32>
    %1213 = arith.divf %1212, %1211 : vector<1x2xf32>
    %1214 = vector.broadcast %8 : f32 to vector<1x2xf32>
    %1215 = arith.mulf %1041, %1214 : vector<1x2xf32>
    %1216 = vector.broadcast %44 : f32 to vector<1x2xf32>
    %1217 = arith.addf %1215, %1216 : vector<1x2xf32>
    %1218 = vector.broadcast %47 : f32 to vector<1x2xf32>
    %1219 = arith.addf %1189, %1218 : vector<1x2xf32>
    %1220 = arith.mulf %1201, %1219 : vector<1x2xf32>
    %1221 = arith.addf %1217, %1220 : vector<1x2xf32>
    %1222 = math.tanh %1221 : vector<1x2xf32>
    %cst_129 = arith.constant 1.000000e+00 : f32
    %1223 = vector.broadcast %cst_129 : f32 to vector<1x2xf32>
    %1224 = arith.subf %1223, %1213 : vector<1x2xf32>
    %1225 = arith.mulf %1224, %1222 : vector<1x2xf32>
    %1226 = arith.mulf %1213, %1030 : vector<1x2xf32>
    %1227 = arith.addf %1225, %1226 : vector<1x2xf32>
    %1228 = vector.broadcast %48 : f32 to vector<1x2xf32>
    %1229 = arith.mulf %1103, %1228 : vector<1x2xf32>
    %1230 = vector.broadcast %49 : f32 to vector<1x2xf32>
    %1231 = arith.mulf %1165, %1230 : vector<1x2xf32>
    %1232 = arith.addf %1229, %1231 : vector<1x2xf32>
    %1233 = vector.broadcast %50 : f32 to vector<1x2xf32>
    %1234 = arith.mulf %1227, %1233 : vector<1x2xf32>
    %1235 = arith.addf %1232, %1234 : vector<1x2xf32>
    %1236 = vector.broadcast %51 : f32 to vector<1x2xf32>
    %1237 = arith.addf %1235, %1236 : vector<1x2xf32>
    %1238 = vector.extract_strided_slice %52 {offsets = [6, 0], sizes = [1, 2], strides = [1, 1]} : vector<8x2xf32> to vector<1x2xf32>
    %1239 = vector.broadcast %9 : f32 to vector<1x2xf32>
    %1240 = arith.mulf %1103, %1239 : vector<1x2xf32>
    %1241 = vector.broadcast %18 : f32 to vector<1x2xf32>
    %1242 = arith.mulf %1103, %1241 : vector<1x2xf32>
    %1243 = vector.broadcast %27 : f32 to vector<1x2xf32>
    %1244 = arith.mulf %1103, %1243 : vector<1x2xf32>
    %1245 = vector.broadcast %10 : f32 to vector<1x2xf32>
    %1246 = arith.mulf %1165, %1245 : vector<1x2xf32>
    %1247 = arith.addf %1240, %1246 : vector<1x2xf32>
    %1248 = vector.broadcast %19 : f32 to vector<1x2xf32>
    %1249 = arith.mulf %1165, %1248 : vector<1x2xf32>
    %1250 = arith.addf %1242, %1249 : vector<1x2xf32>
    %1251 = vector.broadcast %28 : f32 to vector<1x2xf32>
    %1252 = arith.mulf %1165, %1251 : vector<1x2xf32>
    %1253 = arith.addf %1244, %1252 : vector<1x2xf32>
    %1254 = vector.broadcast %11 : f32 to vector<1x2xf32>
    %1255 = arith.mulf %1227, %1254 : vector<1x2xf32>
    %1256 = arith.addf %1247, %1255 : vector<1x2xf32>
    %1257 = vector.broadcast %20 : f32 to vector<1x2xf32>
    %1258 = arith.mulf %1227, %1257 : vector<1x2xf32>
    %1259 = arith.addf %1250, %1258 : vector<1x2xf32>
    %1260 = vector.broadcast %29 : f32 to vector<1x2xf32>
    %1261 = arith.mulf %1227, %1260 : vector<1x2xf32>
    %1262 = arith.addf %1253, %1261 : vector<1x2xf32>
    %1263 = vector.broadcast %0 : f32 to vector<1x2xf32>
    %1264 = arith.mulf %1238, %1263 : vector<1x2xf32>
    %1265 = vector.broadcast %36 : f32 to vector<1x2xf32>
    %1266 = arith.addf %1264, %1265 : vector<1x2xf32>
    %1267 = arith.addf %1266, %1256 : vector<1x2xf32>
    %cst_130 = arith.constant 0.000000e+00 : f32
    %1268 = vector.broadcast %cst_130 : f32 to vector<1x2xf32>
    %1269 = arith.subf %1268, %1267 : vector<1x2xf32>
    %1270 = math.exp %1269 : vector<1x2xf32>
    %cst_131 = arith.constant 1.000000e+00 : f32
    %1271 = vector.broadcast %cst_131 : f32 to vector<1x2xf32>
    %1272 = arith.addf %1271, %1270 : vector<1x2xf32>
    %cst_132 = arith.constant 1.000000e+00 : f32
    %1273 = vector.broadcast %cst_132 : f32 to vector<1x2xf32>
    %1274 = arith.divf %1273, %1272 : vector<1x2xf32>
    %1275 = vector.broadcast %3 : f32 to vector<1x2xf32>
    %1276 = arith.mulf %1238, %1275 : vector<1x2xf32>
    %1277 = vector.broadcast %39 : f32 to vector<1x2xf32>
    %1278 = arith.addf %1276, %1277 : vector<1x2xf32>
    %1279 = arith.addf %1278, %1259 : vector<1x2xf32>
    %cst_133 = arith.constant 0.000000e+00 : f32
    %1280 = vector.broadcast %cst_133 : f32 to vector<1x2xf32>
    %1281 = arith.subf %1280, %1279 : vector<1x2xf32>
    %1282 = math.exp %1281 : vector<1x2xf32>
    %cst_134 = arith.constant 1.000000e+00 : f32
    %1283 = vector.broadcast %cst_134 : f32 to vector<1x2xf32>
    %1284 = arith.addf %1283, %1282 : vector<1x2xf32>
    %cst_135 = arith.constant 1.000000e+00 : f32
    %1285 = vector.broadcast %cst_135 : f32 to vector<1x2xf32>
    %1286 = arith.divf %1285, %1284 : vector<1x2xf32>
    %1287 = vector.broadcast %6 : f32 to vector<1x2xf32>
    %1288 = arith.mulf %1238, %1287 : vector<1x2xf32>
    %1289 = vector.broadcast %42 : f32 to vector<1x2xf32>
    %1290 = arith.addf %1288, %1289 : vector<1x2xf32>
    %1291 = vector.broadcast %45 : f32 to vector<1x2xf32>
    %1292 = arith.addf %1262, %1291 : vector<1x2xf32>
    %1293 = arith.mulf %1274, %1292 : vector<1x2xf32>
    %1294 = arith.addf %1290, %1293 : vector<1x2xf32>
    %1295 = math.tanh %1294 : vector<1x2xf32>
    %cst_136 = arith.constant 1.000000e+00 : f32
    %1296 = vector.broadcast %cst_136 : f32 to vector<1x2xf32>
    %1297 = arith.subf %1296, %1286 : vector<1x2xf32>
    %1298 = arith.mulf %1297, %1295 : vector<1x2xf32>
    %1299 = arith.mulf %1286, %1103 : vector<1x2xf32>
    %1300 = arith.addf %1298, %1299 : vector<1x2xf32>
    %1301 = vector.broadcast %12 : f32 to vector<1x2xf32>
    %1302 = arith.mulf %1103, %1301 : vector<1x2xf32>
    %1303 = vector.broadcast %21 : f32 to vector<1x2xf32>
    %1304 = arith.mulf %1103, %1303 : vector<1x2xf32>
    %1305 = vector.broadcast %30 : f32 to vector<1x2xf32>
    %1306 = arith.mulf %1103, %1305 : vector<1x2xf32>
    %1307 = vector.broadcast %13 : f32 to vector<1x2xf32>
    %1308 = arith.mulf %1165, %1307 : vector<1x2xf32>
    %1309 = arith.addf %1302, %1308 : vector<1x2xf32>
    %1310 = vector.broadcast %22 : f32 to vector<1x2xf32>
    %1311 = arith.mulf %1165, %1310 : vector<1x2xf32>
    %1312 = arith.addf %1304, %1311 : vector<1x2xf32>
    %1313 = vector.broadcast %31 : f32 to vector<1x2xf32>
    %1314 = arith.mulf %1165, %1313 : vector<1x2xf32>
    %1315 = arith.addf %1306, %1314 : vector<1x2xf32>
    %1316 = vector.broadcast %14 : f32 to vector<1x2xf32>
    %1317 = arith.mulf %1227, %1316 : vector<1x2xf32>
    %1318 = arith.addf %1309, %1317 : vector<1x2xf32>
    %1319 = vector.broadcast %23 : f32 to vector<1x2xf32>
    %1320 = arith.mulf %1227, %1319 : vector<1x2xf32>
    %1321 = arith.addf %1312, %1320 : vector<1x2xf32>
    %1322 = vector.broadcast %32 : f32 to vector<1x2xf32>
    %1323 = arith.mulf %1227, %1322 : vector<1x2xf32>
    %1324 = arith.addf %1315, %1323 : vector<1x2xf32>
    %1325 = vector.broadcast %1 : f32 to vector<1x2xf32>
    %1326 = arith.mulf %1238, %1325 : vector<1x2xf32>
    %1327 = vector.broadcast %37 : f32 to vector<1x2xf32>
    %1328 = arith.addf %1326, %1327 : vector<1x2xf32>
    %1329 = arith.addf %1328, %1318 : vector<1x2xf32>
    %cst_137 = arith.constant 0.000000e+00 : f32
    %1330 = vector.broadcast %cst_137 : f32 to vector<1x2xf32>
    %1331 = arith.subf %1330, %1329 : vector<1x2xf32>
    %1332 = math.exp %1331 : vector<1x2xf32>
    %cst_138 = arith.constant 1.000000e+00 : f32
    %1333 = vector.broadcast %cst_138 : f32 to vector<1x2xf32>
    %1334 = arith.addf %1333, %1332 : vector<1x2xf32>
    %cst_139 = arith.constant 1.000000e+00 : f32
    %1335 = vector.broadcast %cst_139 : f32 to vector<1x2xf32>
    %1336 = arith.divf %1335, %1334 : vector<1x2xf32>
    %1337 = vector.broadcast %4 : f32 to vector<1x2xf32>
    %1338 = arith.mulf %1238, %1337 : vector<1x2xf32>
    %1339 = vector.broadcast %40 : f32 to vector<1x2xf32>
    %1340 = arith.addf %1338, %1339 : vector<1x2xf32>
    %1341 = arith.addf %1340, %1321 : vector<1x2xf32>
    %cst_140 = arith.constant 0.000000e+00 : f32
    %1342 = vector.broadcast %cst_140 : f32 to vector<1x2xf32>
    %1343 = arith.subf %1342, %1341 : vector<1x2xf32>
    %1344 = math.exp %1343 : vector<1x2xf32>
    %cst_141 = arith.constant 1.000000e+00 : f32
    %1345 = vector.broadcast %cst_141 : f32 to vector<1x2xf32>
    %1346 = arith.addf %1345, %1344 : vector<1x2xf32>
    %cst_142 = arith.constant 1.000000e+00 : f32
    %1347 = vector.broadcast %cst_142 : f32 to vector<1x2xf32>
    %1348 = arith.divf %1347, %1346 : vector<1x2xf32>
    %1349 = vector.broadcast %7 : f32 to vector<1x2xf32>
    %1350 = arith.mulf %1238, %1349 : vector<1x2xf32>
    %1351 = vector.broadcast %43 : f32 to vector<1x2xf32>
    %1352 = arith.addf %1350, %1351 : vector<1x2xf32>
    %1353 = vector.broadcast %46 : f32 to vector<1x2xf32>
    %1354 = arith.addf %1324, %1353 : vector<1x2xf32>
    %1355 = arith.mulf %1336, %1354 : vector<1x2xf32>
    %1356 = arith.addf %1352, %1355 : vector<1x2xf32>
    %1357 = math.tanh %1356 : vector<1x2xf32>
    %cst_143 = arith.constant 1.000000e+00 : f32
    %1358 = vector.broadcast %cst_143 : f32 to vector<1x2xf32>
    %1359 = arith.subf %1358, %1348 : vector<1x2xf32>
    %1360 = arith.mulf %1359, %1357 : vector<1x2xf32>
    %1361 = arith.mulf %1348, %1165 : vector<1x2xf32>
    %1362 = arith.addf %1360, %1361 : vector<1x2xf32>
    %1363 = vector.broadcast %15 : f32 to vector<1x2xf32>
    %1364 = arith.mulf %1103, %1363 : vector<1x2xf32>
    %1365 = vector.broadcast %24 : f32 to vector<1x2xf32>
    %1366 = arith.mulf %1103, %1365 : vector<1x2xf32>
    %1367 = vector.broadcast %33 : f32 to vector<1x2xf32>
    %1368 = arith.mulf %1103, %1367 : vector<1x2xf32>
    %1369 = vector.broadcast %16 : f32 to vector<1x2xf32>
    %1370 = arith.mulf %1165, %1369 : vector<1x2xf32>
    %1371 = arith.addf %1364, %1370 : vector<1x2xf32>
    %1372 = vector.broadcast %25 : f32 to vector<1x2xf32>
    %1373 = arith.mulf %1165, %1372 : vector<1x2xf32>
    %1374 = arith.addf %1366, %1373 : vector<1x2xf32>
    %1375 = vector.broadcast %34 : f32 to vector<1x2xf32>
    %1376 = arith.mulf %1165, %1375 : vector<1x2xf32>
    %1377 = arith.addf %1368, %1376 : vector<1x2xf32>
    %1378 = vector.broadcast %17 : f32 to vector<1x2xf32>
    %1379 = arith.mulf %1227, %1378 : vector<1x2xf32>
    %1380 = arith.addf %1371, %1379 : vector<1x2xf32>
    %1381 = vector.broadcast %26 : f32 to vector<1x2xf32>
    %1382 = arith.mulf %1227, %1381 : vector<1x2xf32>
    %1383 = arith.addf %1374, %1382 : vector<1x2xf32>
    %1384 = vector.broadcast %35 : f32 to vector<1x2xf32>
    %1385 = arith.mulf %1227, %1384 : vector<1x2xf32>
    %1386 = arith.addf %1377, %1385 : vector<1x2xf32>
    %1387 = vector.broadcast %2 : f32 to vector<1x2xf32>
    %1388 = arith.mulf %1238, %1387 : vector<1x2xf32>
    %1389 = vector.broadcast %38 : f32 to vector<1x2xf32>
    %1390 = arith.addf %1388, %1389 : vector<1x2xf32>
    %1391 = arith.addf %1390, %1380 : vector<1x2xf32>
    %cst_144 = arith.constant 0.000000e+00 : f32
    %1392 = vector.broadcast %cst_144 : f32 to vector<1x2xf32>
    %1393 = arith.subf %1392, %1391 : vector<1x2xf32>
    %1394 = math.exp %1393 : vector<1x2xf32>
    %cst_145 = arith.constant 1.000000e+00 : f32
    %1395 = vector.broadcast %cst_145 : f32 to vector<1x2xf32>
    %1396 = arith.addf %1395, %1394 : vector<1x2xf32>
    %cst_146 = arith.constant 1.000000e+00 : f32
    %1397 = vector.broadcast %cst_146 : f32 to vector<1x2xf32>
    %1398 = arith.divf %1397, %1396 : vector<1x2xf32>
    %1399 = vector.broadcast %5 : f32 to vector<1x2xf32>
    %1400 = arith.mulf %1238, %1399 : vector<1x2xf32>
    %1401 = vector.broadcast %41 : f32 to vector<1x2xf32>
    %1402 = arith.addf %1400, %1401 : vector<1x2xf32>
    %1403 = arith.addf %1402, %1383 : vector<1x2xf32>
    %cst_147 = arith.constant 0.000000e+00 : f32
    %1404 = vector.broadcast %cst_147 : f32 to vector<1x2xf32>
    %1405 = arith.subf %1404, %1403 : vector<1x2xf32>
    %1406 = math.exp %1405 : vector<1x2xf32>
    %cst_148 = arith.constant 1.000000e+00 : f32
    %1407 = vector.broadcast %cst_148 : f32 to vector<1x2xf32>
    %1408 = arith.addf %1407, %1406 : vector<1x2xf32>
    %cst_149 = arith.constant 1.000000e+00 : f32
    %1409 = vector.broadcast %cst_149 : f32 to vector<1x2xf32>
    %1410 = arith.divf %1409, %1408 : vector<1x2xf32>
    %1411 = vector.broadcast %8 : f32 to vector<1x2xf32>
    %1412 = arith.mulf %1238, %1411 : vector<1x2xf32>
    %1413 = vector.broadcast %44 : f32 to vector<1x2xf32>
    %1414 = arith.addf %1412, %1413 : vector<1x2xf32>
    %1415 = vector.broadcast %47 : f32 to vector<1x2xf32>
    %1416 = arith.addf %1386, %1415 : vector<1x2xf32>
    %1417 = arith.mulf %1398, %1416 : vector<1x2xf32>
    %1418 = arith.addf %1414, %1417 : vector<1x2xf32>
    %1419 = math.tanh %1418 : vector<1x2xf32>
    %cst_150 = arith.constant 1.000000e+00 : f32
    %1420 = vector.broadcast %cst_150 : f32 to vector<1x2xf32>
    %1421 = arith.subf %1420, %1410 : vector<1x2xf32>
    %1422 = arith.mulf %1421, %1419 : vector<1x2xf32>
    %1423 = arith.mulf %1410, %1227 : vector<1x2xf32>
    %1424 = arith.addf %1422, %1423 : vector<1x2xf32>
    %1425 = vector.broadcast %48 : f32 to vector<1x2xf32>
    %1426 = arith.mulf %1300, %1425 : vector<1x2xf32>
    %1427 = vector.broadcast %49 : f32 to vector<1x2xf32>
    %1428 = arith.mulf %1362, %1427 : vector<1x2xf32>
    %1429 = arith.addf %1426, %1428 : vector<1x2xf32>
    %1430 = vector.broadcast %50 : f32 to vector<1x2xf32>
    %1431 = arith.mulf %1424, %1430 : vector<1x2xf32>
    %1432 = arith.addf %1429, %1431 : vector<1x2xf32>
    %1433 = vector.broadcast %51 : f32 to vector<1x2xf32>
    %1434 = arith.addf %1432, %1433 : vector<1x2xf32>
    %1435 = vector.extract_strided_slice %52 {offsets = [7, 0], sizes = [1, 2], strides = [1, 1]} : vector<8x2xf32> to vector<1x2xf32>
    %1436 = vector.broadcast %9 : f32 to vector<1x2xf32>
    %1437 = arith.mulf %1300, %1436 : vector<1x2xf32>
    %1438 = vector.broadcast %18 : f32 to vector<1x2xf32>
    %1439 = arith.mulf %1300, %1438 : vector<1x2xf32>
    %1440 = vector.broadcast %27 : f32 to vector<1x2xf32>
    %1441 = arith.mulf %1300, %1440 : vector<1x2xf32>
    %1442 = vector.broadcast %10 : f32 to vector<1x2xf32>
    %1443 = arith.mulf %1362, %1442 : vector<1x2xf32>
    %1444 = arith.addf %1437, %1443 : vector<1x2xf32>
    %1445 = vector.broadcast %19 : f32 to vector<1x2xf32>
    %1446 = arith.mulf %1362, %1445 : vector<1x2xf32>
    %1447 = arith.addf %1439, %1446 : vector<1x2xf32>
    %1448 = vector.broadcast %28 : f32 to vector<1x2xf32>
    %1449 = arith.mulf %1362, %1448 : vector<1x2xf32>
    %1450 = arith.addf %1441, %1449 : vector<1x2xf32>
    %1451 = vector.broadcast %11 : f32 to vector<1x2xf32>
    %1452 = arith.mulf %1424, %1451 : vector<1x2xf32>
    %1453 = arith.addf %1444, %1452 : vector<1x2xf32>
    %1454 = vector.broadcast %20 : f32 to vector<1x2xf32>
    %1455 = arith.mulf %1424, %1454 : vector<1x2xf32>
    %1456 = arith.addf %1447, %1455 : vector<1x2xf32>
    %1457 = vector.broadcast %29 : f32 to vector<1x2xf32>
    %1458 = arith.mulf %1424, %1457 : vector<1x2xf32>
    %1459 = arith.addf %1450, %1458 : vector<1x2xf32>
    %1460 = vector.broadcast %0 : f32 to vector<1x2xf32>
    %1461 = arith.mulf %1435, %1460 : vector<1x2xf32>
    %1462 = vector.broadcast %36 : f32 to vector<1x2xf32>
    %1463 = arith.addf %1461, %1462 : vector<1x2xf32>
    %1464 = arith.addf %1463, %1453 : vector<1x2xf32>
    %cst_151 = arith.constant 0.000000e+00 : f32
    %1465 = vector.broadcast %cst_151 : f32 to vector<1x2xf32>
    %1466 = arith.subf %1465, %1464 : vector<1x2xf32>
    %1467 = math.exp %1466 : vector<1x2xf32>
    %cst_152 = arith.constant 1.000000e+00 : f32
    %1468 = vector.broadcast %cst_152 : f32 to vector<1x2xf32>
    %1469 = arith.addf %1468, %1467 : vector<1x2xf32>
    %cst_153 = arith.constant 1.000000e+00 : f32
    %1470 = vector.broadcast %cst_153 : f32 to vector<1x2xf32>
    %1471 = arith.divf %1470, %1469 : vector<1x2xf32>
    %1472 = vector.broadcast %3 : f32 to vector<1x2xf32>
    %1473 = arith.mulf %1435, %1472 : vector<1x2xf32>
    %1474 = vector.broadcast %39 : f32 to vector<1x2xf32>
    %1475 = arith.addf %1473, %1474 : vector<1x2xf32>
    %1476 = arith.addf %1475, %1456 : vector<1x2xf32>
    %cst_154 = arith.constant 0.000000e+00 : f32
    %1477 = vector.broadcast %cst_154 : f32 to vector<1x2xf32>
    %1478 = arith.subf %1477, %1476 : vector<1x2xf32>
    %1479 = math.exp %1478 : vector<1x2xf32>
    %cst_155 = arith.constant 1.000000e+00 : f32
    %1480 = vector.broadcast %cst_155 : f32 to vector<1x2xf32>
    %1481 = arith.addf %1480, %1479 : vector<1x2xf32>
    %cst_156 = arith.constant 1.000000e+00 : f32
    %1482 = vector.broadcast %cst_156 : f32 to vector<1x2xf32>
    %1483 = arith.divf %1482, %1481 : vector<1x2xf32>
    %1484 = vector.broadcast %6 : f32 to vector<1x2xf32>
    %1485 = arith.mulf %1435, %1484 : vector<1x2xf32>
    %1486 = vector.broadcast %42 : f32 to vector<1x2xf32>
    %1487 = arith.addf %1485, %1486 : vector<1x2xf32>
    %1488 = vector.broadcast %45 : f32 to vector<1x2xf32>
    %1489 = arith.addf %1459, %1488 : vector<1x2xf32>
    %1490 = arith.mulf %1471, %1489 : vector<1x2xf32>
    %1491 = arith.addf %1487, %1490 : vector<1x2xf32>
    %1492 = math.tanh %1491 : vector<1x2xf32>
    %cst_157 = arith.constant 1.000000e+00 : f32
    %1493 = vector.broadcast %cst_157 : f32 to vector<1x2xf32>
    %1494 = arith.subf %1493, %1483 : vector<1x2xf32>
    %1495 = arith.mulf %1494, %1492 : vector<1x2xf32>
    %1496 = arith.mulf %1483, %1300 : vector<1x2xf32>
    %1497 = arith.addf %1495, %1496 : vector<1x2xf32>
    %1498 = vector.broadcast %12 : f32 to vector<1x2xf32>
    %1499 = arith.mulf %1300, %1498 : vector<1x2xf32>
    %1500 = vector.broadcast %21 : f32 to vector<1x2xf32>
    %1501 = arith.mulf %1300, %1500 : vector<1x2xf32>
    %1502 = vector.broadcast %30 : f32 to vector<1x2xf32>
    %1503 = arith.mulf %1300, %1502 : vector<1x2xf32>
    %1504 = vector.broadcast %13 : f32 to vector<1x2xf32>
    %1505 = arith.mulf %1362, %1504 : vector<1x2xf32>
    %1506 = arith.addf %1499, %1505 : vector<1x2xf32>
    %1507 = vector.broadcast %22 : f32 to vector<1x2xf32>
    %1508 = arith.mulf %1362, %1507 : vector<1x2xf32>
    %1509 = arith.addf %1501, %1508 : vector<1x2xf32>
    %1510 = vector.broadcast %31 : f32 to vector<1x2xf32>
    %1511 = arith.mulf %1362, %1510 : vector<1x2xf32>
    %1512 = arith.addf %1503, %1511 : vector<1x2xf32>
    %1513 = vector.broadcast %14 : f32 to vector<1x2xf32>
    %1514 = arith.mulf %1424, %1513 : vector<1x2xf32>
    %1515 = arith.addf %1506, %1514 : vector<1x2xf32>
    %1516 = vector.broadcast %23 : f32 to vector<1x2xf32>
    %1517 = arith.mulf %1424, %1516 : vector<1x2xf32>
    %1518 = arith.addf %1509, %1517 : vector<1x2xf32>
    %1519 = vector.broadcast %32 : f32 to vector<1x2xf32>
    %1520 = arith.mulf %1424, %1519 : vector<1x2xf32>
    %1521 = arith.addf %1512, %1520 : vector<1x2xf32>
    %1522 = vector.broadcast %1 : f32 to vector<1x2xf32>
    %1523 = arith.mulf %1435, %1522 : vector<1x2xf32>
    %1524 = vector.broadcast %37 : f32 to vector<1x2xf32>
    %1525 = arith.addf %1523, %1524 : vector<1x2xf32>
    %1526 = arith.addf %1525, %1515 : vector<1x2xf32>
    %cst_158 = arith.constant 0.000000e+00 : f32
    %1527 = vector.broadcast %cst_158 : f32 to vector<1x2xf32>
    %1528 = arith.subf %1527, %1526 : vector<1x2xf32>
    %1529 = math.exp %1528 : vector<1x2xf32>
    %cst_159 = arith.constant 1.000000e+00 : f32
    %1530 = vector.broadcast %cst_159 : f32 to vector<1x2xf32>
    %1531 = arith.addf %1530, %1529 : vector<1x2xf32>
    %cst_160 = arith.constant 1.000000e+00 : f32
    %1532 = vector.broadcast %cst_160 : f32 to vector<1x2xf32>
    %1533 = arith.divf %1532, %1531 : vector<1x2xf32>
    %1534 = vector.broadcast %4 : f32 to vector<1x2xf32>
    %1535 = arith.mulf %1435, %1534 : vector<1x2xf32>
    %1536 = vector.broadcast %40 : f32 to vector<1x2xf32>
    %1537 = arith.addf %1535, %1536 : vector<1x2xf32>
    %1538 = arith.addf %1537, %1518 : vector<1x2xf32>
    %cst_161 = arith.constant 0.000000e+00 : f32
    %1539 = vector.broadcast %cst_161 : f32 to vector<1x2xf32>
    %1540 = arith.subf %1539, %1538 : vector<1x2xf32>
    %1541 = math.exp %1540 : vector<1x2xf32>
    %cst_162 = arith.constant 1.000000e+00 : f32
    %1542 = vector.broadcast %cst_162 : f32 to vector<1x2xf32>
    %1543 = arith.addf %1542, %1541 : vector<1x2xf32>
    %cst_163 = arith.constant 1.000000e+00 : f32
    %1544 = vector.broadcast %cst_163 : f32 to vector<1x2xf32>
    %1545 = arith.divf %1544, %1543 : vector<1x2xf32>
    %1546 = vector.broadcast %7 : f32 to vector<1x2xf32>
    %1547 = arith.mulf %1435, %1546 : vector<1x2xf32>
    %1548 = vector.broadcast %43 : f32 to vector<1x2xf32>
    %1549 = arith.addf %1547, %1548 : vector<1x2xf32>
    %1550 = vector.broadcast %46 : f32 to vector<1x2xf32>
    %1551 = arith.addf %1521, %1550 : vector<1x2xf32>
    %1552 = arith.mulf %1533, %1551 : vector<1x2xf32>
    %1553 = arith.addf %1549, %1552 : vector<1x2xf32>
    %1554 = math.tanh %1553 : vector<1x2xf32>
    %cst_164 = arith.constant 1.000000e+00 : f32
    %1555 = vector.broadcast %cst_164 : f32 to vector<1x2xf32>
    %1556 = arith.subf %1555, %1545 : vector<1x2xf32>
    %1557 = arith.mulf %1556, %1554 : vector<1x2xf32>
    %1558 = arith.mulf %1545, %1362 : vector<1x2xf32>
    %1559 = arith.addf %1557, %1558 : vector<1x2xf32>
    %1560 = vector.broadcast %15 : f32 to vector<1x2xf32>
    %1561 = arith.mulf %1300, %1560 : vector<1x2xf32>
    %1562 = vector.broadcast %24 : f32 to vector<1x2xf32>
    %1563 = arith.mulf %1300, %1562 : vector<1x2xf32>
    %1564 = vector.broadcast %33 : f32 to vector<1x2xf32>
    %1565 = arith.mulf %1300, %1564 : vector<1x2xf32>
    %1566 = vector.broadcast %16 : f32 to vector<1x2xf32>
    %1567 = arith.mulf %1362, %1566 : vector<1x2xf32>
    %1568 = arith.addf %1561, %1567 : vector<1x2xf32>
    %1569 = vector.broadcast %25 : f32 to vector<1x2xf32>
    %1570 = arith.mulf %1362, %1569 : vector<1x2xf32>
    %1571 = arith.addf %1563, %1570 : vector<1x2xf32>
    %1572 = vector.broadcast %34 : f32 to vector<1x2xf32>
    %1573 = arith.mulf %1362, %1572 : vector<1x2xf32>
    %1574 = arith.addf %1565, %1573 : vector<1x2xf32>
    %1575 = vector.broadcast %17 : f32 to vector<1x2xf32>
    %1576 = arith.mulf %1424, %1575 : vector<1x2xf32>
    %1577 = arith.addf %1568, %1576 : vector<1x2xf32>
    %1578 = vector.broadcast %26 : f32 to vector<1x2xf32>
    %1579 = arith.mulf %1424, %1578 : vector<1x2xf32>
    %1580 = arith.addf %1571, %1579 : vector<1x2xf32>
    %1581 = vector.broadcast %35 : f32 to vector<1x2xf32>
    %1582 = arith.mulf %1424, %1581 : vector<1x2xf32>
    %1583 = arith.addf %1574, %1582 : vector<1x2xf32>
    %1584 = vector.broadcast %2 : f32 to vector<1x2xf32>
    %1585 = arith.mulf %1435, %1584 : vector<1x2xf32>
    %1586 = vector.broadcast %38 : f32 to vector<1x2xf32>
    %1587 = arith.addf %1585, %1586 : vector<1x2xf32>
    %1588 = arith.addf %1587, %1577 : vector<1x2xf32>
    %cst_165 = arith.constant 0.000000e+00 : f32
    %1589 = vector.broadcast %cst_165 : f32 to vector<1x2xf32>
    %1590 = arith.subf %1589, %1588 : vector<1x2xf32>
    %1591 = math.exp %1590 : vector<1x2xf32>
    %cst_166 = arith.constant 1.000000e+00 : f32
    %1592 = vector.broadcast %cst_166 : f32 to vector<1x2xf32>
    %1593 = arith.addf %1592, %1591 : vector<1x2xf32>
    %cst_167 = arith.constant 1.000000e+00 : f32
    %1594 = vector.broadcast %cst_167 : f32 to vector<1x2xf32>
    %1595 = arith.divf %1594, %1593 : vector<1x2xf32>
    %1596 = vector.broadcast %5 : f32 to vector<1x2xf32>
    %1597 = arith.mulf %1435, %1596 : vector<1x2xf32>
    %1598 = vector.broadcast %41 : f32 to vector<1x2xf32>
    %1599 = arith.addf %1597, %1598 : vector<1x2xf32>
    %1600 = arith.addf %1599, %1580 : vector<1x2xf32>
    %cst_168 = arith.constant 0.000000e+00 : f32
    %1601 = vector.broadcast %cst_168 : f32 to vector<1x2xf32>
    %1602 = arith.subf %1601, %1600 : vector<1x2xf32>
    %1603 = math.exp %1602 : vector<1x2xf32>
    %cst_169 = arith.constant 1.000000e+00 : f32
    %1604 = vector.broadcast %cst_169 : f32 to vector<1x2xf32>
    %1605 = arith.addf %1604, %1603 : vector<1x2xf32>
    %cst_170 = arith.constant 1.000000e+00 : f32
    %1606 = vector.broadcast %cst_170 : f32 to vector<1x2xf32>
    %1607 = arith.divf %1606, %1605 : vector<1x2xf32>
    %1608 = vector.broadcast %8 : f32 to vector<1x2xf32>
    %1609 = arith.mulf %1435, %1608 : vector<1x2xf32>
    %1610 = vector.broadcast %44 : f32 to vector<1x2xf32>
    %1611 = arith.addf %1609, %1610 : vector<1x2xf32>
    %1612 = vector.broadcast %47 : f32 to vector<1x2xf32>
    %1613 = arith.addf %1583, %1612 : vector<1x2xf32>
    %1614 = arith.mulf %1595, %1613 : vector<1x2xf32>
    %1615 = arith.addf %1611, %1614 : vector<1x2xf32>
    %1616 = math.tanh %1615 : vector<1x2xf32>
    %cst_171 = arith.constant 1.000000e+00 : f32
    %1617 = vector.broadcast %cst_171 : f32 to vector<1x2xf32>
    %1618 = arith.subf %1617, %1607 : vector<1x2xf32>
    %1619 = arith.mulf %1618, %1616 : vector<1x2xf32>
    %1620 = arith.mulf %1607, %1424 : vector<1x2xf32>
    %1621 = arith.addf %1619, %1620 : vector<1x2xf32>
    %1622 = vector.broadcast %48 : f32 to vector<1x2xf32>
    %1623 = arith.mulf %1497, %1622 : vector<1x2xf32>
    %1624 = vector.broadcast %49 : f32 to vector<1x2xf32>
    %1625 = arith.mulf %1559, %1624 : vector<1x2xf32>
    %1626 = arith.addf %1623, %1625 : vector<1x2xf32>
    %1627 = vector.broadcast %50 : f32 to vector<1x2xf32>
    %1628 = arith.mulf %1621, %1627 : vector<1x2xf32>
    %1629 = arith.addf %1626, %1628 : vector<1x2xf32>
    %1630 = vector.broadcast %51 : f32 to vector<1x2xf32>
    %1631 = arith.addf %1629, %1630 : vector<1x2xf32>
    %1632 = tpu.concatenate %252, %449, %646, %843, %1040, %1237, %1434, %1631 in 0 : vector<1x2xf32>, vector<1x2xf32>, vector<1x2xf32>, vector<1x2xf32>, vector<1x2xf32>, vector<1x2xf32>, vector<1x2xf32>, vector<1x2xf32> -> vector<8x2xf32>
    %c0_172 = arith.constant 0 : index
    %c0_173 = arith.constant 0 : index
    %1633 = vector.load %arg3[%c0_172, %c0_173] : memref<8x2xf32, #tpu.memory_space<vmem>>, vector<8x2xf32>
    tpu.vector_store %arg3[%c0_172, %c0_173], %1632 {strides = array<i32>} : memref<8x2xf32, #tpu.memory_space<vmem>>, vector<8x2xf32>,
    return
  }
  func.func @transform_0(%arg0: i32) -> (i32, i32) {
    %c0_i32 = arith.constant 0 : i32
    %c0_i32_0 = arith.constant 0 : i32
    return %c0_i32, %arg0 : i32, i32
  }
  func.func @transform_1(%arg0: i32) -> i32 {
    %c0_i32 = arith.constant 0 : i32
    %c0_i32_0 = arith.constant 0 : i32
    return %c0_i32 : i32
  }
  func.func @transform_2(%arg0: i32) -> (i32, i32) {
    %c0_i32 = arith.constant 0 : i32
    %c0_i32_0 = arith.constant 0 : i32
    return %c0_i32, %arg0 : i32, i32
  }
}

</mosaic_0001>

<llo_original>
// kernel: operator_approximator_forward.1
$region0: #{operator_approximator_forward.1}
  #allocation0 [shape = 'u32[]', space=smem, size = 0x4, offset = 0x4, fixed_abs, tag = 'smem constant byte address 0x4 - core index']
  #allocation1 [shape = 'u32[144,128]{1,0:T(1,128)}', space=vmem, size = 0x12000, scoped, tag = 'internal scratch']
  %s0 = inlined_call_operand.vmem [shape: f32[8,2], index: 0, kind: input, shape index: {}]
  %s1 = inlined_call_operand.vmem [shape: f32[52], index: 1, kind: input, shape index: {}]
  %s2 = inlined_call_operand.vmem [shape: f32[8,2], index: 2, kind: output, shape index: {}]
  %s3 = sld [smem:[#allocation0]]
  $region22: #{operator_approximator_forward.1} parent=0
    _
  %s5 = ssub.s32 1, %s3
  %s6 = scalar_select 0, %s5, %s3
  $region1: #{operator_approximator_forward.1} parent=0
    #allocation2 [shape = 'u8[512]{0}', space=smem, size = 0x200, scoped, tag = 'input window, operand 1, single buffered']
    #allocation3 [shape = 's32[1]{0}', space=sflag, size = 0x4, scoped, tag = 'scoped memory for operator_approximator_forward.1']
    %7 = vsyncpa [#allocation3], 0
    // Predicated region
    $region2: #{operator_approximator_forward.1} parent=1 // pred_check
      _
    $region3: #{operator_approximator_forward.1} parent=1 // pred_check_branch
      %9 = sbr.rel (0) target = $region5
    $region4: #{operator_approximator_forward.1} parent=1 // pred_region
      _
    $region5: #{operator_approximator_forward.1} parent=1 // pred_fallthru
      _
    // Predicated region
    $region6: #{operator_approximator_forward.1} parent=1 // pred_check
      _
    $region7: #{operator_approximator_forward.1} parent=1 // pred_check_branch
      %11 = sbr.rel (0) target = $region9
    $region8: #{operator_approximator_forward.1} parent=1 // pred_region
      %s13 = ssub.s32 16, 16
      %14 = vsyncadd [#allocation3], %s13
      %s16 = sshll.u32 %s1, 4
      %s17 = int_to_ptr.vmem [resolvable:$true] %s16
      %19 = dma.vmem_to_smem %s17, 16, [#allocation2], [#allocation3]
    $region9: #{operator_approximator_forward.1} parent=1 // pred_fallthru
      _
    // Predicated region
    $region10: #{operator_approximator_forward.1} parent=1 // pred_check
      _
    $region11: #{operator_approximator_forward.1} parent=1 // pred_check_branch
      %21 = sbr.rel (0) target = $region13
    $region12: #{operator_approximator_forward.1} parent=1 // pred_region
      %22 = dma.done [#allocation3], 16
    $region13: #{operator_approximator_forward.1} parent=1 // pred_fallthru
      _
    %23 = sfence
    %s24 = sld [smem:[#allocation2]]
    %s25 = sld [smem:[#allocation2 + $0x1]]
    %s26 = sld [smem:[#allocation2 + $0x2]]
    %s27 = sld [smem:[#allocation2 + $0x3]]
    %s28 = sld [smem:[#allocation2 + $0x4]]
    %s29 = sld [smem:[#allocation2 + $0x5]]
    %s30 = sld [smem:[#allocation2 + $0x6]]
    %s31 = sld [smem:[#allocation2 + $0x7]]
    %s32 = sld [smem:[#allocation2 + $0x8]]
    %s33 = sld [smem:[#allocation2 + $0x9]]
    %s34 = sld [smem:[#allocation2 + $0xa]]
    %s35 = sld [smem:[#allocation2 + $0xb]]
    %s36 = sld [smem:[#allocation2 + $0xc]]
    %s37 = sld [smem:[#allocation2 + $0xd]]
    %s38 = sld [smem:[#allocation2 + $0xe]]
    %s39 = sld [smem:[#allocation2 + $0xf]]
    %s40 = sld [smem:[#allocation2 + $0x10]]
    %s41 = sld [smem:[#allocation2 + $0x11]]
    %s42 = sld [smem:[#allocation2 + $0x12]]
    %s43 = sld [smem:[#allocation2 + $0x13]]
    %s44 = sld [smem:[#allocation2 + $0x14]]
    %s45 = sld [smem:[#allocation2 + $0x15]]
    %s46 = sld [smem:[#allocation2 + $0x16]]
    %s47 = sld [smem:[#allocation2 + $0x17]]
    %s48 = sld [smem:[#allocation2 + $0x18]]
    %s49 = sld [smem:[#allocation2 + $0x19]]
    %s50 = sld [smem:[#allocation2 + $0x1a]]
    %s51 = sld [smem:[#allocation2 + $0x1b]]
    %s52 = sld [smem:[#allocation2 + $0x1c]]
    %s53 = sld [smem:[#allocation2 + $0x1d]]
    %s54 = sld [smem:[#allocation2 + $0x1e]]
    %s55 = sld [smem:[#allocation2 + $0x1f]]
    %s56 = sld [smem:[#allocation2 + $0x20]]
    %s57 = sld [smem:[#allocation2 + $0x21]]
    %s58 = sld [smem:[#allocation2 + $0x22]]
    %s59 = sld [smem:[#allocation2 + $0x23]]
    %s60 = sld [smem:[#allocation2 + $0x24]]
    %s61 = sld [smem:[#allocation2 + $0x25]]
    %s62 = sld [smem:[#allocation2 + $0x26]]
    %s63 = sld [smem:[#allocation2 + $0x27]]
    %s64 = sld [smem:[#allocation2 + $0x28]]
    %s65 = sld [smem:[#allocation2 + $0x29]]
    %s66 = sld [smem:[#allocation2 + $0x2a]]
    %s67 = sld [smem:[#allocation2 + $0x2b]]
    %s68 = sld [smem:[#allocation2 + $0x2c]]
    %s69 = sld [smem:[#allocation2 + $0x2d]]
    %s70 = sld [smem:[#allocation2 + $0x2e]]
    %s71 = sld [smem:[#allocation2 + $0x2f]]
    %s72 = sld [smem:[#allocation2 + $0x30]]
    %s73 = sld [smem:[#allocation2 + $0x31]]
    %s74 = sld [smem:[#allocation2 + $0x32]]
    %s75 = sld [smem:[#allocation2 + $0x33]]
    %v76 = vld [vmem:[%s0] sm:$0xff]
    %v77 = vstv %s33
    %v78 = vmul.f32 %v77, 0.0
    %v79 = vstv %s42
    %v80 = vmul.f32 %v79, 0.0
    %v81 = vstv %s51
    %v82 = vmul.f32 %v81, 0.0
    %v83 = vstv %s34
    %v84 = vmul.f32 %v83, 0.0
    %v85 = vadd.f32 %v78, %v84
    %v86 = vstv %s43
    %v87 = vmul.f32 %v86, 0.0
    %v88 = vadd.f32 %v80, %v87
    %v89 = vstv %s52
    %v90 = vmul.f32 %v89, 0.0
    %v91 = vadd.f32 %v82, %v90
    %v92 = vstv %s35
    %v93 = vmul.f32 %v92, 0.0
    %v94 = vadd.f32 %v85, %v93
    %v95 = vstv %s44
    %v96 = vmul.f32 %v95, 0.0
    %v97 = vadd.f32 %v88, %v96
    %v98 = vstv %s53
    %v99 = vmul.f32 %v98, 0.0
    %v100 = vadd.f32 %v91, %v99
    %v101 = vstv %s24
    %v102 = vmul.f32 %v76, %v101
    %v103 = vstv %s60
    %v104 = vadd.f32 %v102, %v103
    %v105 = vadd.f32 %v104, %v94
    %v106 = vsub.f32 0.0, %v105
    %v107 = vmul.f32 %v106, 1.442695
    %v108 = vpow.pop %v107
    %v109 = vadd.f32 %v108, 1.0
    %v110 = vrcp.pop %v109
    %v111 = vmul.f32 1.0, %v110
    %v112 = vstv %s27
    %v113 = vmul.f32 %v76, %v112
    %v114 = vstv %s63
    %v115 = vadd.f32 %v113, %v114
    %v116 = vadd.f32 %v115, %v97
    %v117 = vsub.f32 0.0, %v116
    %v118 = vmul.f32 %v117, 1.442695
    %v119 = vpow.pop %v118
    %v120 = vadd.f32 %v119, 1.0
    %v121 = vrcp.pop %v120
    %v122 = vmul.f32 1.0, %v121
    %v123 = vstv %s30
    %v124 = vmul.f32 %v76, %v123
    %v125 = vstv %s66
    %v126 = vadd.f32 %v124, %v125
    %v127 = vstv %s69
    %v128 = vadd.f32 %v100, %v127
    %v129 = vmul.f32 %v111, %v128
    %v130 = vadd.f32 %v126, %v129
    %v131 = vtanh.pop %v130
    %v132 = vsub.f32 1.0, %v122
    %v133 = vmul.f32 %v132, %v131
    %v134 = vmul.f32 %v122, 0.0
    %v135 = vadd.f32 %v133, %v134
    %v136 = vstv %s36
    %v137 = vmul.f32 %v136, 0.0
    %v138 = vstv %s45
    %v139 = vmul.f32 %v138, 0.0
    %v140 = vstv %s54
    %v141 = vmul.f32 %v140, 0.0
    %v142 = vstv %s37
    %v143 = vmul.f32 %v142, 0.0
    %v144 = vadd.f32 %v137, %v143
    %v145 = vstv %s46
    %v146 = vmul.f32 %v145, 0.0
    %v147 = vadd.f32 %v139, %v146
    %v148 = vstv %s55
    %v149 = vmul.f32 %v148, 0.0
    %v150 = vadd.f32 %v141, %v149
    %v151 = vstv %s38
    %v152 = vmul.f32 %v151, 0.0
    %v153 = vadd.f32 %v144, %v152
    %v154 = vstv %s47
    %v155 = vmul.f32 %v154, 0.0
    %v156 = vadd.f32 %v147, %v155
    %v157 = vstv %s56
    %v158 = vmul.f32 %v157, 0.0
    %v159 = vadd.f32 %v150, %v158
    %v160 = vstv %s25
    %v161 = vmul.f32 %v76, %v160
    %v162 = vstv %s61
    %v163 = vadd.f32 %v161, %v162
    %v164 = vadd.f32 %v163, %v153
    %v165 = vsub.f32 0.0, %v164
    %v166 = vmul.f32 %v165, 1.442695
    %v167 = vpow.pop %v166
    %v168 = vadd.f32 %v167, 1.0
    %v169 = vrcp.pop %v168
    %v170 = vmul.f32 1.0, %v169
    %v171 = vstv %s28
    %v172 = vmul.f32 %v76, %v171
    %v173 = vstv %s64
    %v174 = vadd.f32 %v172, %v173
    %v175 = vadd.f32 %v174, %v156
    %v176 = vsub.f32 0.0, %v175
    %v177 = vmul.f32 %v176, 1.442695
    %v178 = vpow.pop %v177
    %v179 = vadd.f32 %v178, 1.0
    %v180 = vrcp.pop %v179
    %v181 = vmul.f32 1.0, %v180
    %v182 = vstv %s31
    %v183 = vmul.f32 %v76, %v182
    %v184 = vstv %s67
    %v185 = vadd.f32 %v183, %v184
    %v186 = vstv %s70
    %v187 = vadd.f32 %v159, %v186
    %v188 = vmul.f32 %v170, %v187
    %v189 = vadd.f32 %v185, %v188
    %v190 = vtanh.pop %v189
    %v191 = vsub.f32 1.0, %v181
    %v192 = vmul.f32 %v191, %v190
    %v193 = vmul.f32 %v181, 0.0
    %v194 = vadd.f32 %v192, %v193
    %v195 = vstv %s39
    %v196 = vmul.f32 %v195, 0.0
    %v197 = vstv %s48
    %v198 = vmul.f32 %v197, 0.0
    %v199 = vstv %s57
    %v200 = vmul.f32 %v199, 0.0
    %v201 = vstv %s40
    %v202 = vmul.f32 %v201, 0.0
    %v203 = vadd.f32 %v196, %v202
    %v204 = vstv %s49
    %v205 = vmul.f32 %v204, 0.0
    %v206 = vadd.f32 %v198, %v205
    %v207 = vstv %s58
    %v208 = vmul.f32 %v207, 0.0
    %v209 = vadd.f32 %v200, %v208
    %v210 = vstv %s41
    %v211 = vmul.f32 %v210, 0.0
    %v212 = vadd.f32 %v203, %v211
    %v213 = vstv %s50
    %v214 = vmul.f32 %v213, 0.0
    %v215 = vadd.f32 %v206, %v214
    %v216 = vstv %s59
    %v217 = vmul.f32 %v216, 0.0
    %v218 = vadd.f32 %v209, %v217
    %v219 = vstv %s26
    %v220 = vmul.f32 %v76, %v219
    %v221 = vstv %s62
    %v222 = vadd.f32 %v220, %v221
    %v223 = vadd.f32 %v222, %v212
    %v224 = vsub.f32 0.0, %v223
    %v225 = vmul.f32 %v224, 1.442695
    %v226 = vpow.pop %v225
    %v227 = vadd.f32 %v226, 1.0
    %v228 = vrcp.pop %v227
    %v229 = vmul.f32 1.0, %v228
    %v230 = vstv %s29
    %v231 = vmul.f32 %v76, %v230
    %v232 = vstv %s65
    %v233 = vadd.f32 %v231, %v232
    %v234 = vadd.f32 %v233, %v215
    %v235 = vsub.f32 0.0, %v234
    %v236 = vmul.f32 %v235, 1.442695
    %v237 = vpow.pop %v236
    %v238 = vadd.f32 %v237, 1.0
    %v239 = vrcp.pop %v238
    %v240 = vmul.f32 1.0, %v239
    %v241 = vstv %s32
    %v242 = vmul.f32 %v76, %v241
    %v243 = vstv %s68
    %v244 = vadd.f32 %v242, %v243
    %v245 = vstv %s71
    %v246 = vadd.f32 %v218, %v245
    %v247 = vmul.f32 %v229, %v246
    %v248 = vadd.f32 %v244, %v247
    %v249 = vtanh.pop %v248
    %v250 = vsub.f32 1.0, %v240
    %v251 = vmul.f32 %v250, %v249
    %v252 = vmul.f32 %v240, 0.0
    %v253 = vadd.f32 %v251, %v252
    %v254 = vstv %s72
    %v255 = vmul.f32 %v135, %v254
    %v256 = vstv %s73
    %v257 = vmul.f32 %v194, %v256
    %v258 = vadd.f32 %v255, %v257
    %v259 = vstv %s74
    %v260 = vmul.f32 %v253, %v259
    %v261 = vadd.f32 %v258, %v260
    %v262 = vstv %s75
    %v263 = vadd.f32 %v261, %v262
    %v264 = vmul.f32 %v135, %v77
    %v265 = vmul.f32 %v135, %v79
    %v266 = vmul.f32 %v135, %v81
    %v267 = vmul.f32 %v194, %v83
    %v268 = vadd.f32 %v264, %v267
    %v269 = vmul.f32 %v194, %v86
    %v270 = vadd.f32 %v265, %v269
    %v271 = vmul.f32 %v194, %v89
    %v272 = vadd.f32 %v266, %v271
    %v273 = vmul.f32 %v253, %v92
    %v274 = vadd.f32 %v268, %v273
    %v275 = vmul.f32 %v253, %v95
    %v276 = vadd.f32 %v270, %v275
    %v277 = vmul.f32 %v253, %v98
    %v278 = vadd.f32 %v272, %v277
    %v280 = vrot.slane %v274, 7
    %v282 = vadd.f32 %v104, %v280
    %v283 = vsub.f32 0.0, %v282
    %v284 = vmul.f32 %v283, 1.442695
    %v285 = vpow.pop %v284
    %v286 = vadd.f32 %v285, 1.0
    %v287 = vrcp.pop %v286
    %v288 = vmul.f32 1.0, %v287
    %v290 = vrot.slane %v276, 7
    %v292 = vadd.f32 %v115, %v290
    %v293 = vsub.f32 0.0, %v292
    %v294 = vmul.f32 %v293, 1.442695
    %v295 = vpow.pop %v294
    %v296 = vadd.f32 %v295, 1.0
    %v297 = vrcp.pop %v296
    %v298 = vmul.f32 1.0, %v297
    %v299 = vadd.f32 %v278, %v127
    %v301 = vrot.slane %v299, 7
    %v303 = vmul.f32 %v288, %v301
    %v304 = vadd.f32 %v126, %v303
    %v305 = vtanh.pop %v304
    %v306 = vsub.f32 1.0, %v298
    %v307 = vmul.f32 %v306, %v305
    %v309 = vrot.slane %v135, 7
    %v311 = vmul.f32 %v298, %v309
    %v312 = vadd.f32 %v307, %v311
    %v313 = vmul.f32 %v135, %v136
    %v314 = vmul.f32 %v135, %v138
    %v315 = vmul.f32 %v135, %v140
    %v316 = vmul.f32 %v194, %v142
    %v317 = vadd.f32 %v313, %v316
    %v318 = vmul.f32 %v194, %v145
    %v319 = vadd.f32 %v314, %v318
    %v320 = vmul.f32 %v194, %v148
    %v321 = vadd.f32 %v315, %v320
    %v322 = vmul.f32 %v253, %v151
    %v323 = vadd.f32 %v317, %v322
    %v324 = vmul.f32 %v253, %v154
    %v325 = vadd.f32 %v319, %v324
    %v326 = vmul.f32 %v253, %v157
    %v327 = vadd.f32 %v321, %v326
    %v329 = vrot.slane %v323, 7
    %v331 = vadd.f32 %v163, %v329
    %v332 = vsub.f32 0.0, %v331
    %v333 = vmul.f32 %v332, 1.442695
    %v334 = vpow.pop %v333
    %v335 = vadd.f32 %v334, 1.0
    %v336 = vrcp.pop %v335
    %v337 = vmul.f32 1.0, %v336
    %v339 = vrot.slane %v325, 7
    %v341 = vadd.f32 %v174, %v339
    %v342 = vsub.f32 0.0, %v341
    %v343 = vmul.f32 %v342, 1.442695
    %v344 = vpow.pop %v343
    %v345 = vadd.f32 %v344, 1.0
    %v346 = vrcp.pop %v345
    %v347 = vmul.f32 1.0, %v346
    %v348 = vadd.f32 %v327, %v186
    %v350 = vrot.slane %v348, 7
    %v352 = vmul.f32 %v337, %v350
    %v353 = vadd.f32 %v185, %v352
    %v354 = vtanh.pop %v353
    %v355 = vsub.f32 1.0, %v347
    %v356 = vmul.f32 %v355, %v354
    %v358 = vrot.slane %v194, 7
    %v360 = vmul.f32 %v347, %v358
    %v361 = vadd.f32 %v356, %v360
    %v362 = vmul.f32 %v135, %v195
    %v363 = vmul.f32 %v135, %v197
    %v364 = vmul.f32 %v135, %v199
    %v365 = vmul.f32 %v194, %v201
    %v366 = vadd.f32 %v362, %v365
    %v367 = vmul.f32 %v194, %v204
    %v368 = vadd.f32 %v363, %v367
    %v369 = vmul.f32 %v194, %v207
    %v370 = vadd.f32 %v364, %v369
    %v371 = vmul.f32 %v253, %v210
    %v372 = vadd.f32 %v366, %v371
    %v373 = vmul.f32 %v253, %v213
    %v374 = vadd.f32 %v368, %v373
    %v375 = vmul.f32 %v253, %v216
    %v376 = vadd.f32 %v370, %v375
    %v378 = vrot.slane %v372, 7
    %v380 = vadd.f32 %v222, %v378
    %v381 = vsub.f32 0.0, %v380
    %v382 = vmul.f32 %v381, 1.442695
    %v383 = vpow.pop %v382
    %v384 = vadd.f32 %v383, 1.0
    %v385 = vrcp.pop %v384
    %v386 = vmul.f32 1.0, %v385
    %v388 = vrot.slane %v374, 7
    %v390 = vadd.f32 %v233, %v388
    %v391 = vsub.f32 0.0, %v390
    %v392 = vmul.f32 %v391, 1.442695
    %v393 = vpow.pop %v392
    %v394 = vadd.f32 %v393, 1.0
    %v395 = vrcp.pop %v394
    %v396 = vmul.f32 1.0, %v395
    %v397 = vadd.f32 %v376, %v245
    %v399 = vrot.slane %v397, 7
    %v401 = vmul.f32 %v386, %v399
    %v402 = vadd.f32 %v244, %v401
    %v403 = vtanh.pop %v402
    %v404 = vsub.f32 1.0, %v396
    %v405 = vmul.f32 %v404, %v403
    %v407 = vrot.slane %v253, 7
    %v409 = vmul.f32 %v396, %v407
    %v410 = vadd.f32 %v405, %v409
    %v411 = vmul.f32 %v312, %v254
    %v412 = vmul.f32 %v361, %v256
    %v413 = vadd.f32 %v411, %v412
    %v414 = vmul.f32 %v410, %v259
    %v415 = vadd.f32 %v413, %v414
    %v416 = vadd.f32 %v415, %v262
    %v417 = vmul.f32 %v312, %v77
    %v418 = vmul.f32 %v312, %v79
    %v419 = vmul.f32 %v312, %v81
    %v420 = vmul.f32 %v361, %v83
    %v421 = vadd.f32 %v417, %v420
    %v422 = vmul.f32 %v361, %v86
    %v423 = vadd.f32 %v418, %v422
    %v424 = vmul.f32 %v361, %v89
    %v425 = vadd.f32 %v419, %v424
    %v426 = vmul.f32 %v410, %v92
    %v427 = vadd.f32 %v421, %v426
    %v428 = vmul.f32 %v410, %v95
    %v429 = vadd.f32 %v423, %v428
    %v430 = vmul.f32 %v410, %v98
    %v431 = vadd.f32 %v425, %v430
    %v433 = vrot.slane %v427, 7
    %v435 = vadd.f32 %v104, %v433
    %v436 = vsub.f32 0.0, %v435
    %v437 = vmul.f32 %v436, 1.442695
    %v438 = vpow.pop %v437
    %v439 = vadd.f32 %v438, 1.0
    %v440 = vrcp.pop %v439
    %v441 = vmul.f32 1.0, %v440
    %v443 = vrot.slane %v429, 7
    %v445 = vadd.f32 %v115, %v443
    %v446 = vsub.f32 0.0, %v445
    %v447 = vmul.f32 %v446, 1.442695
    %v448 = vpow.pop %v447
    %v449 = vadd.f32 %v448, 1.0
    %v450 = vrcp.pop %v449
    %v451 = vmul.f32 1.0, %v450
    %v452 = vadd.f32 %v431, %v127
    %v454 = vrot.slane %v452, 7
    %v456 = vmul.f32 %v441, %v454
    %v457 = vadd.f32 %v126, %v456
    %v458 = vtanh.pop %v457
    %v459 = vsub.f32 1.0, %v451
    %v460 = vmul.f32 %v459, %v458
    %v462 = vrot.slane %v312, 7
    %v464 = vmul.f32 %v451, %v462
    %v465 = vadd.f32 %v460, %v464
    %v466 = vmul.f32 %v312, %v136
    %v467 = vmul.f32 %v312, %v138
    %v468 = vmul.f32 %v312, %v140
    %v469 = vmul.f32 %v361, %v142
    %v470 = vadd.f32 %v466, %v469
    %v471 = vmul.f32 %v361, %v145
    %v472 = vadd.f32 %v467, %v471
    %v473 = vmul.f32 %v361, %v148
    %v474 = vadd.f32 %v468, %v473
    %v475 = vmul.f32 %v410, %v151
    %v476 = vadd.f32 %v470, %v475
    %v477 = vmul.f32 %v410, %v154
    %v478 = vadd.f32 %v472, %v477
    %v479 = vmul.f32 %v410, %v157
    %v480 = vadd.f32 %v474, %v479
    %v482 = vrot.slane %v476, 7
    %v484 = vadd.f32 %v163, %v482
    %v485 = vsub.f32 0.0, %v484
    %v486 = vmul.f32 %v485, 1.442695
    %v487 = vpow.pop %v486
    %v488 = vadd.f32 %v487, 1.0
    %v489 = vrcp.pop %v488
    %v490 = vmul.f32 1.0, %v489
    %v492 = vrot.slane %v478, 7
    %v494 = vadd.f32 %v174, %v492
    %v495 = vsub.f32 0.0, %v494
    %v496 = vmul.f32 %v495, 1.442695
    %v497 = vpow.pop %v496
    %v498 = vadd.f32 %v497, 1.0
    %v499 = vrcp.pop %v498
    %v500 = vmul.f32 1.0, %v499
    %v501 = vadd.f32 %v480, %v186
    %v503 = vrot.slane %v501, 7
    %v505 = vmul.f32 %v490, %v503
    %v506 = vadd.f32 %v185, %v505
    %v507 = vtanh.pop %v506
    %v508 = vsub.f32 1.0, %v500
    %v509 = vmul.f32 %v508, %v507
    %v511 = vrot.slane %v361, 7
    %v513 = vmul.f32 %v500, %v511
    %v514 = vadd.f32 %v509, %v513
    %v515 = vmul.f32 %v312, %v195
    %v516 = vmul.f32 %v312, %v197
    %v517 = vmul.f32 %v312, %v199
    %v518 = vmul.f32 %v361, %v201
    %v519 = vadd.f32 %v515, %v518
    %v520 = vmul.f32 %v361, %v204
    %v521 = vadd.f32 %v516, %v520
    %v522 = vmul.f32 %v361, %v207
    %v523 = vadd.f32 %v517, %v522
    %v524 = vmul.f32 %v410, %v210
    %v525 = vadd.f32 %v519, %v524
    %v526 = vmul.f32 %v410, %v213
    %v527 = vadd.f32 %v521, %v526
    %v528 = vmul.f32 %v410, %v216
    %v529 = vadd.f32 %v523, %v528
    %v531 = vrot.slane %v525, 7
    %v533 = vadd.f32 %v222, %v531
    %v534 = vsub.f32 0.0, %v533
    %v535 = vmul.f32 %v534, 1.442695
    %v536 = vpow.pop %v535
    %v537 = vadd.f32 %v536, 1.0
    %v538 = vrcp.pop %v537
    %v539 = vmul.f32 1.0, %v538
    %v541 = vrot.slane %v527, 7
    %v543 = vadd.f32 %v233, %v541
    %v544 = vsub.f32 0.0, %v543
    %v545 = vmul.f32 %v544, 1.442695
    %v546 = vpow.pop %v545
    %v547 = vadd.f32 %v546, 1.0
    %v548 = vrcp.pop %v547
    %v549 = vmul.f32 1.0, %v548
    %v550 = vadd.f32 %v529, %v245
    %v552 = vrot.slane %v550, 7
    %v554 = vmul.f32 %v539, %v552
    %v555 = vadd.f32 %v244, %v554
    %v556 = vtanh.pop %v555
    %v557 = vsub.f32 1.0, %v549
    %v558 = vmul.f32 %v557, %v556
    %v560 = vrot.slane %v410, 7
    %v562 = vmul.f32 %v549, %v560
    %v563 = vadd.f32 %v558, %v562
    %v564 = vmul.f32 %v465, %v254
    %v565 = vmul.f32 %v514, %v256
    %v566 = vadd.f32 %v564, %v565
    %v567 = vmul.f32 %v563, %v259
    %v568 = vadd.f32 %v566, %v567
    %v569 = vadd.f32 %v568, %v262
    %v570 = vmul.f32 %v465, %v77
    %v571 = vmul.f32 %v465, %v79
    %v572 = vmul.f32 %v465, %v81
    %v573 = vmul.f32 %v514, %v83
    %v574 = vadd.f32 %v570, %v573
    %v575 = vmul.f32 %v514, %v86
    %v576 = vadd.f32 %v571, %v575
    %v577 = vmul.f32 %v514, %v89
    %v578 = vadd.f32 %v572, %v577
    %v579 = vmul.f32 %v563, %v92
    %v580 = vadd.f32 %v574, %v579
    %v581 = vmul.f32 %v563, %v95
    %v582 = vadd.f32 %v576, %v581
    %v583 = vmul.f32 %v563, %v98
    %v584 = vadd.f32 %v578, %v583
    %v586 = vrot.slane %v580, 7
    %v588 = vadd.f32 %v104, %v586
    %v589 = vsub.f32 0.0, %v588
    %v590 = vmul.f32 %v589, 1.442695
    %v591 = vpow.pop %v590
    %v592 = vadd.f32 %v591, 1.0
    %v593 = vrcp.pop %v592
    %v594 = vmul.f32 1.0, %v593
    %v596 = vrot.slane %v582, 7
    %v598 = vadd.f32 %v115, %v596
    %v599 = vsub.f32 0.0, %v598
    %v600 = vmul.f32 %v599, 1.442695
    %v601 = vpow.pop %v600
    %v602 = vadd.f32 %v601, 1.0
    %v603 = vrcp.pop %v602
    %v604 = vmul.f32 1.0, %v603
    %v605 = vadd.f32 %v584, %v127
    %v607 = vrot.slane %v605, 7
    %v609 = vmul.f32 %v594, %v607
    %v610 = vadd.f32 %v126, %v609
    %v611 = vtanh.pop %v610
    %v612 = vsub.f32 1.0, %v604
    %v613 = vmul.f32 %v612, %v611
    %v615 = vrot.slane %v465, 7
    %v617 = vmul.f32 %v604, %v615
    %v618 = vadd.f32 %v613, %v617
    %v619 = vmul.f32 %v465, %v136
    %v620 = vmul.f32 %v465, %v138
    %v621 = vmul.f32 %v465, %v140
    %v622 = vmul.f32 %v514, %v142
    %v623 = vadd.f32 %v619, %v622
    %v624 = vmul.f32 %v514, %v145
    %v625 = vadd.f32 %v620, %v624
    %v626 = vmul.f32 %v514, %v148
    %v627 = vadd.f32 %v621, %v626
    %v628 = vmul.f32 %v563, %v151
    %v629 = vadd.f32 %v623, %v628
    %v630 = vmul.f32 %v563, %v154
    %v631 = vadd.f32 %v625, %v630
    %v632 = vmul.f32 %v563, %v157
    %v633 = vadd.f32 %v627, %v632
    %v635 = vrot.slane %v629, 7
    %v637 = vadd.f32 %v163, %v635
    %v638 = vsub.f32 0.0, %v637
    %v639 = vmul.f32 %v638, 1.442695
    %v640 = vpow.pop %v639
    %v641 = vadd.f32 %v640, 1.0
    %v642 = vrcp.pop %v641
    %v643 = vmul.f32 1.0, %v642
    %v645 = vrot.slane %v631, 7
    %v647 = vadd.f32 %v174, %v645
    %v648 = vsub.f32 0.0, %v647
    %v649 = vmul.f32 %v648, 1.442695
    %v650 = vpow.pop %v649
    %v651 = vadd.f32 %v650, 1.0
    %v652 = vrcp.pop %v651
    %v653 = vmul.f32 1.0, %v652
    %v654 = vadd.f32 %v633, %v186
    %v656 = vrot.slane %v654, 7
    %v658 = vmul.f32 %v643, %v656
    %v659 = vadd.f32 %v185, %v658
    %v660 = vtanh.pop %v659
    %v661 = vsub.f32 1.0, %v653
    %v662 = vmul.f32 %v661, %v660
    %v664 = vrot.slane %v514, 7
    %v666 = vmul.f32 %v653, %v664
    %v667 = vadd.f32 %v662, %v666
    %v668 = vmul.f32 %v465, %v195
    %v669 = vmul.f32 %v465, %v197
    %v670 = vmul.f32 %v465, %v199
    %v671 = vmul.f32 %v514, %v201
    %v672 = vadd.f32 %v668, %v671
    %v673 = vmul.f32 %v514, %v204
    %v674 = vadd.f32 %v669, %v673
    %v675 = vmul.f32 %v514, %v207
    %v676 = vadd.f32 %v670, %v675
    %v677 = vmul.f32 %v563, %v210
    %v678 = vadd.f32 %v672, %v677
    %v679 = vmul.f32 %v563, %v213
    %v680 = vadd.f32 %v674, %v679
    %v681 = vmul.f32 %v563, %v216
    %v682 = vadd.f32 %v676, %v681
    %v684 = vrot.slane %v678, 7
    %v686 = vadd.f32 %v222, %v684
    %v687 = vsub.f32 0.0, %v686
    %v688 = vmul.f32 %v687, 1.442695
    %v689 = vpow.pop %v688
    %v690 = vadd.f32 %v689, 1.0
    %v691 = vrcp.pop %v690
    %v692 = vmul.f32 1.0, %v691
    %v694 = vrot.slane %v680, 7
    %v696 = vadd.f32 %v233, %v694
    %v697 = vsub.f32 0.0, %v696
    %v698 = vmul.f32 %v697, 1.442695
    %v699 = vpow.pop %v698
    %v700 = vadd.f32 %v699, 1.0
    %v701 = vrcp.pop %v700
    %v702 = vmul.f32 1.0, %v701
    %v703 = vadd.f32 %v682, %v245
    %v705 = vrot.slane %v703, 7
    %v707 = vmul.f32 %v692, %v705
    %v708 = vadd.f32 %v244, %v707
    %v709 = vtanh.pop %v708
    %v710 = vsub.f32 1.0, %v702
    %v711 = vmul.f32 %v710, %v709
    %v713 = vrot.slane %v563, 7
    %v715 = vmul.f32 %v702, %v713
    %v716 = vadd.f32 %v711, %v715
    %v717 = vmul.f32 %v618, %v254
    %v718 = vmul.f32 %v667, %v256
    %v719 = vadd.f32 %v717, %v718
    %v720 = vmul.f32 %v716, %v259
    %v721 = vadd.f32 %v719, %v720
    %v722 = vadd.f32 %v721, %v262
    %v723 = vmul.f32 %v618, %v77
    %v724 = vmul.f32 %v618, %v79
    %v725 = vmul.f32 %v618, %v81
    %v726 = vmul.f32 %v667, %v83
    %v727 = vadd.f32 %v723, %v726
    %v728 = vmul.f32 %v667, %v86
    %v729 = vadd.f32 %v724, %v728
    %v730 = vmul.f32 %v667, %v89
    %v731 = vadd.f32 %v725, %v730
    %v732 = vmul.f32 %v716, %v92
    %v733 = vadd.f32 %v727, %v732
    %v734 = vmul.f32 %v716, %v95
    %v735 = vadd.f32 %v729, %v734
    %v736 = vmul.f32 %v716, %v98
    %v737 = vadd.f32 %v731, %v736
    %v739 = vrot.slane %v733, 7
    %v741 = vadd.f32 %v104, %v739
    %v742 = vsub.f32 0.0, %v741
    %v743 = vmul.f32 %v742, 1.442695
    %v744 = vpow.pop %v743
    %v745 = vadd.f32 %v744, 1.0
    %v746 = vrcp.pop %v745
    %v747 = vmul.f32 1.0, %v746
    %v749 = vrot.slane %v735, 7
    %v751 = vadd.f32 %v115, %v749
    %v752 = vsub.f32 0.0, %v751
    %v753 = vmul.f32 %v752, 1.442695
    %v754 = vpow.pop %v753
    %v755 = vadd.f32 %v754, 1.0
    %v756 = vrcp.pop %v755
    %v757 = vmul.f32 1.0, %v756
    %v758 = vadd.f32 %v737, %v127
    %v760 = vrot.slane %v758, 7
    %v762 = vmul.f32 %v747, %v760
    %v763 = vadd.f32 %v126, %v762
    %v764 = vtanh.pop %v763
    %v765 = vsub.f32 1.0, %v757
    %v766 = vmul.f32 %v765, %v764
    %v768 = vrot.slane %v618, 7
    %v770 = vmul.f32 %v757, %v768
    %v771 = vadd.f32 %v766, %v770
    %v772 = vmul.f32 %v618, %v136
    %v773 = vmul.f32 %v618, %v138
    %v774 = vmul.f32 %v618, %v140
    %v775 = vmul.f32 %v667, %v142
    %v776 = vadd.f32 %v772, %v775
    %v777 = vmul.f32 %v667, %v145
    %v778 = vadd.f32 %v773, %v777
    %v779 = vmul.f32 %v667, %v148
    %v780 = vadd.f32 %v774, %v779
    %v781 = vmul.f32 %v716, %v151
    %v782 = vadd.f32 %v776, %v781
    %v783 = vmul.f32 %v716, %v154
    %v784 = vadd.f32 %v778, %v783
    %v785 = vmul.f32 %v716, %v157
    %v786 = vadd.f32 %v780, %v785
    %v788 = vrot.slane %v782, 7
    %v790 = vadd.f32 %v163, %v788
    %v791 = vsub.f32 0.0, %v790
    %v792 = vmul.f32 %v791, 1.442695
    %v793 = vpow.pop %v792
    %v794 = vadd.f32 %v793, 1.0
    %v795 = vrcp.pop %v794
    %v796 = vmul.f32 1.0, %v795
    %v798 = vrot.slane %v784, 7
    %v800 = vadd.f32 %v174, %v798
    %v801 = vsub.f32 0.0, %v800
    %v802 = vmul.f32 %v801, 1.442695
    %v803 = vpow.pop %v802
    %v804 = vadd.f32 %v803, 1.0
    %v805 = vrcp.pop %v804
    %v806 = vmul.f32 1.0, %v805
    %v807 = vadd.f32 %v786, %v186
    %v809 = vrot.slane %v807, 7
    %v811 = vmul.f32 %v796, %v809
    %v812 = vadd.f32 %v185, %v811
    %v813 = vtanh.pop %v812
    %v814 = vsub.f32 1.0, %v806
    %v815 = vmul.f32 %v814, %v813
    %v817 = vrot.slane %v667, 7
    %v819 = vmul.f32 %v806, %v817
    %v820 = vadd.f32 %v815, %v819
    %v821 = vmul.f32 %v618, %v195
    %v822 = vmul.f32 %v618, %v197
    %v823 = vmul.f32 %v618, %v199
    %v824 = vmul.f32 %v667, %v201
    %v825 = vadd.f32 %v821, %v824
    %v826 = vmul.f32 %v667, %v204
    %v827 = vadd.f32 %v822, %v826
    %v828 = vmul.f32 %v667, %v207
    %v829 = vadd.f32 %v823, %v828
    %v830 = vmul.f32 %v716, %v210
    %v831 = vadd.f32 %v825, %v830
    %v832 = vmul.f32 %v716, %v213
    %v833 = vadd.f32 %v827, %v832
    %v834 = vmul.f32 %v716, %v216
    %v835 = vadd.f32 %v829, %v834
    %v837 = vrot.slane %v831, 7
    %v839 = vadd.f32 %v222, %v837
    %v840 = vsub.f32 0.0, %v839
    %v841 = vmul.f32 %v840, 1.442695
    %v842 = vpow.pop %v841
    %v843 = vadd.f32 %v842, 1.0
    %v844 = vrcp.pop %v843
    %v845 = vmul.f32 1.0, %v844
    %v847 = vrot.slane %v833, 7
    %v849 = vadd.f32 %v233, %v847
    %v850 = vsub.f32 0.0, %v849
    %v851 = vmul.f32 %v850, 1.442695
    %v852 = vpow.pop %v851
    %v853 = vadd.f32 %v852, 1.0
    %v854 = vrcp.pop %v853
    %v855 = vmul.f32 1.0, %v854
    %v856 = vadd.f32 %v835, %v245
    %v858 = vrot.slane %v856, 7
    %v860 = vmul.f32 %v845, %v858
    %v861 = vadd.f32 %v244, %v860
    %v862 = vtanh.pop %v861
    %v863 = vsub.f32 1.0, %v855
    %v864 = vmul.f32 %v863, %v862
    %v866 = vrot.slane %v716, 7
    %v868 = vmul.f32 %v855, %v866
    %v869 = vadd.f32 %v864, %v868
    %v870 = vmul.f32 %v771, %v254
    %v871 = vmul.f32 %v820, %v256
    %v872 = vadd.f32 %v870, %v871
    %v873 = vmul.f32 %v869, %v259
    %v874 = vadd.f32 %v872, %v873
    %v875 = vadd.f32 %v874, %v262
    %v876 = vmul.f32 %v771, %v77
    %v877 = vmul.f32 %v771, %v79
    %v878 = vmul.f32 %v771, %v81
    %v879 = vmul.f32 %v820, %v83
    %v880 = vadd.f32 %v876, %v879
    %v881 = vmul.f32 %v820, %v86
    %v882 = vadd.f32 %v877, %v881
    %v883 = vmul.f32 %v820, %v89
    %v884 = vadd.f32 %v878, %v883
    %v885 = vmul.f32 %v869, %v92
    %v886 = vadd.f32 %v880, %v885
    %v887 = vmul.f32 %v869, %v95
    %v888 = vadd.f32 %v882, %v887
    %v889 = vmul.f32 %v869, %v98
    %v890 = vadd.f32 %v884, %v889
    %v892 = vrot.slane %v886, 7
    %v894 = vadd.f32 %v104, %v892
    %v895 = vsub.f32 0.0, %v894
    %v896 = vmul.f32 %v895, 1.442695
    %v897 = vpow.pop %v896
    %v898 = vadd.f32 %v897, 1.0
    %v899 = vrcp.pop %v898
    %v900 = vmul.f32 1.0, %v899
    %v902 = vrot.slane %v888, 7
    %v904 = vadd.f32 %v115, %v902
    %v905 = vsub.f32 0.0, %v904
    %v906 = vmul.f32 %v905, 1.442695
    %v907 = vpow.pop %v906
    %v908 = vadd.f32 %v907, 1.0
    %v909 = vrcp.pop %v908
    %v910 = vmul.f32 1.0, %v909
    %v911 = vadd.f32 %v890, %v127
    %v913 = vrot.slane %v911, 7
    %v915 = vmul.f32 %v900, %v913
    %v916 = vadd.f32 %v126, %v915
    %v917 = vtanh.pop %v916
    %v918 = vsub.f32 1.0, %v910
    %v919 = vmul.f32 %v918, %v917
    %v921 = vrot.slane %v771, 7
    %v923 = vmul.f32 %v910, %v921
    %v924 = vadd.f32 %v919, %v923
    %v925 = vmul.f32 %v771, %v136
    %v926 = vmul.f32 %v771, %v138
    %v927 = vmul.f32 %v771, %v140
    %v928 = vmul.f32 %v820, %v142
    %v929 = vadd.f32 %v925, %v928
    %v930 = vmul.f32 %v820, %v145
    %v931 = vadd.f32 %v926, %v930
    %v932 = vmul.f32 %v820, %v148
    %v933 = vadd.f32 %v927, %v932
    %v934 = vmul.f32 %v869, %v151
    %v935 = vadd.f32 %v929, %v934
    %v936 = vmul.f32 %v869, %v154
    %v937 = vadd.f32 %v931, %v936
    %v938 = vmul.f32 %v869, %v157
    %v939 = vadd.f32 %v933, %v938
    %v941 = vrot.slane %v935, 7
    %v943 = vadd.f32 %v163, %v941
    %v944 = vsub.f32 0.0, %v943
    %v945 = vmul.f32 %v944, 1.442695
    %v946 = vpow.pop %v945
    %v947 = vadd.f32 %v946, 1.0
    %v948 = vrcp.pop %v947
    %v949 = vmul.f32 1.0, %v948
    %v951 = vrot.slane %v937, 7
    %v953 = vadd.f32 %v174, %v951
    %v954 = vsub.f32 0.0, %v953
    %v955 = vmul.f32 %v954, 1.442695
    %v956 = vpow.pop %v955
    %v957 = vadd.f32 %v956, 1.0
    %v958 = vrcp.pop %v957
    %v959 = vmul.f32 1.0, %v958
    %v960 = vadd.f32 %v939, %v186
    %v962 = vrot.slane %v960, 7
    %v964 = vmul.f32 %v949, %v962
    %v965 = vadd.f32 %v185, %v964
    %v966 = vtanh.pop %v965
    %v967 = vsub.f32 1.0, %v959
    %v968 = vmul.f32 %v967, %v966
    %v970 = vrot.slane %v820, 7
    %v972 = vmul.f32 %v959, %v970
    %v973 = vadd.f32 %v968, %v972
    %v974 = vmul.f32 %v771, %v195
    %v975 = vmul.f32 %v771, %v197
    %v976 = vmul.f32 %v771, %v199
    %v977 = vmul.f32 %v820, %v201
    %v978 = vadd.f32 %v974, %v977
    %v979 = vmul.f32 %v820, %v204
    %v980 = vadd.f32 %v975, %v979
    %v981 = vmul.f32 %v820, %v207
    %v982 = vadd.f32 %v976, %v981
    %v983 = vmul.f32 %v869, %v210
    %v984 = vadd.f32 %v978, %v983
    %v985 = vmul.f32 %v869, %v213
    %v986 = vadd.f32 %v980, %v985
    %v987 = vmul.f32 %v869, %v216
    %v988 = vadd.f32 %v982, %v987
    %v990 = vrot.slane %v984, 7
    %v992 = vadd.f32 %v222, %v990
    %v993 = vsub.f32 0.0, %v992
    %v994 = vmul.f32 %v993, 1.442695
    %v995 = vpow.pop %v994
    %v996 = vadd.f32 %v995, 1.0
    %v997 = vrcp.pop %v996
    %v998 = vmul.f32 1.0, %v997
    %v1000 = vrot.slane %v986, 7
    %v1002 = vadd.f32 %v233, %v1000
    %v1003 = vsub.f32 0.0, %v1002
    %v1004 = vmul.f32 %v1003, 1.442695
    %v1005 = vpow.pop %v1004
    %v1006 = vadd.f32 %v1005, 1.0
    %v1007 = vrcp.pop %v1006
    %v1008 = vmul.f32 1.0, %v1007
    %v1009 = vadd.f32 %v988, %v245
    %v1011 = vrot.slane %v1009, 7
    %v1013 = vmul.f32 %v998, %v1011
    %v1014 = vadd.f32 %v244, %v1013
    %v1015 = vtanh.pop %v1014
    %v1016 = vsub.f32 1.0, %v1008
    %v1017 = vmul.f32 %v1016, %v1015
    %v1019 = vrot.slane %v869, 7
    %v1021 = vmul.f32 %v1008, %v1019
    %v1022 = vadd.f32 %v1017, %v1021
    %v1023 = vmul.f32 %v924, %v254
    %v1024 = vmul.f32 %v973, %v256
    %v1025 = vadd.f32 %v1023, %v1024
    %v1026 = vmul.f32 %v1022, %v259
    %v1027 = vadd.f32 %v1025, %v1026
    %v1028 = vadd.f32 %v1027, %v262
    %v1029 = vmul.f32 %v924, %v77
    %v1030 = vmul.f32 %v924, %v79
    %v1031 = vmul.f32 %v924, %v81
    %v1032 = vmul.f32 %v973, %v83
    %v1033 = vadd.f32 %v1029, %v1032
    %v1034 = vmul.f32 %v973, %v86
    %v1035 = vadd.f32 %v1030, %v1034
    %v1036 = vmul.f32 %v973, %v89
    %v1037 = vadd.f32 %v1031, %v1036
    %v1038 = vmul.f32 %v1022, %v92
    %v1039 = vadd.f32 %v1033, %v1038
    %v1040 = vmul.f32 %v1022, %v95
    %v1041 = vadd.f32 %v1035, %v1040
    %v1042 = vmul.f32 %v1022, %v98
    %v1043 = vadd.f32 %v1037, %v1042
    %v1045 = vrot.slane %v1039, 7
    %v1047 = vadd.f32 %v104, %v1045
    %v1048 = vsub.f32 0.0, %v1047
    %v1049 = vmul.f32 %v1048, 1.442695
    %v1050 = vpow.pop %v1049
    %v1051 = vadd.f32 %v1050, 1.0
    %v1052 = vrcp.pop %v1051
    %v1053 = vmul.f32 1.0, %v1052
    %v1055 = vrot.slane %v1041, 7
    %v1057 = vadd.f32 %v115, %v1055
    %v1058 = vsub.f32 0.0, %v1057
    %v1059 = vmul.f32 %v1058, 1.442695
    %v1060 = vpow.pop %v1059
    %v1061 = vadd.f32 %v1060, 1.0
    %v1062 = vrcp.pop %v1061
    %v1063 = vmul.f32 1.0, %v1062
    %v1064 = vadd.f32 %v1043, %v127
    %v1066 = vrot.slane %v1064, 7
    %v1068 = vmul.f32 %v1053, %v1066
    %v1069 = vadd.f32 %v126, %v1068
    %v1070 = vtanh.pop %v1069
    %v1071 = vsub.f32 1.0, %v1063
    %v1072 = vmul.f32 %v1071, %v1070
    %v1074 = vrot.slane %v924, 7
    %v1076 = vmul.f32 %v1063, %v1074
    %v1077 = vadd.f32 %v1072, %v1076
    %v1078 = vmul.f32 %v924, %v136
    %v1079 = vmul.f32 %v924, %v138
    %v1080 = vmul.f32 %v924, %v140
    %v1081 = vmul.f32 %v973, %v142
    %v1082 = vadd.f32 %v1078, %v1081
    %v1083 = vmul.f32 %v973, %v145
    %v1084 = vadd.f32 %v1079, %v1083
    %v1085 = vmul.f32 %v973, %v148
    %v1086 = vadd.f32 %v1080, %v1085
    %v1087 = vmul.f32 %v1022, %v151
    %v1088 = vadd.f32 %v1082, %v1087
    %v1089 = vmul.f32 %v1022, %v154
    %v1090 = vadd.f32 %v1084, %v1089
    %v1091 = vmul.f32 %v1022, %v157
    %v1092 = vadd.f32 %v1086, %v1091
    %v1094 = vrot.slane %v1088, 7
    %v1096 = vadd.f32 %v163, %v1094
    %v1097 = vsub.f32 0.0, %v1096
    %v1098 = vmul.f32 %v1097, 1.442695
    %v1099 = vpow.pop %v1098
    %v1100 = vadd.f32 %v1099, 1.0
    %v1101 = vrcp.pop %v1100
    %v1102 = vmul.f32 1.0, %v1101
    %v1104 = vrot.slane %v1090, 7
    %v1106 = vadd.f32 %v174, %v1104
    %v1107 = vsub.f32 0.0, %v1106
    %v1108 = vmul.f32 %v1107, 1.442695
    %v1109 = vpow.pop %v1108
    %v1110 = vadd.f32 %v1109, 1.0
    %v1111 = vrcp.pop %v1110
    %v1112 = vmul.f32 1.0, %v1111
    %v1113 = vadd.f32 %v1092, %v186
    %v1115 = vrot.slane %v1113, 7
    %v1117 = vmul.f32 %v1102, %v1115
    %v1118 = vadd.f32 %v185, %v1117
    %v1119 = vtanh.pop %v1118
    %v1120 = vsub.f32 1.0, %v1112
    %v1121 = vmul.f32 %v1120, %v1119
    %v1123 = vrot.slane %v973, 7
    %v1125 = vmul.f32 %v1112, %v1123
    %v1126 = vadd.f32 %v1121, %v1125
    %v1127 = vmul.f32 %v924, %v195
    %v1128 = vmul.f32 %v924, %v197
    %v1129 = vmul.f32 %v924, %v199
    %v1130 = vmul.f32 %v973, %v201
    %v1131 = vadd.f32 %v1127, %v1130
    %v1132 = vmul.f32 %v973, %v204
    %v1133 = vadd.f32 %v1128, %v1132
    %v1134 = vmul.f32 %v973, %v207
    %v1135 = vadd.f32 %v1129, %v1134
    %v1136 = vmul.f32 %v1022, %v210
    %v1137 = vadd.f32 %v1131, %v1136
    %v1138 = vmul.f32 %v1022, %v213
    %v1139 = vadd.f32 %v1133, %v1138
    %v1140 = vmul.f32 %v1022, %v216
    %v1141 = vadd.f32 %v1135, %v1140
    %v1143 = vrot.slane %v1137, 7
    %v1145 = vadd.f32 %v222, %v1143
    %v1146 = vsub.f32 0.0, %v1145
    %v1147 = vmul.f32 %v1146, 1.442695
    %v1148 = vpow.pop %v1147
    %v1149 = vadd.f32 %v1148, 1.0
    %v1150 = vrcp.pop %v1149
    %v1151 = vmul.f32 1.0, %v1150
    %v1153 = vrot.slane %v1139, 7
    %v1155 = vadd.f32 %v233, %v1153
    %v1156 = vsub.f32 0.0, %v1155
    %v1157 = vmul.f32 %v1156, 1.442695
    %v1158 = vpow.pop %v1157
    %v1159 = vadd.f32 %v1158, 1.0
    %v1160 = vrcp.pop %v1159
    %v1161 = vmul.f32 1.0, %v1160
    %v1162 = vadd.f32 %v1141, %v245
    %v1164 = vrot.slane %v1162, 7
    %v1166 = vmul.f32 %v1151, %v1164
    %v1167 = vadd.f32 %v244, %v1166
    %v1168 = vtanh.pop %v1167
    %v1169 = vsub.f32 1.0, %v1161
    %v1170 = vmul.f32 %v1169, %v1168
    %v1172 = vrot.slane %v1022, 7
    %v1174 = vmul.f32 %v1161, %v1172
    %v1175 = vadd.f32 %v1170, %v1174
    %v1176 = vmul.f32 %v1077, %v254
    %v1177 = vmul.f32 %v1126, %v256
    %v1178 = vadd.f32 %v1176, %v1177
    %v1179 = vmul.f32 %v1175, %v259
    %v1180 = vadd.f32 %v1178, %v1179
    %v1181 = vadd.f32 %v1180, %v262
    %v1182 = vmul.f32 %v1077, %v77
    %v1183 = vmul.f32 %v1077, %v79
    %v1184 = vmul.f32 %v1077, %v81
    %v1185 = vmul.f32 %v1126, %v83
    %v1186 = vadd.f32 %v1182, %v1185
    %v1187 = vmul.f32 %v1126, %v86
    %v1188 = vadd.f32 %v1183, %v1187
    %v1189 = vmul.f32 %v1126, %v89
    %v1190 = vadd.f32 %v1184, %v1189
    %v1191 = vmul.f32 %v1175, %v92
    %v1192 = vadd.f32 %v1186, %v1191
    %v1193 = vmul.f32 %v1175, %v95
    %v1194 = vadd.f32 %v1188, %v1193
    %v1195 = vmul.f32 %v1175, %v98
    %v1196 = vadd.f32 %v1190, %v1195
    %v1198 = vrot.slane %v1192, 7
    %v1200 = vadd.f32 %v104, %v1198
    %v1201 = vsub.f32 0.0, %v1200
    %v1202 = vmul.f32 %v1201, 1.442695
    %v1203 = vpow.pop %v1202
    %v1204 = vadd.f32 %v1203, 1.0
    %v1205 = vrcp.pop %v1204
    %v1206 = vmul.f32 1.0, %v1205
    %v1208 = vrot.slane %v1194, 7
    %v1210 = vadd.f32 %v115, %v1208
    %v1211 = vsub.f32 0.0, %v1210
    %v1212 = vmul.f32 %v1211, 1.442695
    %v1213 = vpow.pop %v1212
    %v1214 = vadd.f32 %v1213, 1.0
    %v1215 = vrcp.pop %v1214
    %v1216 = vmul.f32 1.0, %v1215
    %v1217 = vadd.f32 %v1196, %v127
    %v1219 = vrot.slane %v1217, 7
    %v1221 = vmul.f32 %v1206, %v1219
    %v1222 = vadd.f32 %v126, %v1221
    %v1223 = vtanh.pop %v1222
    %v1224 = vsub.f32 1.0, %v1216
    %v1225 = vmul.f32 %v1224, %v1223
    %v1227 = vrot.slane %v1077, 7
    %v1229 = vmul.f32 %v1216, %v1227
    %v1230 = vadd.f32 %v1225, %v1229
    %v1231 = vmul.f32 %v1077, %v136
    %v1232 = vmul.f32 %v1077, %v138
    %v1233 = vmul.f32 %v1077, %v140
    %v1234 = vmul.f32 %v1126, %v142
    %v1235 = vadd.f32 %v1231, %v1234
    %v1236 = vmul.f32 %v1126, %v145
    %v1237 = vadd.f32 %v1232, %v1236
    %v1238 = vmul.f32 %v1126, %v148
    %v1239 = vadd.f32 %v1233, %v1238
    %v1240 = vmul.f32 %v1175, %v151
    %v1241 = vadd.f32 %v1235, %v1240
    %v1242 = vmul.f32 %v1175, %v154
    %v1243 = vadd.f32 %v1237, %v1242
    %v1244 = vmul.f32 %v1175, %v157
    %v1245 = vadd.f32 %v1239, %v1244
    %v1247 = vrot.slane %v1241, 7
    %v1249 = vadd.f32 %v163, %v1247
    %v1250 = vsub.f32 0.0, %v1249
    %v1251 = vmul.f32 %v1250, 1.442695
    %v1252 = vpow.pop %v1251
    %v1253 = vadd.f32 %v1252, 1.0
    %v1254 = vrcp.pop %v1253
    %v1255 = vmul.f32 1.0, %v1254
    %v1257 = vrot.slane %v1243, 7
    %v1259 = vadd.f32 %v174, %v1257
    %v1260 = vsub.f32 0.0, %v1259
    %v1261 = vmul.f32 %v1260, 1.442695
    %v1262 = vpow.pop %v1261
    %v1263 = vadd.f32 %v1262, 1.0
    %v1264 = vrcp.pop %v1263
    %v1265 = vmul.f32 1.0, %v1264
    %v1266 = vadd.f32 %v1245, %v186
    %v1268 = vrot.slane %v1266, 7
    %v1270 = vmul.f32 %v1255, %v1268
    %v1271 = vadd.f32 %v185, %v1270
    %v1272 = vtanh.pop %v1271
    %v1273 = vsub.f32 1.0, %v1265
    %v1274 = vmul.f32 %v1273, %v1272
    %v1276 = vrot.slane %v1126, 7
    %v1278 = vmul.f32 %v1265, %v1276
    %v1279 = vadd.f32 %v1274, %v1278
    %v1280 = vmul.f32 %v1077, %v195
    %v1281 = vmul.f32 %v1077, %v197
    %v1282 = vmul.f32 %v1077, %v199
    %v1283 = vmul.f32 %v1126, %v201
    %v1284 = vadd.f32 %v1280, %v1283
    %v1285 = vmul.f32 %v1126, %v204
    %v1286 = vadd.f32 %v1281, %v1285
    %v1287 = vmul.f32 %v1126, %v207
    %v1288 = vadd.f32 %v1282, %v1287
    %v1289 = vmul.f32 %v1175, %v210
    %v1290 = vadd.f32 %v1284, %v1289
    %v1291 = vmul.f32 %v1175, %v213
    %v1292 = vadd.f32 %v1286, %v1291
    %v1293 = vmul.f32 %v1175, %v216
    %v1294 = vadd.f32 %v1288, %v1293
    %v1296 = vrot.slane %v1290, 7
    %v1298 = vadd.f32 %v222, %v1296
    %v1299 = vsub.f32 0.0, %v1298
    %v1300 = vmul.f32 %v1299, 1.442695
    %v1301 = vpow.pop %v1300
    %v1302 = vadd.f32 %v1301, 1.0
    %v1303 = vrcp.pop %v1302
    %v1304 = vmul.f32 1.0, %v1303
    %v1306 = vrot.slane %v1292, 7
    %v1308 = vadd.f32 %v233, %v1306
    %v1309 = vsub.f32 0.0, %v1308
    %v1310 = vmul.f32 %v1309, 1.442695
    %v1311 = vpow.pop %v1310
    %v1312 = vadd.f32 %v1311, 1.0
    %v1313 = vrcp.pop %v1312
    %v1314 = vmul.f32 1.0, %v1313
    %v1315 = vadd.f32 %v1294, %v245
    %v1317 = vrot.slane %v1315, 7
    %v1319 = vmul.f32 %v1304, %v1317
    %v1320 = vadd.f32 %v244, %v1319
    %v1321 = vtanh.pop %v1320
    %v1322 = vsub.f32 1.0, %v1314
    %v1323 = vmul.f32 %v1322, %v1321
    %v1325 = vrot.slane %v1175, 7
    %v1327 = vmul.f32 %v1314, %v1325
    %v1328 = vadd.f32 %v1323, %v1327
    %v1329 = vmul.f32 %v1230, %v254
    %v1330 = vmul.f32 %v1279, %v256
    %v1331 = vadd.f32 %v1329, %v1330
    %v1332 = vmul.f32 %v1328, %v259
    %v1333 = vadd.f32 %v1331, %v1332
    %v1334 = vadd.f32 %v1333, %v262
    %vm1335 = vcmask 1040384
    %v1336 = vsel %vm1335, %v263, %v416
    %vm1337 = vcmask 1041408
    %v1338 = vsel %vm1337, %v1336, %v569
    %vm1339 = vcmask 1042432
    %v1340 = vsel %vm1339, %v1338, %v722
    %vm1341 = vcmask 1043456
    %v1342 = vsel %vm1341, %v1340, %v875
    %vm1343 = vcmask 1044480
    %v1344 = vsel %vm1343, %v1342, %v1028
    %vm1345 = vcmask 1045504
    %v1346 = vsel %vm1345, %v1344, %v1181
    %vm1347 = vcmask 1046528
    %v1348 = vsel %vm1347, %v1346, %v1334
    %vm1349 = vcmask 15360
    %1350 = vst.msk [vmem:[%s2] sm:$0xff] %vm1349, %v1348
    // Predicated region
    $region14: #{operator_approximator_forward.1} parent=1 // pred_check
      _
    $region15: #{operator_approximator_forward.1} parent=1 // pred_check_branch
      %1352 = sbr.rel (0) target = $region17
    $region16: #{operator_approximator_forward.1} parent=1 // pred_region
      _
    $region17: #{operator_approximator_forward.1} parent=1 // pred_fallthru
      _
    // Predicated region
    $region18: #{operator_approximator_forward.1} parent=1 // pred_check
      _
    $region19: #{operator_approximator_forward.1} parent=1 // pred_check_branch
      %1354 = sbr.rel (0) target = $region21
    $region20: #{operator_approximator_forward.1} parent=1 // pred_region
      _
    $region21: #{operator_approximator_forward.1} parent=1 // pred_fallthru
      _
    %1355 = vsyncpa [#allocation3], 1

</llo_original>
